<compile_context>
chip_gen: v7x
topology: tpu7x:2x2x1
jax: 0.10.0
libtpu: 0.0.40
codegen_flags: <defaults>
</compile_context>

<pallas_src>
import jax
import jax.numpy as jnp
from jax.experimental import pallas as pl
from jax.experimental.pallas import tpu as pltpu


def _round_up(x, m):
    return (x + m - 1) // m * m


# ----------------------------------------------------------------------------
# Pallas kernels
# ----------------------------------------------------------------------------
def _mm_bias_lrelu_kernel(p_ref, w_ref, b_ref, o_ref):
    """o = LeakyReLU_0.2(p @ w + b).  bf16 operands, f32 MXU accumulation,
    bf16 output (feeds the next conv layer)."""
    acc = jnp.dot(p_ref[...], w_ref[...], preferred_element_type=jnp.float32)
    acc = acc + b_ref[...]
    acc = jnp.where(acc >= 0, acc, jnp.float32(0.2) * acc)
    o_ref[...] = acc.astype(o_ref.dtype)


def _convblock_kernel(p_ref, w_ref, g_ref, b_ref, o_ref):
    """Fused Conv2d(no bias) + InstanceNorm2d(affine) + LeakyReLU(0.2).

    p_ref: (imgs, HW, Kp) bf16, w_ref: (Kp, Cp) bf16, g/b: (1, Cp) f32,
    o_ref: (imgs, HW, Cp) bf16.  One-pass spatial stats in f32.
    """
    imgs, hw, _ = p_ref.shape
    cp = w_ref.shape[1]
    x = jnp.dot(p_ref[...].reshape(imgs * hw, -1), w_ref[...],
                preferred_element_type=jnp.float32).reshape(imgs, hw, cp)
    mean = jnp.mean(x, axis=1, keepdims=True)                        # (imgs,1,Cp)
    var = jnp.maximum(jnp.mean(x * x, axis=1, keepdims=True) - mean * mean, 0.0)
    xhat = (x - mean) * jax.lax.rsqrt(var + jnp.float32(1e-5))       # PyTorch eps
    y = xhat * g_ref[0] + b_ref[0]
    y = jnp.where(y >= 0, y, jnp.float32(0.2) * y)
    o_ref[...] = y.astype(o_ref.dtype)


def _convblock_final_kernel(p_ref, w_ref, g_ref, b_ref, w5_ref, b5_ref, o_ref):
    """Fused block-4 Conv+InstanceNorm+LeakyReLU, plus the final 4x4 Conv
    (Cout=1, stride 2, pad 0) + bias, all in one grid step over all images.

    p_ref: (N, 16, Kp) bf16, w_ref: (Kp, Cp) bf16, g/b: (1, Cp) f32,
    w5_ref: (16, Cp) f32, b5_ref: (1,) f32 in SMEM, o_ref: (N, 128) f32
    (score broadcast across lanes; wrapper reads lane 0).
    """
    imgs, hw, _ = p_ref.shape
    cp = w_ref.shape[1]
    x = jnp.dot(p_ref[...].reshape(imgs * hw, -1), w_ref[...],
                preferred_element_type=jnp.float32).reshape(imgs, hw, cp)
    mean = jnp.mean(x, axis=1, keepdims=True)
    var = jnp.maximum(jnp.mean(x * x, axis=1, keepdims=True) - mean * mean, 0.0)
    xhat = (x - mean) * jax.lax.rsqrt(var + jnp.float32(1e-5))
    y = xhat * g_ref[0] + b_ref[0]
    y = jnp.where(y >= 0, y, jnp.float32(0.2) * y)                   # (imgs,16,Cp)
    # Final conv == per-image dot over the whole (16, Cp) activation.
    s = jnp.sum(y * w5_ref[...], axis=1)                             # (imgs, Cp)
    s = jnp.sum(s, axis=-1, keepdims=True) + b5_ref[0]               # (imgs, 1)
    o_ref[...] = jnp.broadcast_to(s, o_ref.shape)


# ----------------------------------------------------------------------------
# Glue helpers (im2col, weight packing) -- plain JAX, fused by XLA under jit.
# ----------------------------------------------------------------------------
def _im2col(x, K, stride, padding):
    """x: (N, H, W, Cin) -> patches (N, Ho*Wo, K*K*Cin) with (kh, kw, c) order."""
    N, H, W, Cin = x.shape
    x_pad = jnp.pad(x, ((0, 0), (padding, padding), (padding, padding), (0, 0)))
    Hp, Wp = H + 2 * padding, W + 2 * padding
    Ho = (Hp - K) // stride + 1
    Wo = (Wp - K) // stride + 1
    slices = []
    for kh in range(K):
        for kw in range(K):
            slices.append(
                x_pad[:, kh:kh + stride * (Ho - 1) + 1:stride,
                         kw:kw + stride * (Wo - 1) + 1:stride, :])
    patches = jnp.stack(slices, axis=3)                    # (N, Ho, Wo, K*K, Cin)
    return patches.reshape(N, Ho * Wo, K * K * Cin), Ho, Wo


def _weight_to_matmul(w, Kp, Cp):
    """(Cout, Cin, K, K) PyTorch layout -> zero-padded (Kp, Cp) bf16 matmul weight."""
    Cout, Cin, K, _ = w.shape
    Kd = K * K * Cin
    w_mat = jnp.transpose(w, (2, 3, 1, 0)).reshape(Kd, Cout).astype(jnp.float32)
    w_mat = jnp.pad(w_mat, ((0, Kp - Kd), (0, Cp - Cout)))
    return w_mat.astype(jnp.bfloat16)


# ----------------------------------------------------------------------------
# Pallas-backed layers
# ----------------------------------------------------------------------------
def conv2d_bias_lrelu_pallas(x, w, b, *, stride, padding, block_m=1024):
    """Conv2d(bias) + LeakyReLU(0.2).  x: (N,H,W,Cin), w: (Cout,Cin,K,K) -> bf16."""
    N, H, W, Cin = x.shape
    Cout, _, K, _ = w.shape

    patches, Ho, Wo = _im2col(x, K, stride, padding)       # (N, HW, Kd)
    HW = Ho * Wo
    Kd = K * K * Cin
    Kp = _round_up(Kd, 128)                                # lane-dense K
    Cp = _round_up(Cout, 128)                              # lane-dense Cout / output

    M = N * HW
    TM = block_m if M >= block_m else _round_up(M, 8)
    Mp = _round_up(M, TM)

    p = patches.reshape(M, Kd).astype(jnp.bfloat16)
    p = jnp.pad(p, ((0, Mp - M), (0, Kp - Kd)))
    w_mat = _weight_to_matmul(w, Kp, Cp)
    bias = jnp.pad(b.astype(jnp.float32), (0, Cp - Cout)).reshape(1, Cp)

    out = pl.pallas_call(
        _mm_bias_lrelu_kernel,
        out_shape=jax.ShapeDtypeStruct((Mp, Cp), jnp.bfloat16),
        grid=(Mp // TM,),
        in_specs=[
            pl.BlockSpec((TM, Kp), lambda i: (i, 0)),
            pl.BlockSpec((Kp, Cp), lambda i: (0, 0)),
            pl.BlockSpec((1, Cp), lambda i: (0, 0)),
        ],
        out_specs=pl.BlockSpec((TM, Cp), lambda i: (i, 0)),
        compiler_params=pltpu.CompilerParams(dimension_semantics=("parallel",)),
    )(p, w_mat, bias)

    return out[:M, :Cout].reshape(N, Ho, Wo, Cout)


def conv2d_instnorm_lrelu_pallas(x, w, gamma, beta, *, stride, padding,
                                 images_per_block=1):
    """Fused Conv2d(no bias) + InstanceNorm2d(affine) + LeakyReLU(0.2) -> bf16."""
    N, H, W, Cin = x.shape
    Cout, _, K, _ = w.shape

    patches, Ho, Wo = _im2col(x, K, stride, padding)       # (N, HW, Kd)
    HW = Ho * Wo
    assert HW % 8 == 0, "fused conv+instnorm expects Ho*Wo to be a multiple of 8"
    Kd = K * K * Cin
    Kp = _round_up(Kd, 128)
    Cp = _round_up(Cout, 128)

    ib = min(images_per_block, N)
    assert N % ib == 0

    p = jnp.pad(patches.astype(jnp.bfloat16), ((0, 0), (0, 0), (0, Kp - Kd)))
    w_mat = _weight_to_matmul(w, Kp, Cp)
    g = jnp.pad(gamma.astype(jnp.float32), (0, Cp - Cout)).reshape(1, Cp)
    bt = jnp.pad(beta.astype(jnp.float32), (0, Cp - Cout)).reshape(1, Cp)

    out = pl.pallas_call(
        _convblock_kernel,
        out_shape=jax.ShapeDtypeStruct((N, HW, Cp), jnp.bfloat16),
        grid=(N // ib,),
        in_specs=[
            pl.BlockSpec((ib, HW, Kp), lambda n: (n, 0, 0)),
            pl.BlockSpec((Kp, Cp), lambda n: (0, 0)),
            pl.BlockSpec((1, Cp), lambda n: (0, 0)),
            pl.BlockSpec((1, Cp), lambda n: (0, 0)),
        ],
        out_specs=pl.BlockSpec((ib, HW, Cp), lambda n: (n, 0, 0)),
        compiler_params=pltpu.CompilerParams(dimension_semantics=("parallel",)),
    )(p, w_mat, g, bt)

    return out[:, :, :Cout].reshape(N, Ho, Wo, Cout)


def conv2d_instnorm_lrelu_final_pallas(x, w, gamma, beta, w5, b5, *, stride, padding):
    """Fused block-4 Conv+IN+LeakyReLU plus final Conv2d(8f->1, k=4, s=2, p=0)."""
    N, H, W, Cin = x.shape
    Cout, _, K, _ = w.shape

    patches, Ho, Wo = _im2col(x, K, stride, padding)       # (N, HW, Kd)
    HW = Ho * Wo
    assert (Ho, Wo) == (4, 4), "final-conv fusion expects a 4x4 block-4 output (64x64 input)"
    Kd = K * K * Cin
    Kp = _round_up(Kd, 128)
    Cp = _round_up(Cout, 128)

    p = jnp.pad(patches.astype(jnp.bfloat16), ((0, 0), (0, 0), (0, Kp - Kd)))
    w_mat = _weight_to_matmul(w, Kp, Cp)
    g = jnp.pad(gamma.astype(jnp.float32), (0, Cp - Cout)).reshape(1, Cp)
    bt = jnp.pad(beta.astype(jnp.float32), (0, Cp - Cout)).reshape(1, Cp)
    # Final conv weight (1, Cout, 4, 4) -> (HW=16, Cp) in (kh, kw) major, c minor
    # order matching the NHWC block-4 activation layout; padded lanes are zero.
    w5_mat = jnp.transpose(w5[0], (1, 2, 0)).reshape(HW, Cout).astype(jnp.float32)
    w5_mat = jnp.pad(w5_mat, ((0, 0), (0, Cp - Cout)))
    b5 = b5.astype(jnp.float32).reshape(1)

    out = pl.pallas_call(
        _convblock_final_kernel,
        out_shape=jax.ShapeDtypeStruct((N, 128), jnp.float32),
        grid=(1,),
        in_specs=[
            pl.BlockSpec((N, HW, Kp), lambda i: (0, 0, 0)),
            pl.BlockSpec((Kp, Cp), lambda i: (0, 0)),
            pl.BlockSpec((1, Cp), lambda i: (0, 0)),
            pl.BlockSpec((1, Cp), lambda i: (0, 0)),
            pl.BlockSpec((HW, Cp), lambda i: (0, 0)),
            pl.BlockSpec(memory_space=pltpu.MemorySpace.SMEM),
        ],
        out_specs=pl.BlockSpec((N, 128), lambda i: (0, 0)),
    )(p, w_mat, g, bt, w5_mat, b5)

    return out[:, :1].reshape(N, 1, 1, 1)


# ----------------------------------------------------------------------------
# Model: parameter init + forward
# ----------------------------------------------------------------------------
def init_params(key, channels_image, features_d):
    f = features_d
    shapes = {
        "w1": (f, channels_image, 4, 4), "b1": (f,),
        "w2": (2 * f, f, 4, 4),
        "w3": (4 * f, 2 * f, 4, 4),
        "w4": (8 * f, 4 * f, 4, 4),
        "w5": (1, 8 * f, 4, 4), "b5": (1,),
    }
    params = {}
    keys = jax.random.split(key, len(shapes))
    for k, (name, shp) in zip(keys, shapes.items()):
        params[name] = 0.02 * jax.random.normal(k, shp, jnp.float32)
    # InstanceNorm affine params (ones / zeros, as in PyTorch init)
    for i, c in zip((2, 3, 4), (2 * f, 4 * f, 8 * f)):
        params[f"gamma{i}"] = jnp.ones((c,), jnp.float32)
        params[f"beta{i}"] = jnp.zeros((c,), jnp.float32)
    return params


def wasserstein_critic_forward(x_nchw, params):
    # glue: NCHW -> NHWC
    h = jnp.transpose(x_nchw, (0, 2, 3, 1)).astype(jnp.float32)
    n = h.shape[0]

    # block 1: Conv(bias) + LeakyReLU(0.2), bf16 out, TM=1024 (grid of 2)
    h = conv2d_bias_lrelu_pallas(h, params["w1"], params["b1"], stride=2, padding=1)

    # block 2 (HW=256): fused Conv + InstanceNorm + LeakyReLU, one image per step
    h = conv2d_instnorm_lrelu_pallas(h, params["w2"], params["gamma2"], params["beta2"],
                                     stride=2, padding=1, images_per_block=1)

    # block 3 (HW=64): fused, all images batched into one grid step
    h = conv2d_instnorm_lrelu_pallas(h, params["w3"], params["gamma3"], params["beta3"],
                                     stride=2, padding=1, images_per_block=n)

    # block 4 (HW=16) + final Conv(bias, Cout=1): fully fused, f32 scores
    h = conv2d_instnorm_lrelu_final_pallas(h, params["w4"], params["gamma4"],
                                           params["beta4"], params["w5"], params["b5"],
                                           stride=2, padding=1)

    # output already (N, 1, 1, 1) == PyTorch NCHW output layout
    return h


if __name__ == "__main__":
    key = jax.random.PRNGKey(0)
    k_x, k_p = jax.random.split(key)

    channels_image, features_d = 3, 8
    # 64x64 is the smallest input this critic topology reduces to a 1x1 score
    x = jax.random.normal(k_x, (2, channels_image, 64, 64), jnp.float32)

    params = init_params(k_p, channels_image, features_d)

    fwd = jax.jit(wasserstein_critic_forward)
    out = jax.block_until_ready(fwd(x, params))

    assert out.shape == (2, 1, 1, 1), out.shape
    assert out.dtype == jnp.float32
    assert bool(jnp.all(jnp.isfinite(out)))
    print("KERNEL_OK")
</pallas_src>

<mosaic_0001>
module attributes {stable_mosaic.version = 11 : i64} {
  func.func @_mm_bias_lrelu_kernel(%arg0: i32, %arg1: memref<1024x128xbf16, #tpu.memory_space<vmem>>, %arg2: memref<128x128xbf16, #tpu.memory_space<vmem>>, %arg3: memref<1x128xf32, #tpu.memory_space<vmem>>, %arg4: memref<1024x128xbf16, #tpu.memory_space<vmem>>) attributes {dimension_semantics = [#tpu.dimension_semantics<parallel>], iteration_bounds = array<i64: 2>, scalar_prefetch = 0 : i64, scratch_operands = 0 : i64, tpu.core_type = #tpu.core_type<tc>, window_params = [{transform_indices = @transform_0, window_bounds = array<i64: 1024, 128>}, {pipeline_mode = #tpu.pipeline_mode<synchronous>, transform_indices = @transform_1, window_bounds = array<i64: 128, 128>}, {pipeline_mode = #tpu.pipeline_mode<synchronous>, transform_indices = @transform_2, window_bounds = array<i64: 1, 128>}, {transform_indices = @transform_3, window_bounds = array<i64: 1024, 128>}]} {
    %c0 = arith.constant 0 : index
    %c0_0 = arith.constant 0 : index
    %0 = vector.load %arg1[%c0, %c0_0] : memref<1024x128xbf16, #tpu.memory_space<vmem>>, vector<1024x128xbf16>
    %c0_1 = arith.constant 0 : index
    %c0_2 = arith.constant 0 : index
    %1 = vector.load %arg2[%c0_1, %c0_2] : memref<128x128xbf16, #tpu.memory_space<vmem>>, vector<128x128xbf16>
    %cst = arith.constant dense<0.000000e+00> : vector<1024x128xf32>
    %2 = tpu.matmul %0, %1, %cst {dimension_numbers = #tpu.dot_dimension_numbers<[1], [0], [0], [1], [0, 0, 1, 1], [], []>} : vector<1024x128xbf16>, vector<128x128xbf16>, vector<1024x128xf32> -> vector<1024x128xf32>
    %c0_3 = arith.constant 0 : index
    %c0_4 = arith.constant 0 : index
    %3 = vector.load %arg3[%c0_3, %c0_4] : memref<1x128xf32, #tpu.memory_space<vmem>>, vector<1x128xf32>
    %4 = vector.broadcast %3 : vector<1x128xf32> to vector<1024x128xf32>
    %5 = arith.addf %2, %4 : vector<1024x128xf32>
    %cst_5 = arith.constant 0.000000e+00 : f32
    %6 = vector.broadcast %cst_5 : f32 to vector<1024x128xf32>
    %7 = arith.cmpf oge, %5, %6 : vector<1024x128xf32>
    %cst_6 = arith.constant 2.000000e-01 : f32
    %8 = vector.broadcast %cst_6 : f32 to vector<1024x128xf32>
    %9 = arith.mulf %8, %5 : vector<1024x128xf32>
    %10 = arith.select %7, %5, %9 : vector<1024x128xi1>, vector<1024x128xf32>
    %11 = arith.truncf %10 : vector<1024x128xf32> to vector<1024x128xbf16>
    %c0_7 = arith.constant 0 : index
    %c0_8 = arith.constant 0 : index
    %12 = vector.load %arg4[%c0_7, %c0_8] : memref<1024x128xbf16, #tpu.memory_space<vmem>>, vector<1024x128xbf16>
    tpu.vector_store %arg4[%c0_7, %c0_8], %11 {strides = array<i32>} : memref<1024x128xbf16, #tpu.memory_space<vmem>>, vector<1024x128xbf16>,
    return
  }
  func.func @transform_0(%arg0: i32) -> (i32, i32) {
    %c0_i32 = arith.constant 0 : i32
    %c0_i32_0 = arith.constant 0 : i32
    return %arg0, %c0_i32 : i32, i32
  }
  func.func @transform_1(%arg0: i32) -> (i32, i32) {
    %c0_i32 = arith.constant 0 : i32
    %c0_i32_0 = arith.constant 0 : i32
    %c0_i32_1 = arith.constant 0 : i32
    return %c0_i32, %c0_i32_0 : i32, i32
  }
  func.func @transform_2(%arg0: i32) -> (i32, i32) {
    %c0_i32 = arith.constant 0 : i32
    %c0_i32_0 = arith.constant 0 : i32
    %c0_i32_1 = arith.constant 0 : i32
    return %c0_i32, %c0_i32_0 : i32, i32
  }
  func.func @transform_3(%arg0: i32) -> (i32, i32) {
    %c0_i32 = arith.constant 0 : i32
    %c0_i32_0 = arith.constant 0 : i32
    return %arg0, %c0_i32 : i32, i32
  }
}

module attributes {stable_mosaic.version = 11 : i64} {
  func.func @_convblock_kernel(%arg0: i32, %arg1: memref<1x256x128xbf16, #tpu.memory_space<vmem>>, %arg2: memref<128x128xbf16, #tpu.memory_space<vmem>>, %arg3: memref<1x128xf32, #tpu.memory_space<vmem>>, %arg4: memref<1x128xf32, #tpu.memory_space<vmem>>, %arg5: memref<1x256x128xbf16, #tpu.memory_space<vmem>>) attributes {dimension_semantics = [#tpu.dimension_semantics<parallel>], iteration_bounds = array<i64: 2>, scalar_prefetch = 0 : i64, scratch_operands = 0 : i64, tpu.core_type = #tpu.core_type<tc>, window_params = [{transform_indices = @transform_0, window_bounds = array<i64: 1, 256, 128>}, {pipeline_mode = #tpu.pipeline_mode<synchronous>, transform_indices = @transform_1, window_bounds = array<i64: 128, 128>}, {pipeline_mode = #tpu.pipeline_mode<synchronous>, transform_indices = @transform_2, window_bounds = array<i64: 1, 128>}, {pipeline_mode = #tpu.pipeline_mode<synchronous>, transform_indices = @transform_3, window_bounds = array<i64: 1, 128>}, {transform_indices = @transform_4, window_bounds = array<i64: 1, 256, 128>}]} {
    %c0 = arith.constant 0 : index
    %c0_0 = arith.constant 0 : index
    %c0_1 = arith.constant 0 : index
    %0 = vector.load %arg1[%c0, %c0_0, %c0_1] : memref<1x256x128xbf16, #tpu.memory_space<vmem>>, vector<1x256x128xbf16>
    %1 = vector.shape_cast %0 : vector<1x256x128xbf16> to vector<256x128xbf16>
    %c0_2 = arith.constant 0 : index
    %c0_3 = arith.constant 0 : index
    %2 = vector.load %arg2[%c0_2, %c0_3] : memref<128x128xbf16, #tpu.memory_space<vmem>>, vector<128x128xbf16>
    %cst = arith.constant dense<0.000000e+00> : vector<256x128xf32>
    %3 = tpu.matmul %1, %2, %cst {dimension_numbers = #tpu.dot_dimension_numbers<[1], [0], [0], [1], [0, 0, 1, 1], [], []>} : vector<256x128xbf16>, vector<128x128xbf16>, vector<256x128xf32> -> vector<256x128xf32>
    %4 = vector.shape_cast %3 : vector<256x128xf32> to vector<1x256x128xf32>
    %cst_4 = arith.constant dense<0.000000e+00> : vector<1x128xf32>
    %5 = vector.multi_reduction <add>, %4, %cst_4 [1] : vector<1x256x128xf32> to vector<1x128xf32>
    %6 = vector.shape_cast %5 : vector<1x128xf32> to vector<1x1x128xf32>
    %cst_5 = arith.constant 2.560000e+02 : f32
    %7 = vector.broadcast %cst_5 : f32 to vector<1x1x128xf32>
    %8 = arith.divf %6, %7 : vector<1x1x128xf32>
    %9 = arith.mulf %4, %4 : vector<1x256x128xf32>
    %cst_6 = arith.constant dense<0.000000e+00> : vector<1x128xf32>
    %10 = vector.multi_reduction <add>, %9, %cst_6 [1] : vector<1x256x128xf32> to vector<1x128xf32>
    %11 = vector.shape_cast %10 : vector<1x128xf32> to vector<1x1x128xf32>
    %cst_7 = arith.constant 2.560000e+02 : f32
    %12 = vector.broadcast %cst_7 : f32 to vector<1x1x128xf32>
    %13 = arith.divf %11, %12 : vector<1x1x128xf32>
    %14 = arith.mulf %8, %8 : vector<1x1x128xf32>
    %15 = arith.subf %13, %14 : vector<1x1x128xf32>
    %cst_8 = arith.constant 0.000000e+00 : f32
    %16 = vector.broadcast %cst_8 : f32 to vector<1x1x128xf32>
    %17 = arith.maximumf %15, %16 : vector<1x1x128xf32>
    %18 = vector.broadcast %8 : vector<1x1x128xf32> to vector<1x256x128xf32>
    %19 = arith.subf %4, %18 : vector<1x256x128xf32>
    %cst_9 = arith.constant 9.99999974E-6 : f32
    %20 = vector.broadcast %cst_9 : f32 to vector<1x1x128xf32>
    %21 = arith.addf %17, %20 : vector<1x1x128xf32>
    %22 = math.rsqrt %21 : vector<1x1x128xf32>
    %23 = vector.broadcast %22 : vector<1x1x128xf32> to vector<1x256x128xf32>
    %24 = arith.mulf %19, %23 : vector<1x256x128xf32>
    %c0_10 = arith.constant 0 : index
    %c0_11 = arith.constant 0 : index
    %25 = vector.load %arg3[%c0_10, %c0_11] : memref<1x128xf32, #tpu.memory_space<vmem>>, vector<1x128xf32>
    %26 = vector.shape_cast %25 : vector<1x128xf32> to vector<128xf32>
    %27 = vector.shape_cast %26 : vector<128xf32> to vector<1x1x128xf32>
    %28 = vector.broadcast %27 : vector<1x1x128xf32> to vector<1x256x128xf32>
    %29 = arith.mulf %24, %28 : vector<1x256x128xf32>
    %c0_12 = arith.constant 0 : index
    %c0_13 = arith.constant 0 : index
    %30 = vector.load %arg4[%c0_12, %c0_13] : memref<1x128xf32, #tpu.memory_space<vmem>>, vector<1x128xf32>
    %31 = vector.shape_cast %30 : vector<1x128xf32> to vector<128xf32>
    %32 = vector.shape_cast %31 : vector<128xf32> to vector<1x1x128xf32>
    %33 = vector.broadcast %32 : vector<1x1x128xf32> to vector<1x256x128xf32>
    %34 = arith.addf %29, %33 : vector<1x256x128xf32>
    %cst_14 = arith.constant 0.000000e+00 : f32
    %35 = vector.broadcast %cst_14 : f32 to vector<1x256x128xf32>
    %36 = arith.cmpf oge, %34, %35 : vector<1x256x128xf32>
    %cst_15 = arith.constant 2.000000e-01 : f32
    %37 = vector.broadcast %cst_15 : f32 to vector<1x256x128xf32>
    %38 = arith.mulf %37, %34 : vector<1x256x128xf32>
    %39 = arith.select %36, %34, %38 : vector<1x256x128xi1>, vector<1x256x128xf32>
    %40 = arith.truncf %39 : vector<1x256x128xf32> to vector<1x256x128xbf16>
    %c0_16 = arith.constant 0 : index
    %c0_17 = arith.constant 0 : index
    %c0_18 = arith.constant 0 : index
    %41 = vector.load %arg5[%c0_16, %c0_17, %c0_18] : memref<1x256x128xbf16, #tpu.memory_space<vmem>>, vector<1x256x128xbf16>
    tpu.vector_store %arg5[%c0_16, %c0_17, %c0_18], %40 {strides = array<i32>} : memref<1x256x128xbf16, #tpu.memory_space<vmem>>, vector<1x256x128xbf16>,
    return
  }
  func.func @transform_0(%arg0: i32) -> (i32, i32, i32) {
    %c0_i32 = arith.constant 0 : i32
    %c0_i32_0 = arith.constant 0 : i32
    %c0_i32_1 = arith.constant 0 : i32
    return %arg0, %c0_i32, %c0_i32_0 : i32, i32, i32
  }
  func.func @transform_1(%arg0: i32) -> (i32, i32) {
    %c0_i32 = arith.constant 0 : i32
    %c0_i32_0 = arith.constant 0 : i32
    %c0_i32_1 = arith.constant 0 : i32
    return %c0_i32, %c0_i32_0 : i32, i32
  }
  func.func @transform_2(%arg0: i32) -> (i32, i32) {
    %c0_i32 = arith.constant 0 : i32
    %c0_i32_0 = arith.constant 0 : i32
    %c0_i32_1 = arith.constant 0 : i32
    return %c0_i32, %c0_i32_0 : i32, i32
  }
  func.func @transform_3(%arg0: i32) -> (i32, i32) {
    %c0_i32 = arith.constant 0 : i32
    %c0_i32_0 = arith.constant 0 : i32
    %c0_i32_1 = arith.constant 0 : i32
    return %c0_i32, %c0_i32_0 : i32, i32
  }
  func.func @transform_4(%arg0: i32) -> (i32, i32, i32) {
    %c0_i32 = arith.constant 0 : i32
    %c0_i32_0 = arith.constant 0 : i32
    %c0_i32_1 = arith.constant 0 : i32
    return %arg0, %c0_i32, %c0_i32_0 : i32, i32, i32
  }
}

module attributes {stable_mosaic.version = 11 : i64} {
  func.func @_convblock_kernel(%arg0: i32, %arg1: memref<2x64x256xbf16, #tpu.memory_space<vmem>>, %arg2: memref<256x128xbf16, #tpu.memory_space<vmem>>, %arg3: memref<1x128xf32, #tpu.memory_space<vmem>>, %arg4: memref<1x128xf32, #tpu.memory_space<vmem>>, %arg5: memref<2x64x128xbf16, #tpu.memory_space<vmem>>) attributes {dimension_semantics = [#tpu.dimension_semantics<parallel>], iteration_bounds = array<i64: 1>, scalar_prefetch = 0 : i64, scratch_operands = 0 : i64, tpu.core_type = #tpu.core_type<tc>, window_params = [{transform_indices = @transform_0, window_bounds = array<i64: 2, 64, 256>}, {pipeline_mode = #tpu.pipeline_mode<synchronous>, transform_indices = @transform_1, window_bounds = array<i64: 256, 128>}, {pipeline_mode = #tpu.pipeline_mode<synchronous>, transform_indices = @transform_2, window_bounds = array<i64: 1, 128>}, {pipeline_mode = #tpu.pipeline_mode<synchronous>, transform_indices = @transform_3, window_bounds = array<i64: 1, 128>}, {transform_indices = @transform_4, window_bounds = array<i64: 2, 64, 128>}]} {
    %c0 = arith.constant 0 : index
    %c0_0 = arith.constant 0 : index
    %c0_1 = arith.constant 0 : index
    %0 = vector.load %arg1[%c0, %c0_0, %c0_1] : memref<2x64x256xbf16, #tpu.memory_space<vmem>>, vector<2x64x256xbf16>
    %1 = vector.shape_cast %0 : vector<2x64x256xbf16> to vector<128x256xbf16>
    %c0_2 = arith.constant 0 : index
    %c0_3 = arith.constant 0 : index
    %2 = vector.load %arg2[%c0_2, %c0_3] : memref<256x128xbf16, #tpu.memory_space<vmem>>, vector<256x128xbf16>
    %cst = arith.constant dense<0.000000e+00> : vector<128x128xf32>
    %3 = tpu.matmul %1, %2, %cst {dimension_numbers = #tpu.dot_dimension_numbers<[1], [0], [0], [1], [0, 0, 1, 1], [], []>} : vector<128x256xbf16>, vector<256x128xbf16>, vector<128x128xf32> -> vector<128x128xf32>
    %4 = vector.shape_cast %3 : vector<128x128xf32> to vector<2x64x128xf32>
    %cst_4 = arith.constant dense<0.000000e+00> : vector<2x128xf32>
    %5 = vector.multi_reduction <add>, %4, %cst_4 [1] : vector<2x64x128xf32> to vector<2x128xf32>
    %6 = vector.shape_cast %5 : vector<2x128xf32> to vector<2x1x128xf32>
    %cst_5 = arith.constant 6.400000e+01 : f32
    %7 = vector.broadcast %cst_5 : f32 to vector<2x1x128xf32>
    %8 = arith.divf %6, %7 : vector<2x1x128xf32>
    %9 = arith.mulf %4, %4 : vector<2x64x128xf32>
    %cst_6 = arith.constant dense<0.000000e+00> : vector<2x128xf32>
    %10 = vector.multi_reduction <add>, %9, %cst_6 [1] : vector<2x64x128xf32> to vector<2x128xf32>
    %11 = vector.shape_cast %10 : vector<2x128xf32> to vector<2x1x128xf32>
    %cst_7 = arith.constant 6.400000e+01 : f32
    %12 = vector.broadcast %cst_7 : f32 to vector<2x1x128xf32>
    %13 = arith.divf %11, %12 : vector<2x1x128xf32>
    %14 = arith.mulf %8, %8 : vector<2x1x128xf32>
    %15 = arith.subf %13, %14 : vector<2x1x128xf32>
    %cst_8 = arith.constant 0.000000e+00 : f32
    %16 = vector.broadcast %cst_8 : f32 to vector<2x1x128xf32>
    %17 = arith.maximumf %15, %16 : vector<2x1x128xf32>
    %18 = vector.broadcast %8 : vector<2x1x128xf32> to vector<2x64x128xf32>
    %19 = arith.subf %4, %18 : vector<2x64x128xf32>
    %cst_9 = arith.constant 9.99999974E-6 : f32
    %20 = vector.broadcast %cst_9 : f32 to vector<2x1x128xf32>
    %21 = arith.addf %17, %20 : vector<2x1x128xf32>
    %22 = math.rsqrt %21 : vector<2x1x128xf32>
    %23 = vector.broadcast %22 : vector<2x1x128xf32> to vector<2x64x128xf32>
    %24 = arith.mulf %19, %23 : vector<2x64x128xf32>
    %c0_10 = arith.constant 0 : index
    %c0_11 = arith.constant 0 : index
    %25 = vector.load %arg3[%c0_10, %c0_11] : memref<1x128xf32, #tpu.memory_space<vmem>>, vector<1x128xf32>
    %26 = vector.shape_cast %25 : vector<1x128xf32> to vector<128xf32>
    %27 = vector.shape_cast %26 : vector<128xf32> to vector<1x1x128xf32>
    %28 = vector.broadcast %27 : vector<1x1x128xf32> to vector<2x64x128xf32>
    %29 = arith.mulf %24, %28 : vector<2x64x128xf32>
    %c0_12 = arith.constant 0 : index
    %c0_13 = arith.constant 0 : index
    %30 = vector.load %arg4[%c0_12, %c0_13] : memref<1x128xf32, #tpu.memory_space<vmem>>, vector<1x128xf32>
    %31 = vector.shape_cast %30 : vector<1x128xf32> to vector<128xf32>
    %32 = vector.shape_cast %31 : vector<128xf32> to vector<1x1x128xf32>
    %33 = vector.broadcast %32 : vector<1x1x128xf32> to vector<2x64x128xf32>
    %34 = arith.addf %29, %33 : vector<2x64x128xf32>
    %cst_14 = arith.constant 0.000000e+00 : f32
    %35 = vector.broadcast %cst_14 : f32 to vector<2x64x128xf32>
    %36 = arith.cmpf oge, %34, %35 : vector<2x64x128xf32>
    %cst_15 = arith.constant 2.000000e-01 : f32
    %37 = vector.broadcast %cst_15 : f32 to vector<2x64x128xf32>
    %38 = arith.mulf %37, %34 : vector<2x64x128xf32>
    %39 = arith.select %36, %34, %38 : vector<2x64x128xi1>, vector<2x64x128xf32>
    %40 = arith.truncf %39 : vector<2x64x128xf32> to vector<2x64x128xbf16>
    %c0_16 = arith.constant 0 : index
    %c0_17 = arith.constant 0 : index
    %c0_18 = arith.constant 0 : index
    %41 = vector.load %arg5[%c0_16, %c0_17, %c0_18] : memref<2x64x128xbf16, #tpu.memory_space<vmem>>, vector<2x64x128xbf16>
    tpu.vector_store %arg5[%c0_16, %c0_17, %c0_18], %40 {strides = array<i32>} : memref<2x64x128xbf16, #tpu.memory_space<vmem>>, vector<2x64x128xbf16>,
    return
  }
  func.func @transform_0(%arg0: i32) -> (i32, i32, i32) {
    %c0_i32 = arith.constant 0 : i32
    %c0_i32_0 = arith.constant 0 : i32
    %c0_i32_1 = arith.constant 0 : i32
    return %arg0, %c0_i32, %c0_i32_0 : i32, i32, i32
  }
  func.func @transform_1(%arg0: i32) -> (i32, i32) {
    %c0_i32 = arith.constant 0 : i32
    %c0_i32_0 = arith.constant 0 : i32
    %c0_i32_1 = arith.constant 0 : i32
    return %c0_i32, %c0_i32_0 : i32, i32
  }
  func.func @transform_2(%arg0: i32) -> (i32, i32) {
    %c0_i32 = arith.constant 0 : i32
    %c0_i32_0 = arith.constant 0 : i32
    %c0_i32_1 = arith.constant 0 : i32
    return %c0_i32, %c0_i32_0 : i32, i32
  }
  func.func @transform_3(%arg0: i32) -> (i32, i32) {
    %c0_i32 = arith.constant 0 : i32
    %c0_i32_0 = arith.constant 0 : i32
    %c0_i32_1 = arith.constant 0 : i32
    return %c0_i32, %c0_i32_0 : i32, i32
  }
  func.func @transform_4(%arg0: i32) -> (i32, i32, i32) {
    %c0_i32 = arith.constant 0 : i32
    %c0_i32_0 = arith.constant 0 : i32
    %c0_i32_1 = arith.constant 0 : i32
    return %arg0, %c0_i32, %c0_i32_0 : i32, i32, i32
  }
}

module attributes {stable_mosaic.version = 11 : i64} {
  func.func @_convblock_final_kernel(%arg0: i32, %arg1: memref<2x16x512xbf16, #tpu.memory_space<vmem>>, %arg2: memref<512x128xbf16, #tpu.memory_space<vmem>>, %arg3: memref<1x128xf32, #tpu.memory_space<vmem>>, %arg4: memref<1x128xf32, #tpu.memory_space<vmem>>, %arg5: memref<16x128xf32, #tpu.memory_space<vmem>>, %arg6: memref<1xf32, #tpu.memory_space<smem>>, %arg7: memref<2x128xf32, #tpu.memory_space<vmem>>) attributes {dimension_semantics = [#tpu.dimension_semantics<arbitrary>], iteration_bounds = array<i64: 1>, scalar_prefetch = 0 : i64, scratch_operands = 0 : i64, tpu.core_type = #tpu.core_type<tc>, window_params = [{pipeline_mode = #tpu.pipeline_mode<synchronous>, transform_indices = @transform_0, window_bounds = array<i64: 2, 16, 512>}, {pipeline_mode = #tpu.pipeline_mode<synchronous>, transform_indices = @transform_1, window_bounds = array<i64: 512, 128>}, {pipeline_mode = #tpu.pipeline_mode<synchronous>, transform_indices = @transform_2, window_bounds = array<i64: 1, 128>}, {pipeline_mode = #tpu.pipeline_mode<synchronous>, transform_indices = @transform_3, window_bounds = array<i64: 1, 128>}, {pipeline_mode = #tpu.pipeline_mode<synchronous>, transform_indices = @transform_4, window_bounds = array<i64: 16, 128>}, {transform_indices = @transform_5, window_bounds = array<i64: 1>}, {pipeline_mode = #tpu.pipeline_mode<synchronous>, transform_indices = @transform_6, window_bounds = array<i64: 2, 128>}]} {
    %c0 = arith.constant 0 : index
    %c0_0 = arith.constant 0 : index
    %c0_1 = arith.constant 0 : index
    %0 = vector.load %arg1[%c0, %c0_0, %c0_1] : memref<2x16x512xbf16, #tpu.memory_space<vmem>>, vector<2x16x512xbf16>
    %1 = vector.shape_cast %0 : vector<2x16x512xbf16> to vector<32x512xbf16>
    %c0_2 = arith.constant 0 : index
    %c0_3 = arith.constant 0 : index
    %2 = vector.load %arg2[%c0_2, %c0_3] : memref<512x128xbf16, #tpu.memory_space<vmem>>, vector<512x128xbf16>
    %cst = arith.constant dense<0.000000e+00> : vector<32x128xf32>
    %3 = tpu.matmul %1, %2, %cst {dimension_numbers = #tpu.dot_dimension_numbers<[1], [0], [0], [1], [0, 0, 1, 1], [], []>} : vector<32x512xbf16>, vector<512x128xbf16>, vector<32x128xf32> -> vector<32x128xf32>
    %4 = vector.shape_cast %3 : vector<32x128xf32> to vector<2x16x128xf32>
    %cst_4 = arith.constant dense<0.000000e+00> : vector<2x128xf32>
    %5 = vector.multi_reduction <add>, %4, %cst_4 [1] : vector<2x16x128xf32> to vector<2x128xf32>
    %6 = vector.shape_cast %5 : vector<2x128xf32> to vector<2x1x128xf32>
    %cst_5 = arith.constant 1.600000e+01 : f32
    %7 = vector.broadcast %cst_5 : f32 to vector<2x1x128xf32>
    %8 = arith.divf %6, %7 : vector<2x1x128xf32>
    %9 = arith.mulf %4, %4 : vector<2x16x128xf32>
    %cst_6 = arith.constant dense<0.000000e+00> : vector<2x128xf32>
    %10 = vector.multi_reduction <add>, %9, %cst_6 [1] : vector<2x16x128xf32> to vector<2x128xf32>
    %11 = vector.shape_cast %10 : vector<2x128xf32> to vector<2x1x128xf32>
    %cst_7 = arith.constant 1.600000e+01 : f32
    %12 = vector.broadcast %cst_7 : f32 to vector<2x1x128xf32>
    %13 = arith.divf %11, %12 : vector<2x1x128xf32>
    %14 = arith.mulf %8, %8 : vector<2x1x128xf32>
    %15 = arith.subf %13, %14 : vector<2x1x128xf32>
    %cst_8 = arith.constant 0.000000e+00 : f32
    %16 = vector.broadcast %cst_8 : f32 to vector<2x1x128xf32>
    %17 = arith.maximumf %15, %16 : vector<2x1x128xf32>
    %18 = vector.broadcast %8 : vector<2x1x128xf32> to vector<2x16x128xf32>
    %19 = arith.subf %4, %18 : vector<2x16x128xf32>
    %cst_9 = arith.constant 9.99999974E-6 : f32
    %20 = vector.broadcast %cst_9 : f32 to vector<2x1x128xf32>
    %21 = arith.addf %17, %20 : vector<2x1x128xf32>
    %22 = math.rsqrt %21 : vector<2x1x128xf32>
    %23 = vector.broadcast %22 : vector<2x1x128xf32> to vector<2x16x128xf32>
    %24 = arith.mulf %19, %23 : vector<2x16x128xf32>
    %c0_10 = arith.constant 0 : index
    %c0_11 = arith.constant 0 : index
    %25 = vector.load %arg3[%c0_10, %c0_11] : memref<1x128xf32, #tpu.memory_space<vmem>>, vector<1x128xf32>
    %26 = vector.shape_cast %25 : vector<1x128xf32> to vector<128xf32>
    %27 = vector.shape_cast %26 : vector<128xf32> to vector<1x1x128xf32>
    %28 = vector.broadcast %27 : vector<1x1x128xf32> to vector<2x16x128xf32>
    %29 = arith.mulf %24, %28 : vector<2x16x128xf32>
    %c0_12 = arith.constant 0 : index
    %c0_13 = arith.constant 0 : index
    %30 = vector.load %arg4[%c0_12, %c0_13] : memref<1x128xf32, #tpu.memory_space<vmem>>, vector<1x128xf32>
    %31 = vector.shape_cast %30 : vector<1x128xf32> to vector<128xf32>
    %32 = vector.shape_cast %31 : vector<128xf32> to vector<1x1x128xf32>
    %33 = vector.broadcast %32 : vector<1x1x128xf32> to vector<2x16x128xf32>
    %34 = arith.addf %29, %33 : vector<2x16x128xf32>
    %cst_14 = arith.constant 0.000000e+00 : f32
    %35 = vector.broadcast %cst_14 : f32 to vector<2x16x128xf32>
    %36 = arith.cmpf oge, %34, %35 : vector<2x16x128xf32>
    %cst_15 = arith.constant 2.000000e-01 : f32
    %37 = vector.broadcast %cst_15 : f32 to vector<2x16x128xf32>
    %38 = arith.mulf %37, %34 : vector<2x16x128xf32>
    %39 = arith.select %36, %34, %38 : vector<2x16x128xi1>, vector<2x16x128xf32>
    %c0_16 = arith.constant 0 : index
    %c0_17 = arith.constant 0 : index
    %40 = vector.load %arg5[%c0_16, %c0_17] : memref<16x128xf32, #tpu.memory_space<vmem>>, vector<16x128xf32>
    %41 = vector.shape_cast %40 : vector<16x128xf32> to vector<1x16x128xf32>
    %42 = vector.broadcast %41 : vector<1x16x128xf32> to vector<2x16x128xf32>
    %43 = arith.mulf %39, %42 : vector<2x16x128xf32>
    %cst_18 = arith.constant dense<0.000000e+00> : vector<2x128xf32>
    %44 = vector.multi_reduction <add>, %43, %cst_18 [1] : vector<2x16x128xf32> to vector<2x128xf32>
    %cst_19 = arith.constant dense<0.000000e+00> : vector<2xf32>
    %45 = vector.multi_reduction <add>, %44, %cst_19 [1] : vector<2x128xf32> to vector<2xf32>
    %46 = vector.shape_cast %45 : vector<2xf32> to vector<2x1xf32>
    %c0_20 = arith.constant 0 : index
    %47 = memref.load %arg6[%c0_20] : memref<1xf32, #tpu.memory_space<smem>>
    %48 = vector.broadcast %47 : f32 to vector<2x1xf32>
    %49 = arith.addf %46, %48 : vector<2x1xf32>
    %50 = vector.shape_cast %49 : vector<2x1xf32> to vector<2x1xf32>
    %51 = vector.broadcast %50 : vector<2x1xf32> to vector<2x128xf32>
    %c0_21 = arith.constant 0 : index
    %c0_22 = arith.constant 0 : index
    %52 = vector.load %arg7[%c0_21, %c0_22] : memref<2x128xf32, #tpu.memory_space<vmem>>, vector<2x128xf32>
    tpu.vector_store %arg7[%c0_21, %c0_22], %51 {strides = array<i32>} : memref<2x128xf32, #tpu.memory_space<vmem>>, vector<2x128xf32>,
    return
  }
  func.func @transform_0(%arg0: i32) -> (i32, i32, i32) {
    %c0_i32 = arith.constant 0 : i32
    %c0_i32_0 = arith.constant 0 : i32
    %c0_i32_1 = arith.constant 0 : i32
    %c0_i32_2 = arith.constant 0 : i32
    return %c0_i32, %c0_i32_0, %c0_i32_1 : i32, i32, i32
  }
  func.func @transform_1(%arg0: i32) -> (i32, i32) {
    %c0_i32 = arith.constant 0 : i32
    %c0_i32_0 = arith.constant 0 : i32
    %c0_i32_1 = arith.constant 0 : i32
    return %c0_i32, %c0_i32_0 : i32, i32
  }
  func.func @transform_2(%arg0: i32) -> (i32, i32) {
    %c0_i32 = arith.constant 0 : i32
    %c0_i32_0 = arith.constant 0 : i32
    %c0_i32_1 = arith.constant 0 : i32
    return %c0_i32, %c0_i32_0 : i32, i32
  }
  func.func @transform_3(%arg0: i32) -> (i32, i32) {
    %c0_i32 = arith.constant 0 : i32
    %c0_i32_0 = arith.constant 0 : i32
    %c0_i32_1 = arith.constant 0 : i32
    return %c0_i32, %c0_i32_0 : i32, i32
  }
  func.func @transform_4(%arg0: i32) -> (i32, i32) {
    %c0_i32 = arith.constant 0 : i32
    %c0_i32_0 = arith.constant 0 : i32
    %c0_i32_1 = arith.constant 0 : i32
    return %c0_i32, %c0_i32_0 : i32, i32
  }
  func.func @transform_5(%arg0: i32) -> i32 {
    %c0_i32 = arith.constant 0 : i32
    %c0_i32_0 = arith.constant 0 : i32
    return %c0_i32 : i32
  }
  func.func @transform_6(%arg0: i32) -> (i32, i32) {
    %c0_i32 = arith.constant 0 : i32
    %c0_i32_0 = arith.constant 0 : i32
    %c0_i32_1 = arith.constant 0 : i32
    return %c0_i32, %c0_i32_0 : i32, i32
  }
}

</mosaic_0001>

<llo_original>
// kernel: wasserstein_critic_forward.4
$region0: #{wasserstein_critic_forward.4}
  #allocation0 [shape = 'u32[]', space=smem, size = 0x4, offset = 0x4, fixed_abs, tag = 'smem constant byte address 0x4 - core index']
  #allocation1 [shape = 'u32[144,128]{1,0:T(1,128)}', space=vmem, size = 0x12000, scoped, tag = 'internal scratch']
  %s0 = inlined_call_operand.vmem [shape: bf16[2048,128], index: 0, kind: input, shape index: {}]
  %s1 = inlined_call_operand.vmem [shape: bf16[128,128], index: 1, kind: input, shape index: {}]
  %s2 = inlined_call_operand.vmem [shape: f32[1,128], index: 2, kind: input, shape index: {}]
  %s3 = inlined_call_operand.vmem [shape: bf16[2048,128], index: 3, kind: output, shape index: {}]
  %s4 = sld [smem:[#allocation0]]
  $region45: #{wasserstein_critic_forward.4} parent=0
    _
  %s6 = ssub.s32 1, %s4
  %s7 = scalar_select 0, %s6, %s4
  loop: start=0, step=1, limit=4
  $region2: #{wasserstein_critic_forward.4} parent=0 // loop_pre_header
    _
  $region3: #{wasserstein_critic_forward.4} parent=0 // loop_header
    %s9 = sphi 0, %s13
    %p10 = scmp.ge.s32.totalorder %s9, 4
    %s19 = sphi 0, %s21
    %s22 = sphi 0, %s19
    %s23 = sphi 0, %s22
    %s39 = sphi 0, %s23
    %s43 = sphi 0, %s43
    %s45 = sphi 0, %s43
    %s46 = sphi 0, %s45
    %s60 = sphi 0, %s46
    %s64 = sphi 0, %s64
    %s66 = sphi 0, %s64
    %s67 = sphi 0, %s66
    %s81 = sphi 0, %s67
    %s87 = sphi 0, %s89
    %s90 = sphi 0, %s87
    %s91 = sphi 0, %s90
    %s107 = sphi 0, %s91
  $region4: #{wasserstein_critic_forward.4} parent=0 // loop_header_branch
    %12 = sbr.rel (%p10) target = $region8
  $region5: #{wasserstein_critic_forward.4} parent=0 // loop_body
    %s14 = ssub.s32 %s9, 1
    %s15 = ssub.s32 %s9, 2
    %s16 = sadd.s32 %s9, 1
    %s17 = ssub.s32 %s9, %s16
    %p18 = scmp.eq.s32.totalorder %s17, 0
    %s20 = sadd.s32 %s19, 1
    %s21 = scalar_select %p18, %s19, %s20
    %p24 = pneg %p18
    %p25 = scmp.eq.s32.totalorder %s9, 1
    %p26 = por %p24, %p25
    %p27 = scmp.ne.s32.totalorder %s19, %s22
    %p28 = scmp.eq.s32.totalorder %s9, 0
    %p29 = por %p27, %p28
    %p30 = scmp.ne.s32.totalorder %s19, %s22
    %p31 = scmp.eq.s32.totalorder %s14, 1
    %p32 = por %p30, %p31
    %p33 = scmp.ne.s32.totalorder %s22, %s23
    %p34 = scmp.eq.s32.totalorder %s14, 0
    %p35 = por %p33, %p34
    %p36 = scmp.ne.s32.totalorder %s22, %s23
    %p37 = scmp.eq.s32.totalorder %s15, 1
    %p38 = por %p36, %p37
    %p40 = scmp.ne.s32.totalorder %s23, %s39
    %p41 = scmp.eq.s32.totalorder %s15, 0
    %p42 = por %p40, %p41
    %s44 = sadd.s32 %s43, 1
    %p47 = scmp.eq.s32.totalorder %s9, 1
    %p48 = scmp.ne.s32.totalorder %s43, %s45
    %p49 = scmp.eq.s32.totalorder %s9, 0
    %p50 = por %p48, %p49
    %p51 = scmp.ne.s32.totalorder %s43, %s45
    %p52 = scmp.eq.s32.totalorder %s14, 1
    %p53 = por %p51, %p52
    %p54 = scmp.ne.s32.totalorder %s45, %s46
    %p55 = scmp.eq.s32.totalorder %s14, 0
    %p56 = por %p54, %p55
    %p57 = scmp.ne.s32.totalorder %s45, %s46
    %p58 = scmp.eq.s32.totalorder %s15, 1
    %p59 = por %p57, %p58
    %p61 = scmp.ne.s32.totalorder %s46, %s60
    %p62 = scmp.eq.s32.totalorder %s15, 0
    %p63 = por %p61, %p62
    %s65 = sadd.s32 %s64, 1
    %p68 = scmp.eq.s32.totalorder %s9, 1
    %p69 = scmp.ne.s32.totalorder %s64, %s66
    %p70 = scmp.eq.s32.totalorder %s9, 0
    %p71 = por %p69, %p70
    %p72 = scmp.ne.s32.totalorder %s64, %s66
    %p73 = scmp.eq.s32.totalorder %s14, 1
    %p74 = por %p72, %p73
    %p75 = scmp.ne.s32.totalorder %s66, %s67
    %p76 = scmp.eq.s32.totalorder %s14, 0
    %p77 = por %p75, %p76
    %p78 = scmp.ne.s32.totalorder %s66, %s67
    %p79 = scmp.eq.s32.totalorder %s15, 1
    %p80 = por %p78, %p79
    %p82 = scmp.ne.s32.totalorder %s67, %s81
    %p83 = scmp.eq.s32.totalorder %s15, 0
    %p84 = por %p82, %p83
    %s85 = ssub.s32 %s9, %s16
    %p86 = scmp.eq.s32.totalorder %s85, 0
    %s88 = sadd.s32 %s87, 1
    %s89 = scalar_select %p86, %s87, %s88
    %p92 = pneg %p86
    %p93 = scmp.eq.s32.totalorder %s9, 1
    %p94 = por %p92, %p93
    %p95 = scmp.ne.s32.totalorder %s87, %s90
    %p96 = scmp.eq.s32.totalorder %s9, 0
    %p97 = por %p95, %p96
    %p98 = scmp.ne.s32.totalorder %s87, %s90
    %p99 = scmp.eq.s32.totalorder %s14, 1
    %p100 = por %p98, %p99
    %p101 = scmp.ne.s32.totalorder %s90, %s91
    %p102 = scmp.eq.s32.totalorder %s14, 0
    %p103 = por %p101, %p102
    %p104 = scmp.ne.s32.totalorder %s90, %s91
    %p105 = scmp.eq.s32.totalorder %s15, 1
    %p106 = por %p104, %p105
    %p108 = scmp.ne.s32.totalorder %s91, %s107
    %p109 = scmp.eq.s32.totalorder %s15, 0
    %p110 = por %p108, %p109
    %p111 = scmp.le.s32.totalorder 1, %s9
    %p112 = scmp.lt.s32.totalorder %s9, 3
    %p113 = pnand %p111, %p112
    %p114 = pneg %p113
    // Predicated region
    $region9: #{wasserstein_critic_forward.4} parent=5 // pred_check
      _
    $region10: #{wasserstein_critic_forward.4} parent=5 // pred_check_branch
      %116 = sbr.rel (%p113) target = $region12
    $region11: #{wasserstein_critic_forward.4} parent=5 // pred_region
      %s117 = ssub.s32 %s9, 1
      // Predicated region
      $region13: #{wasserstein_critic_forward.4} parent=11 // pred_check
        %p118 = pneg %p56
      $region14: #{wasserstein_critic_forward.4} parent=11 // pred_check_branch
        %120 = sbr.rel (%p118) target = $region16
      $region15: #{wasserstein_critic_forward.4} parent=11 // pred_region
        _
      $region16: #{wasserstein_critic_forward.4} parent=11 // pred_fallthru
        _
      // Predicated region
      $region17: #{wasserstein_critic_forward.4} parent=11 // pred_check
        %p121 = pneg %p77
      $region18: #{wasserstein_critic_forward.4} parent=11 // pred_check_branch
        %123 = sbr.rel (%p121) target = $region20
      $region19: #{wasserstein_critic_forward.4} parent=11 // pred_region
        _
      $region20: #{wasserstein_critic_forward.4} parent=11 // pred_fallthru
        _
    $region12: #{wasserstein_critic_forward.4} parent=5 // pred_fallthru
      _
    %p124 = scmp.lt.s32.totalorder %s9, 2
    // Predicated region
    $region21: #{wasserstein_critic_forward.4} parent=5 // pred_check
      %p125 = pneg %p124
    $region22: #{wasserstein_critic_forward.4} parent=5 // pred_check_branch
      %127 = sbr.rel (%p125) target = $region24
    $region23: #{wasserstein_critic_forward.4} parent=5 // pred_region
      // Predicated region
      $region25: #{wasserstein_critic_forward.4} parent=23 // pred_check
        %p128 = pneg %p29
      $region26: #{wasserstein_critic_forward.4} parent=23 // pred_check_branch
        %130 = sbr.rel (%p128) target = $region28
      $region27: #{wasserstein_critic_forward.4} parent=23 // pred_region
        %s131 = smul.u32 128, %s9
        %p132 = scmp.lt.s32.totalorder %s131, 255
        %s133 = scalar_select %p132, %s131, 255
        %s134 = smul.addr %s133, 4
        %s135 = scalar_lea.vmem %s0, %s134
        %s136 = smul.u32 128, %s9
      $region28: #{wasserstein_critic_forward.4} parent=23 // pred_fallthru
        _
    $region24: #{wasserstein_critic_forward.4} parent=5 // pred_fallthru
      _
    %p137 = scmp.le.s32.totalorder 1, %s9
    %p138 = scmp.lt.s32.totalorder %s9, 3
    %p139 = pnand %p137, %p138
    %p140 = pneg %p139
    // Predicated region
    $region29: #{wasserstein_critic_forward.4} parent=5 // pred_check
      _
    $region30: #{wasserstein_critic_forward.4} parent=5 // pred_check_branch
      %142 = sbr.rel (%p139) target = $region32
    $region31: #{wasserstein_critic_forward.4} parent=5 // pred_region
      %s143 = ssub.s32 %s9, 1
      %s144 = smul.u32 128, %s14
      %p145 = scmp.lt.s32.totalorder %s144, 255
      %s146 = scalar_select %p145, %s144, 255
      %s147 = smul.addr %s146, 4
      %s148 = scalar_lea.vmem %s0, %s147
      %p149 = pneg %p35
      %p150 = pneg %p32
      %p151 = pneg %p56
      %p152 = pneg %p53
      %p153 = pneg %p77
      %p154 = pneg %p74
      %p155 = pneg %p103
      %p156 = pneg %p100
      %s157 = smul.u32 128, %s14
      %p158 = scmp.lt.s32.totalorder %s157, 255
      %s159 = scalar_select %p158, %s157, 255
      %s160 = smul.addr %s159, 4
      %s161 = scalar_lea.vmem %s3, %s160
      %s162 = smul.u32 128, %s14
      %p163 = scmp.lt.s32.totalorder %s162, 255
      %s164 = scalar_select %p163, %s162, 255
      %s165 = smul.addr %s164, 4
      %s166 = scalar_lea.vmem %s0, %s165
      %s167 = smul.u32 128, %s14
      %s168 = smul.u32 128, %s14
      %p169 = scmp.lt.s32.totalorder %s168, 255
      %s170 = scalar_select %p169, %s168, 255
      %s171 = smul.addr %s170, 4
      %s172 = scalar_lea.vmem %s3, %s171
      %s173 = smul.u32 128, %s14
      %v175 = vld [vmem:[%s166] sm:$0xf]
      %v176 = vld [vmem:[%s166 + $0x4] sm:$0xf]
      %v177 = vld [vmem:[%s166 + $0x8] sm:$0xf]
      %v178 = vld [vmem:[%s166 + $0xc] sm:$0xf]
      %v179 = vld [vmem:[%s166 + $0x10] sm:$0xf]
      %v180 = vld [vmem:[%s166 + $0x14] sm:$0xf]
      %v181 = vld [vmem:[%s166 + $0x18] sm:$0xf]
      %v182 = vld [vmem:[%s166 + $0x1c] sm:$0xf]
      %v183 = vld [vmem:[%s166 + $0x20] sm:$0xf]
      %v184 = vld [vmem:[%s166 + $0x24] sm:$0xf]
      %v185 = vld [vmem:[%s166 + $0x28] sm:$0xf]
      %v186 = vld [vmem:[%s166 + $0x2c] sm:$0xf]
      %v187 = vld [vmem:[%s166 + $0x30] sm:$0xf]
      %v188 = vld [vmem:[%s166 + $0x34] sm:$0xf]
      %v189 = vld [vmem:[%s166 + $0x38] sm:$0xf]
      %v190 = vld [vmem:[%s166 + $0x3c] sm:$0xf]
      %v191 = vld [vmem:[%s166 + $0x40] sm:$0xf]
      %v192 = vld [vmem:[%s166 + $0x44] sm:$0xf]
      %v193 = vld [vmem:[%s166 + $0x48] sm:$0xf]
      %v194 = vld [vmem:[%s166 + $0x4c] sm:$0xf]
      %v195 = vld [vmem:[%s166 + $0x50] sm:$0xf]
      %v196 = vld [vmem:[%s166 + $0x54] sm:$0xf]
      %v197 = vld [vmem:[%s166 + $0x58] sm:$0xf]
      %v198 = vld [vmem:[%s166 + $0x5c] sm:$0xf]
      %v199 = vld [vmem:[%s166 + $0x60] sm:$0xf]
      %v200 = vld [vmem:[%s166 + $0x64] sm:$0xf]
      %v201 = vld [vmem:[%s166 + $0x68] sm:$0xf]
      %v202 = vld [vmem:[%s166 + $0x6c] sm:$0xf]
      %v203 = vld [vmem:[%s166 + $0x70] sm:$0xf]
      %v204 = vld [vmem:[%s166 + $0x74] sm:$0xf]
      %v205 = vld [vmem:[%s166 + $0x78] sm:$0xf]
      %v206 = vld [vmem:[%s166 + $0x7c] sm:$0xf]
      %v207 = vld [vmem:[%s166 + $0x80] sm:$0xf]
      %v208 = vld [vmem:[%s166 + $0x84] sm:$0xf]
      %v209 = vld [vmem:[%s166 + $0x88] sm:$0xf]
      %v210 = vld [vmem:[%s166 + $0x8c] sm:$0xf]
      %v211 = vld [vmem:[%s166 + $0x90] sm:$0xf]
      %v212 = vld [vmem:[%s166 + $0x94] sm:$0xf]
      %v213 = vld [vmem:[%s166 + $0x98] sm:$0xf]
      %v214 = vld [vmem:[%s166 + $0x9c] sm:$0xf]
      %v215 = vld [vmem:[%s166 + $0xa0] sm:$0xf]
      %v216 = vld [vmem:[%s166 + $0xa4] sm:$0xf]
      %v217 = vld [vmem:[%s166 + $0xa8] sm:$0xf]
      %v218 = vld [vmem:[%s166 + $0xac] sm:$0xf]
      %v219 = vld [vmem:[%s166 + $0xb0] sm:$0xf]
      %v220 = vld [vmem:[%s166 + $0xb4] sm:$0xf]
      %v221 = vld [vmem:[%s166 + $0xb8] sm:$0xf]
      %v222 = vld [vmem:[%s166 + $0xbc] sm:$0xf]
      %v223 = vld [vmem:[%s166 + $0xc0] sm:$0xf]
      %v224 = vld [vmem:[%s166 + $0xc4] sm:$0xf]
      %v225 = vld [vmem:[%s166 + $0xc8] sm:$0xf]
      %v226 = vld [vmem:[%s166 + $0xcc] sm:$0xf]
      %v227 = vld [vmem:[%s166 + $0xd0] sm:$0xf]
      %v228 = vld [vmem:[%s166 + $0xd4] sm:$0xf]
      %v229 = vld [vmem:[%s166 + $0xd8] sm:$0xf]
      %v230 = vld [vmem:[%s166 + $0xdc] sm:$0xf]
      %v231 = vld [vmem:[%s166 + $0xe0] sm:$0xf]
      %v232 = vld [vmem:[%s166 + $0xe4] sm:$0xf]
      %v233 = vld [vmem:[%s166 + $0xe8] sm:$0xf]
      %v234 = vld [vmem:[%s166 + $0xec] sm:$0xf]
      %v235 = vld [vmem:[%s166 + $0xf0] sm:$0xf]
      %v236 = vld [vmem:[%s166 + $0xf4] sm:$0xf]
      %v237 = vld [vmem:[%s166 + $0xf8] sm:$0xf]
      %v238 = vld [vmem:[%s166 + $0xfc] sm:$0xf]
      %v239 = vld [vmem:[%s166 + $0x100] sm:$0xf]
      %v240 = vld [vmem:[%s166 + $0x104] sm:$0xf]
      %v241 = vld [vmem:[%s166 + $0x108] sm:$0xf]
      %v242 = vld [vmem:[%s166 + $0x10c] sm:$0xf]
      %v243 = vld [vmem:[%s166 + $0x110] sm:$0xf]
      %v244 = vld [vmem:[%s166 + $0x114] sm:$0xf]
      %v245 = vld [vmem:[%s166 + $0x118] sm:$0xf]
      %v246 = vld [vmem:[%s166 + $0x11c] sm:$0xf]
      %v247 = vld [vmem:[%s166 + $0x120] sm:$0xf]
      %v248 = vld [vmem:[%s166 + $0x124] sm:$0xf]
      %v249 = vld [vmem:[%s166 + $0x128] sm:$0xf]
      %v250 = vld [vmem:[%s166 + $0x12c] sm:$0xf]
      %v251 = vld [vmem:[%s166 + $0x130] sm:$0xf]
      %v252 = vld [vmem:[%s166 + $0x134] sm:$0xf]
      %v253 = vld [vmem:[%s166 + $0x138] sm:$0xf]
      %v254 = vld [vmem:[%s166 + $0x13c] sm:$0xf]
      %v255 = vld [vmem:[%s166 + $0x140] sm:$0xf]
      %v256 = vld [vmem:[%s166 + $0x144] sm:$0xf]
      %v257 = vld [vmem:[%s166 + $0x148] sm:$0xf]
      %v258 = vld [vmem:[%s166 + $0x14c] sm:$0xf]
      %v259 = vld [vmem:[%s166 + $0x150] sm:$0xf]
      %v260 = vld [vmem:[%s166 + $0x154] sm:$0xf]
      %v261 = vld [vmem:[%s166 + $0x158] sm:$0xf]
      %v262 = vld [vmem:[%s166 + $0x15c] sm:$0xf]
      %v263 = vld [vmem:[%s166 + $0x160] sm:$0xf]
      %v264 = vld [vmem:[%s166 + $0x164] sm:$0xf]
      %v265 = vld [vmem:[%s166 + $0x168] sm:$0xf]
      %v266 = vld [vmem:[%s166 + $0x16c] sm:$0xf]
      %v267 = vld [vmem:[%s166 + $0x170] sm:$0xf]
      %v268 = vld [vmem:[%s166 + $0x174] sm:$0xf]
      %v269 = vld [vmem:[%s166 + $0x178] sm:$0xf]
      %v270 = vld [vmem:[%s166 + $0x17c] sm:$0xf]
      %v271 = vld [vmem:[%s166 + $0x180] sm:$0xf]
      %v272 = vld [vmem:[%s166 + $0x184] sm:$0xf]
      %v273 = vld [vmem:[%s166 + $0x188] sm:$0xf]
      %v274 = vld [vmem:[%s166 + $0x18c] sm:$0xf]
      %v275 = vld [vmem:[%s166 + $0x190] sm:$0xf]
      %v276 = vld [vmem:[%s166 + $0x194] sm:$0xf]
      %v277 = vld [vmem:[%s166 + $0x198] sm:$0xf]
      %v278 = vld [vmem:[%s166 + $0x19c] sm:$0xf]
      %v279 = vld [vmem:[%s166 + $0x1a0] sm:$0xf]
      %v280 = vld [vmem:[%s166 + $0x1a4] sm:$0xf]
      %v281 = vld [vmem:[%s166 + $0x1a8] sm:$0xf]
      %v282 = vld [vmem:[%s166 + $0x1ac] sm:$0xf]
      %v283 = vld [vmem:[%s166 + $0x1b0] sm:$0xf]
      %v284 = vld [vmem:[%s166 + $0x1b4] sm:$0xf]
      %v285 = vld [vmem:[%s166 + $0x1b8] sm:$0xf]
      %v286 = vld [vmem:[%s166 + $0x1bc] sm:$0xf]
      %v287 = vld [vmem:[%s166 + $0x1c0] sm:$0xf]
      %v288 = vld [vmem:[%s166 + $0x1c4] sm:$0xf]
      %v289 = vld [vmem:[%s166 + $0x1c8] sm:$0xf]
      %v290 = vld [vmem:[%s166 + $0x1cc] sm:$0xf]
      %v291 = vld [vmem:[%s166 + $0x1d0] sm:$0xf]
      %v292 = vld [vmem:[%s166 + $0x1d4] sm:$0xf]
      %v293 = vld [vmem:[%s166 + $0x1d8] sm:$0xf]
      %v294 = vld [vmem:[%s166 + $0x1dc] sm:$0xf]
      %v295 = vld [vmem:[%s166 + $0x1e0] sm:$0xf]
      %v296 = vld [vmem:[%s166 + $0x1e4] sm:$0xf]
      %v297 = vld [vmem:[%s166 + $0x1e8] sm:$0xf]
      %v298 = vld [vmem:[%s166 + $0x1ec] sm:$0xf]
      %v299 = vld [vmem:[%s166 + $0x1f0] sm:$0xf]
      %v300 = vld [vmem:[%s166 + $0x1f4] sm:$0xf]
      %v301 = vld [vmem:[%s166 + $0x1f8] sm:$0xf]
      %v302 = vld [vmem:[%s166 + $0x1fc] sm:$0xf]
      %v303 = vld [vmem:[%s1] sm:$0xf]
      %v304 = vld [vmem:[%s1 + $0x4] sm:$0xf]
      %v305 = vld [vmem:[%s1 + $0x8] sm:$0xf]
      %v306 = vld [vmem:[%s1 + $0xc] sm:$0xf]
      %v307 = vld [vmem:[%s1 + $0x10] sm:$0xf]
      %v308 = vld [vmem:[%s1 + $0x14] sm:$0xf]
      %v309 = vld [vmem:[%s1 + $0x18] sm:$0xf]
      %v310 = vld [vmem:[%s1 + $0x1c] sm:$0xf]
      %v311 = vld [vmem:[%s1 + $0x20] sm:$0xf]
      %v312 = vld [vmem:[%s1 + $0x24] sm:$0xf]
      %v313 = vld [vmem:[%s1 + $0x28] sm:$0xf]
      %v314 = vld [vmem:[%s1 + $0x2c] sm:$0xf]
      %v315 = vld [vmem:[%s1 + $0x30] sm:$0xf]
      %v316 = vld [vmem:[%s1 + $0x34] sm:$0xf]
      %v317 = vld [vmem:[%s1 + $0x38] sm:$0xf]
      %v318 = vld [vmem:[%s1 + $0x3c] sm:$0xf]
      %v319 = vld [vmem:[%s2] sm:$0x1]
      %v321 = vlaneseq
      %v322 = vshrl.u32 %v321, 7
      %v323 = vsub.s32 0, %v322
      %v324 = vrot.slane %v319, %v323
      %v454 = vunpack.c.l.b16 %v175
      %v455 = vunpack.c.l.b16 %v176
      %v456 = vunpack.c.l.b16 %v177
      %v457 = vunpack.c.l.b16 %v178
      %v458 = vunpack.c.l.b16 %v179
      %v459 = vunpack.c.l.b16 %v180
      %v460 = vunpack.c.l.b16 %v181
      %v461 = vunpack.c.l.b16 %v182
      %v462 = vunpack.c.l.b16 %v183
      %v463 = vunpack.c.l.b16 %v184
      %v464 = vunpack.c.l.b16 %v185
      %v465 = vunpack.c.l.b16 %v186
      %v466 = vunpack.c.l.b16 %v187
      %v467 = vunpack.c.l.b16 %v188
      %v468 = vunpack.c.l.b16 %v189
      %v469 = vunpack.c.l.b16 %v190
      %v470 = vunpack.c.l.b16 %v191
      %v471 = vunpack.c.l.b16 %v192
      %v472 = vunpack.c.l.b16 %v193
      %v473 = vunpack.c.l.b16 %v194
      %v474 = vunpack.c.l.b16 %v195
      %v475 = vunpack.c.l.b16 %v196
      %v476 = vunpack.c.l.b16 %v197
      %v477 = vunpack.c.l.b16 %v198
      %v478 = vunpack.c.l.b16 %v199
      %v479 = vunpack.c.l.b16 %v200
      %v480 = vunpack.c.l.b16 %v201
      %v481 = vunpack.c.l.b16 %v202
      %v482 = vunpack.c.l.b16 %v203
      %v483 = vunpack.c.l.b16 %v204
      %v484 = vunpack.c.l.b16 %v205
      %v485 = vunpack.c.l.b16 %v206
      %v486 = vunpack.c.l.b16 %v207
      %v487 = vunpack.c.l.b16 %v208
      %v488 = vunpack.c.l.b16 %v209
      %v489 = vunpack.c.l.b16 %v210
      %v490 = vunpack.c.l.b16 %v211
      %v491 = vunpack.c.l.b16 %v212
      %v492 = vunpack.c.l.b16 %v213
      %v493 = vunpack.c.l.b16 %v214
      %v494 = vunpack.c.l.b16 %v215
      %v495 = vunpack.c.l.b16 %v216
      %v496 = vunpack.c.l.b16 %v217
      %v497 = vunpack.c.l.b16 %v218
      %v498 = vunpack.c.l.b16 %v219
      %v499 = vunpack.c.l.b16 %v220
      %v500 = vunpack.c.l.b16 %v221
      %v501 = vunpack.c.l.b16 %v222
      %v502 = vunpack.c.l.b16 %v223
      %v503 = vunpack.c.l.b16 %v224
      %v504 = vunpack.c.l.b16 %v225
      %v505 = vunpack.c.l.b16 %v226
      %v506 = vunpack.c.l.b16 %v227
      %v507 = vunpack.c.l.b16 %v228
      %v508 = vunpack.c.l.b16 %v229
      %v509 = vunpack.c.l.b16 %v230
      %v510 = vunpack.c.l.b16 %v231
      %v511 = vunpack.c.l.b16 %v232
      %v512 = vunpack.c.l.b16 %v233
      %v513 = vunpack.c.l.b16 %v234
      %v514 = vunpack.c.l.b16 %v235
      %v515 = vunpack.c.l.b16 %v236
      %v516 = vunpack.c.l.b16 %v237
      %v517 = vunpack.c.l.b16 %v238
      %v518 = vunpack.c.l.b16 %v239
      %v519 = vunpack.c.l.b16 %v240
      %v520 = vunpack.c.l.b16 %v241
      %v521 = vunpack.c.l.b16 %v242
      %v522 = vunpack.c.l.b16 %v243
      %v523 = vunpack.c.l.b16 %v244
      %v524 = vunpack.c.l.b16 %v245
      %v525 = vunpack.c.l.b16 %v246
      %v526 = vunpack.c.l.b16 %v247
      %v527 = vunpack.c.l.b16 %v248
      %v528 = vunpack.c.l.b16 %v249
      %v529 = vunpack.c.l.b16 %v250
      %v530 = vunpack.c.l.b16 %v251
      %v531 = vunpack.c.l.b16 %v252
      %v532 = vunpack.c.l.b16 %v253
      %v533 = vunpack.c.l.b16 %v254
      %v534 = vunpack.c.l.b16 %v255
      %v535 = vunpack.c.l.b16 %v256
      %v536 = vunpack.c.l.b16 %v257
      %v537 = vunpack.c.l.b16 %v258
      %v538 = vunpack.c.l.b16 %v259
      %v539 = vunpack.c.l.b16 %v260
      %v540 = vunpack.c.l.b16 %v261
      %v541 = vunpack.c.l.b16 %v262
      %v542 = vunpack.c.l.b16 %v263
      %v543 = vunpack.c.l.b16 %v264
      %v544 = vunpack.c.l.b16 %v265
      %v545 = vunpack.c.l.b16 %v266
      %v546 = vunpack.c.l.b16 %v267
      %v547 = vunpack.c.l.b16 %v268
      %v548 = vunpack.c.l.b16 %v269
      %v549 = vunpack.c.l.b16 %v270
      %v550 = vunpack.c.l.b16 %v271
      %v551 = vunpack.c.l.b16 %v272
      %v552 = vunpack.c.l.b16 %v273
      %v553 = vunpack.c.l.b16 %v274
      %v554 = vunpack.c.l.b16 %v275
      %v555 = vunpack.c.l.b16 %v276
      %v556 = vunpack.c.l.b16 %v277
      %v557 = vunpack.c.l.b16 %v278
      %v558 = vunpack.c.l.b16 %v279
      %v559 = vunpack.c.l.b16 %v280
      %v560 = vunpack.c.l.b16 %v281
      %v561 = vunpack.c.l.b16 %v282
      %v562 = vunpack.c.l.b16 %v283
      %v563 = vunpack.c.l.b16 %v284
      %v564 = vunpack.c.l.b16 %v285
      %v565 = vunpack.c.l.b16 %v286
      %v566 = vunpack.c.l.b16 %v287
      %v567 = vunpack.c.l.b16 %v288
      %v568 = vunpack.c.l.b16 %v289
      %v569 = vunpack.c.l.b16 %v290
      %v570 = vunpack.c.l.b16 %v291
      %v571 = vunpack.c.l.b16 %v292
      %v572 = vunpack.c.l.b16 %v293
      %v573 = vunpack.c.l.b16 %v294
      %v574 = vunpack.c.l.b16 %v295
      %v575 = vunpack.c.l.b16 %v296
      %v576 = vunpack.c.l.b16 %v297
      %v577 = vunpack.c.l.b16 %v298
      %v578 = vunpack.c.l.b16 %v299
      %v579 = vunpack.c.l.b16 %v300
      %v580 = vunpack.c.l.b16 %v301
      %v581 = vunpack.c.l.b16 %v302
      %v582 = vpack.c.b16 %v455, %v454
      %v583 = vpack.c.b16 %v457, %v456
      %v584 = vpack.c.b16 %v459, %v458
      %v585 = vpack.c.b16 %v461, %v460
      %v586 = vpack.c.b16 %v463, %v462
      %v587 = vpack.c.b16 %v465, %v464
      %v588 = vpack.c.b16 %v467, %v466
      %v589 = vpack.c.b16 %v469, %v468
      %v590 = vpack.c.b16 %v471, %v470
      %v591 = vpack.c.b16 %v473, %v472
      %v592 = vpack.c.b16 %v475, %v474
      %v593 = vpack.c.b16 %v477, %v476
      %v594 = vpack.c.b16 %v479, %v478
      %v595 = vpack.c.b16 %v481, %v480
      %v596 = vpack.c.b16 %v483, %v482
      %v597 = vpack.c.b16 %v485, %v484
      %v598 = vpack.c.b16 %v487, %v486
      %v599 = vpack.c.b16 %v489, %v488
      %v600 = vpack.c.b16 %v491, %v490
      %v601 = vpack.c.b16 %v493, %v492
      %v602 = vpack.c.b16 %v495, %v494
      %v603 = vpack.c.b16 %v497, %v496
      %v604 = vpack.c.b16 %v499, %v498
      %v605 = vpack.c.b16 %v501, %v500
      %v606 = vpack.c.b16 %v503, %v502
      %v607 = vpack.c.b16 %v505, %v504
      %v608 = vpack.c.b16 %v507, %v506
      %v609 = vpack.c.b16 %v509, %v508
      %v610 = vpack.c.b16 %v511, %v510
      %v611 = vpack.c.b16 %v513, %v512
      %v612 = vpack.c.b16 %v515, %v514
      %v613 = vpack.c.b16 %v517, %v516
      %v614 = vpack.c.b16 %v519, %v518
      %v615 = vpack.c.b16 %v521, %v520
      %v616 = vpack.c.b16 %v523, %v522
      %v617 = vpack.c.b16 %v525, %v524
      %v618 = vpack.c.b16 %v527, %v526
      %v619 = vpack.c.b16 %v529, %v528
      %v620 = vpack.c.b16 %v531, %v530
      %v621 = vpack.c.b16 %v533, %v532
      %v622 = vpack.c.b16 %v535, %v534
      %v623 = vpack.c.b16 %v537, %v536
      %v624 = vpack.c.b16 %v539, %v538
      %v625 = vpack.c.b16 %v541, %v540
      %v626 = vpack.c.b16 %v543, %v542
      %v627 = vpack.c.b16 %v545, %v544
      %v628 = vpack.c.b16 %v547, %v546
      %v629 = vpack.c.b16 %v549, %v548
      %v630 = vpack.c.b16 %v551, %v550
      %v631 = vpack.c.b16 %v553, %v552
      %v632 = vpack.c.b16 %v555, %v554
      %v633 = vpack.c.b16 %v557, %v556
      %v634 = vpack.c.b16 %v559, %v558
      %v635 = vpack.c.b16 %v561, %v560
      %v636 = vpack.c.b16 %v563, %v562
      %v637 = vpack.c.b16 %v565, %v564
      %v638 = vpack.c.b16 %v567, %v566
      %v639 = vpack.c.b16 %v569, %v568
      %v640 = vpack.c.b16 %v571, %v570
      %v641 = vpack.c.b16 %v573, %v572
      %v642 = vpack.c.b16 %v575, %v574
      %v643 = vpack.c.b16 %v577, %v576
      %v644 = vpack.c.b16 %v579, %v578
      %v645 = vpack.c.b16 %v581, %v580
      %v726 = vunpack.c.l.b16 %v303
      %v727 = vunpack.c.l.b16 %v304
      %v728 = vunpack.c.l.b16 %v305
      %v729 = vunpack.c.l.b16 %v306
      %v730 = vunpack.c.l.b16 %v307
      %v731 = vunpack.c.l.b16 %v308
      %v732 = vunpack.c.l.b16 %v309
      %v733 = vunpack.c.l.b16 %v310
      %v734 = vunpack.c.l.b16 %v311
      %v735 = vunpack.c.l.b16 %v312
      %v736 = vunpack.c.l.b16 %v313
      %v737 = vunpack.c.l.b16 %v314
      %v738 = vunpack.c.l.b16 %v315
      %v739 = vunpack.c.l.b16 %v316
      %v740 = vunpack.c.l.b16 %v317
      %v741 = vunpack.c.l.b16 %v318
      %v742 = vpack.c.b16 %v727, %v726
      %v743 = vpack.c.b16 %v729, %v728
      %v744 = vpack.c.b16 %v731, %v730
      %v745 = vpack.c.b16 %v733, %v732
      %v746 = vpack.c.b16 %v735, %v734
      %v747 = vpack.c.b16 %v737, %v736
      %v748 = vpack.c.b16 %v739, %v738
      %v749 = vpack.c.b16 %v741, %v740
      %758 = vmatprep.subr.bf16.mxu0 0
      %759 = vmatpush1.bf16.msra.mxu0 %v742
      %760 = vmatprep.subr.bf16.mxu0 0
      %761 = vmatpush1.bf16.msra.mxu0 %v743
      %762 = vmatprep.subr.bf16.mxu0 0
      %763 = vmatpush1.bf16.msra.mxu0 %v744
      %764 = vmatprep.subr.bf16.mxu0 0
      %765 = vmatpush1.bf16.msra.mxu0 %v745
      %766 = vmatprep.subr.bf16.mxu0 0
      %767 = vmatpush1.bf16.msra.mxu0 %v746
      %768 = vmatprep.subr.bf16.mxu0 0
      %769 = vmatpush1.bf16.msra.mxu0 %v747
      %770 = vmatprep.subr.bf16.mxu0 0
      %771 = vmatpush1.bf16.msra.mxu0 %v748
      %772 = vmatprep.subr.bf16.mxu0 0
      %773 = vmatpush1.bf16.msra.mxu0 %v749
      %774 = vmatprep.subr.bf16.mxu0 0
      %775 = vmatpush1.bf16.msra.mxu0 0
      %776 = vmatprep.subr.bf16.mxu0 0
      %777 = vmatpush1.bf16.msra.mxu0 0
      %778 = vmatprep.subr.bf16.mxu0 0
      %779 = vmatpush1.bf16.msra.mxu0 0
      %780 = vmatprep.subr.bf16.mxu0 0
      %781 = vmatpush1.bf16.msra.mxu0 0
      %782 = vmatprep.subr.bf16.mxu0 0
      %783 = vmatpush1.bf16.msra.mxu0 0
      %784 = vmatprep.subr.bf16.mxu0 0
      %785 = vmatpush1.bf16.msra.mxu0 0
      %786 = vmatprep.subr.bf16.mxu0 0
      %787 = vmatpush1.bf16.msra.mxu0 0
      %788 = vmatprep.subr.bf16.mxu0 0
      %789 = vmatpush1.bf16.msra.mxu0 0
      %790 = vmatprep.mubr.bf16.mxu0 0
      %791 = vmatmul.mubr.bf16.gmra.mrb[0].mxu0 %v582
      %v792 = vpop.f32.mrb[0].mxu0
      %v793 = vadd.f32 %v324, %v792
      %v794 = vpop.f32.mrb[0].mxu0
      %v795 = vpop.f32.mrb[0].mxu0
      %v796 = vadd.f32 %v324, %v795
      %v797 = vpop.f32.mrb[0].mxu0
      %798 = vmatprep.mubr.bf16.mxu0 0
      %799 = vmatmul.mubr.bf16.gmra.mrb[0].mxu0 %v583
      %v800 = vpop.f32.mrb[0].mxu0
      %v801 = vadd.f32 %v324, %v800
      %v802 = vpop.f32.mrb[0].mxu0
      %v803 = vpop.f32.mrb[0].mxu0
      %v804 = vadd.f32 %v324, %v803
      %v805 = vpop.f32.mrb[0].mxu0
      %806 = vmatprep.mubr.bf16.mxu0 0
      %807 = vmatmul.mubr.bf16.gmra.mrb[0].mxu0 %v584
      %v808 = vpop.f32.mrb[0].mxu0
      %v809 = vadd.f32 %v324, %v808
      %v810 = vpop.f32.mrb[0].mxu0
      %v811 = vpop.f32.mrb[0].mxu0
      %v812 = vadd.f32 %v324, %v811
      %v813 = vpop.f32.mrb[0].mxu0
      %814 = vmatprep.mubr.bf16.mxu0 0
      %815 = vmatmul.mubr.bf16.gmra.mrb[0].mxu0 %v585
      %v816 = vpop.f32.mrb[0].mxu0
      %v817 = vadd.f32 %v324, %v816
      %v818 = vpop.f32.mrb[0].mxu0
      %v819 = vpop.f32.mrb[0].mxu0
      %v820 = vadd.f32 %v324, %v819
      %v821 = vpop.f32.mrb[0].mxu0
      %822 = vmatprep.mubr.bf16.mxu0 0
      %823 = vmatmul.mubr.bf16.gmra.mrb[0].mxu0 %v586
      %v824 = vpop.f32.mrb[0].mxu0
      %v825 = vadd.f32 %v324, %v824
      %v826 = vpop.f32.mrb[0].mxu0
      %v827 = vpop.f32.mrb[0].mxu0
      %v828 = vadd.f32 %v324, %v827
      %v829 = vpop.f32.mrb[0].mxu0
      %830 = vmatprep.mubr.bf16.mxu0 0
      %831 = vmatmul.mubr.bf16.gmra.mrb[0].mxu0 %v587
      %v832 = vpop.f32.mrb[0].mxu0
      %v833 = vadd.f32 %v324, %v832
      %v834 = vpop.f32.mrb[0].mxu0
      %v835 = vpop.f32.mrb[0].mxu0
      %v836 = vadd.f32 %v324, %v835
      %v837 = vpop.f32.mrb[0].mxu0
      %838 = vmatprep.mubr.bf16.mxu0 0
      %839 = vmatmul.mubr.bf16.gmra.mrb[0].mxu0 %v588
      %v840 = vpop.f32.mrb[0].mxu0
      %v841 = vadd.f32 %v324, %v840
      %v842 = vpop.f32.mrb[0].mxu0
      %v843 = vpop.f32.mrb[0].mxu0
      %v844 = vadd.f32 %v324, %v843
      %v845 = vpop.f32.mrb[0].mxu0
      %846 = vmatprep.mubr.bf16.mxu0 0
      %847 = vmatmul.mubr.bf16.gmra.mrb[0].mxu0 %v589
      %v848 = vpop.f32.mrb[0].mxu0
      %v849 = vadd.f32 %v324, %v848
      %v850 = vpop.f32.mrb[0].mxu0
      %v851 = vpop.f32.mrb[0].mxu0
      %v852 = vadd.f32 %v324, %v851
      %v853 = vpop.f32.mrb[0].mxu0
      %854 = vmatprep.mubr.bf16.mxu0 0
      %855 = vmatmul.mubr.bf16.gmra.mrb[0].mxu0 %v590
      %v856 = vpop.f32.mrb[0].mxu0
      %v857 = vadd.f32 %v324, %v856
      %v858 = vpop.f32.mrb[0].mxu0
      %v859 = vpop.f32.mrb[0].mxu0
      %v860 = vadd.f32 %v324, %v859
      %v861 = vpop.f32.mrb[0].mxu0
      %862 = vmatprep.mubr.bf16.mxu0 0
      %863 = vmatmul.mubr.bf16.gmra.mrb[0].mxu0 %v591
      %v864 = vpop.f32.mrb[0].mxu0
      %v865 = vadd.f32 %v324, %v864
      %v866 = vpop.f32.mrb[0].mxu0
      %v867 = vpop.f32.mrb[0].mxu0
      %v868 = vadd.f32 %v324, %v867
      %v869 = vpop.f32.mrb[0].mxu0
      %870 = vmatprep.mubr.bf16.mxu0 0
      %871 = vmatmul.mubr.bf16.gmra.mrb[0].mxu0 %v592
      %v872 = vpop.f32.mrb[0].mxu0
      %v873 = vadd.f32 %v324, %v872
      %v874 = vpop.f32.mrb[0].mxu0
      %v875 = vpop.f32.mrb[0].mxu0
      %v876 = vadd.f32 %v324, %v875
      %v877 = vpop.f32.mrb[0].mxu0
      %878 = vmatprep.mubr.bf16.mxu0 0
      %879 = vmatmul.mubr.bf16.gmra.mrb[0].mxu0 %v593
      %v880 = vpop.f32.mrb[0].mxu0
      %v881 = vadd.f32 %v324, %v880
      %v882 = vpop.f32.mrb[0].mxu0
      %v883 = vpop.f32.mrb[0].mxu0
      %v884 = vadd.f32 %v324, %v883
      %v885 = vpop.f32.mrb[0].mxu0
      %886 = vmatprep.mubr.bf16.mxu0 0
      %887 = vmatmul.mubr.bf16.gmra.mrb[0].mxu0 %v594
      %v888 = vpop.f32.mrb[0].mxu0
      %v889 = vadd.f32 %v324, %v888
      %v890 = vpop.f32.mrb[0].mxu0
      %v891 = vpop.f32.mrb[0].mxu0
      %v892 = vadd.f32 %v324, %v891
      %v893 = vpop.f32.mrb[0].mxu0
      %894 = vmatprep.mubr.bf16.mxu0 0
      %895 = vmatmul.mubr.bf16.gmra.mrb[0].mxu0 %v595
      %v896 = vpop.f32.mrb[0].mxu0
      %v897 = vadd.f32 %v324, %v896
      %v898 = vpop.f32.mrb[0].mxu0
      %v899 = vpop.f32.mrb[0].mxu0
      %v900 = vadd.f32 %v324, %v899
      %v901 = vpop.f32.mrb[0].mxu0
      %902 = vmatprep.mubr.bf16.mxu0 0
      %903 = vmatmul.mubr.bf16.gmra.mrb[0].mxu0 %v596
      %v904 = vpop.f32.mrb[0].mxu0
      %v905 = vadd.f32 %v324, %v904
      %v906 = vpop.f32.mrb[0].mxu0
      %v907 = vpop.f32.mrb[0].mxu0
      %v908 = vadd.f32 %v324, %v907
      %v909 = vpop.f32.mrb[0].mxu0
      %910 = vmatprep.mubr.bf16.mxu0 0
      %911 = vmatmul.mubr.bf16.gmra.mrb[0].mxu0 %v597
      %v912 = vpop.f32.mrb[0].mxu0
      %v913 = vadd.f32 %v324, %v912
      %v914 = vpop.f32.mrb[0].mxu0
      %v915 = vpop.f32.mrb[0].mxu0
      %v916 = vadd.f32 %v324, %v915
      %v917 = vpop.f32.mrb[0].mxu0
      %918 = vmatprep.mubr.bf16.mxu0 0
      %919 = vmatmul.mubr.bf16.gmra.mrb[0].mxu0 %v598
      %v920 = vpop.f32.mrb[0].mxu0
      %v921 = vadd.f32 %v324, %v920
      %v922 = vpop.f32.mrb[0].mxu0
      %v923 = vpop.f32.mrb[0].mxu0
      %v924 = vadd.f32 %v324, %v923
      %v925 = vpop.f32.mrb[0].mxu0
      %926 = vmatprep.mubr.bf16.mxu0 0
      %927 = vmatmul.mubr.bf16.gmra.mrb[0].mxu0 %v599
      %v928 = vpop.f32.mrb[0].mxu0
      %v929 = vadd.f32 %v324, %v928
      %v930 = vpop.f32.mrb[0].mxu0
      %v931 = vpop.f32.mrb[0].mxu0
      %v932 = vadd.f32 %v324, %v931
      %v933 = vpop.f32.mrb[0].mxu0
      %934 = vmatprep.mubr.bf16.mxu0 0
      %935 = vmatmul.mubr.bf16.gmra.mrb[0].mxu0 %v600
      %v936 = vpop.f32.mrb[0].mxu0
      %v937 = vadd.f32 %v324, %v936
      %v938 = vpop.f32.mrb[0].mxu0
      %v939 = vpop.f32.mrb[0].mxu0
      %v940 = vadd.f32 %v324, %v939
      %v941 = vpop.f32.mrb[0].mxu0
      %942 = vmatprep.mubr.bf16.mxu0 0
      %943 = vmatmul.mubr.bf16.gmra.mrb[0].mxu0 %v601
      %v944 = vpop.f32.mrb[0].mxu0
      %v945 = vadd.f32 %v324, %v944
      %v946 = vpop.f32.mrb[0].mxu0
      %v947 = vpop.f32.mrb[0].mxu0
      %v948 = vadd.f32 %v324, %v947
      %v949 = vpop.f32.mrb[0].mxu0
      %950 = vmatprep.mubr.bf16.mxu0 0
      %951 = vmatmul.mubr.bf16.gmra.mrb[0].mxu0 %v602
      %v952 = vpop.f32.mrb[0].mxu0
      %v953 = vadd.f32 %v324, %v952
      %v954 = vpop.f32.mrb[0].mxu0
      %v955 = vpop.f32.mrb[0].mxu0
      %v956 = vadd.f32 %v324, %v955
      %v957 = vpop.f32.mrb[0].mxu0
      %958 = vmatprep.mubr.bf16.mxu0 0
      %959 = vmatmul.mubr.bf16.gmra.mrb[0].mxu0 %v603
      %v960 = vpop.f32.mrb[0].mxu0
      %v961 = vadd.f32 %v324, %v960
      %v962 = vpop.f32.mrb[0].mxu0
      %v963 = vpop.f32.mrb[0].mxu0
      %v964 = vadd.f32 %v324, %v963
      %v965 = vpop.f32.mrb[0].mxu0
      %966 = vmatprep.mubr.bf16.mxu0 0
      %967 = vmatmul.mubr.bf16.gmra.mrb[0].mxu0 %v604
      %v968 = vpop.f32.mrb[0].mxu0
      %v969 = vadd.f32 %v324, %v968
      %v970 = vpop.f32.mrb[0].mxu0
      %v971 = vpop.f32.mrb[0].mxu0
      %v972 = vadd.f32 %v324, %v971
      %v973 = vpop.f32.mrb[0].mxu0
      %974 = vmatprep.mubr.bf16.mxu0 0
      %975 = vmatmul.mubr.bf16.gmra.mrb[0].mxu0 %v605
      %v976 = vpop.f32.mrb[0].mxu0
      %v977 = vadd.f32 %v324, %v976
      %v978 = vpop.f32.mrb[0].mxu0
      %v979 = vpop.f32.mrb[0].mxu0
      %v980 = vadd.f32 %v324, %v979
      %v981 = vpop.f32.mrb[0].mxu0
      %982 = vmatprep.mubr.bf16.mxu0 0
      %983 = vmatmul.mubr.bf16.gmra.mrb[0].mxu0 %v606
      %v984 = vpop.f32.mrb[0].mxu0
      %v985 = vadd.f32 %v324, %v984
      %v986 = vpop.f32.mrb[0].mxu0
      %v987 = vpop.f32.mrb[0].mxu0
      %v988 = vadd.f32 %v324, %v987
      %v989 = vpop.f32.mrb[0].mxu0
      %990 = vmatprep.mubr.bf16.mxu0 0
      %991 = vmatmul.mubr.bf16.gmra.mrb[0].mxu0 %v607
      %v992 = vpop.f32.mrb[0].mxu0
      %v993 = vadd.f32 %v324, %v992
      %v994 = vpop.f32.mrb[0].mxu0
      %v995 = vpop.f32.mrb[0].mxu0
      %v996 = vadd.f32 %v324, %v995
      %v997 = vpop.f32.mrb[0].mxu0
      %998 = vmatprep.mubr.bf16.mxu0 0
      %999 = vmatmul.mubr.bf16.gmra.mrb[0].mxu0 %v608
      %v1000 = vpop.f32.mrb[0].mxu0
      %v1001 = vadd.f32 %v324, %v1000
      %v1002 = vpop.f32.mrb[0].mxu0
      %v1003 = vpop.f32.mrb[0].mxu0
      %v1004 = vadd.f32 %v324, %v1003
      %v1005 = vpop.f32.mrb[0].mxu0
      %1006 = vmatprep.mubr.bf16.mxu0 0
      %1007 = vmatmul.mubr.bf16.gmra.mrb[0].mxu0 %v609
      %v1008 = vpop.f32.mrb[0].mxu0
      %v1009 = vadd.f32 %v324, %v1008
      %v1010 = vpop.f32.mrb[0].mxu0
      %v1011 = vpop.f32.mrb[0].mxu0
      %v1012 = vadd.f32 %v324, %v1011
      %v1013 = vpop.f32.mrb[0].mxu0
      %1014 = vmatprep.mubr.bf16.mxu0 0
      %1015 = vmatmul.mubr.bf16.gmra.mrb[0].mxu0 %v610
      %v1016 = vpop.f32.mrb[0].mxu0
      %v1017 = vadd.f32 %v324, %v1016
      %v1018 = vpop.f32.mrb[0].mxu0
      %v1019 = vpop.f32.mrb[0].mxu0
      %v1020 = vadd.f32 %v324, %v1019
      %v1021 = vpop.f32.mrb[0].mxu0
      %1022 = vmatprep.mubr.bf16.mxu0 0
      %1023 = vmatmul.mubr.bf16.gmra.mrb[0].mxu0 %v611
      %v1024 = vpop.f32.mrb[0].mxu0
      %v1025 = vadd.f32 %v324, %v1024
      %v1026 = vpop.f32.mrb[0].mxu0
      %v1027 = vpop.f32.mrb[0].mxu0
      %v1028 = vadd.f32 %v324, %v1027
      %v1029 = vpop.f32.mrb[0].mxu0
      %1030 = vmatprep.mubr.bf16.mxu0 0
      %1031 = vmatmul.mubr.bf16.gmra.mrb[0].mxu0 %v612
      %v1032 = vpop.f32.mrb[0].mxu0
      %v1033 = vadd.f32 %v324, %v1032
      %v1034 = vpop.f32.mrb[0].mxu0
      %v1035 = vpop.f32.mrb[0].mxu0
      %v1036 = vadd.f32 %v324, %v1035
      %v1037 = vpop.f32.mrb[0].mxu0
      %1038 = vmatprep.mubr.bf16.mxu0 0
      %1039 = vmatmul.mubr.bf16.gmra.mrb[0].mxu0 %v613
      %v1040 = vpop.f32.mrb[0].mxu0
      %v1041 = vadd.f32 %v324, %v1040
      %v1042 = vpop.f32.mrb[0].mxu0
      %v1043 = vpop.f32.mrb[0].mxu0
      %v1044 = vadd.f32 %v324, %v1043
      %v1045 = vpop.f32.mrb[0].mxu0
      %1046 = vmatprep.mubr.bf16.mxu0 0
      %1047 = vmatmul.mubr.bf16.gmra.mrb[0].mxu0 %v614
      %v1048 = vpop.f32.mrb[0].mxu0
      %v1049 = vadd.f32 %v324, %v1048
      %v1050 = vpop.f32.mrb[0].mxu0
      %v1051 = vpop.f32.mrb[0].mxu0
      %v1052 = vadd.f32 %v324, %v1051
      %v1053 = vpop.f32.mrb[0].mxu0
      %1054 = vmatprep.mubr.bf16.mxu0 0
      %1055 = vmatmul.mubr.bf16.gmra.mrb[0].mxu0 %v615
      %v1056 = vpop.f32.mrb[0].mxu0
      %v1057 = vadd.f32 %v324, %v1056
      %v1058 = vpop.f32.mrb[0].mxu0
      %v1059 = vpop.f32.mrb[0].mxu0
      %v1060 = vadd.f32 %v324, %v1059
      %v1061 = vpop.f32.mrb[0].mxu0
      %1062 = vmatprep.mubr.bf16.mxu0 0
      %1063 = vmatmul.mubr.bf16.gmra.mrb[0].mxu0 %v616
      %v1064 = vpop.f32.mrb[0].mxu0
      %v1065 = vadd.f32 %v324, %v1064
      %v1066 = vpop.f32.mrb[0].mxu0
      %v1067 = vpop.f32.mrb[0].mxu0
      %v1068 = vadd.f32 %v324, %v1067
      %v1069 = vpop.f32.mrb[0].mxu0
      %1070 = vmatprep.mubr.bf16.mxu0 0
      %1071 = vmatmul.mubr.bf16.gmra.mrb[0].mxu0 %v617
      %v1072 = vpop.f32.mrb[0].mxu0
      %v1073 = vadd.f32 %v324, %v1072
      %v1074 = vpop.f32.mrb[0].mxu0
      %v1075 = vpop.f32.mrb[0].mxu0
      %v1076 = vadd.f32 %v324, %v1075
      %v1077 = vpop.f32.mrb[0].mxu0
      %1078 = vmatprep.mubr.bf16.mxu0 0
      %1079 = vmatmul.mubr.bf16.gmra.mrb[0].mxu0 %v618
      %v1080 = vpop.f32.mrb[0].mxu0
      %v1081 = vadd.f32 %v324, %v1080
      %v1082 = vpop.f32.mrb[0].mxu0
      %v1083 = vpop.f32.mrb[0].mxu0
      %v1084 = vadd.f32 %v324, %v1083
      %v1085 = vpop.f32.mrb[0].mxu0
      %1086 = vmatprep.mubr.bf16.mxu0 0
      %1087 = vmatmul.mubr.bf16.gmra.mrb[0].mxu0 %v619
      %v1088 = vpop.f32.mrb[0].mxu0
      %v1089 = vadd.f32 %v324, %v1088
      %v1090 = vpop.f32.mrb[0].mxu0
      %v1091 = vpop.f32.mrb[0].mxu0
      %v1092 = vadd.f32 %v324, %v1091
      %v1093 = vpop.f32.mrb[0].mxu0
      %1094 = vmatprep.mubr.bf16.mxu0 0
      %1095 = vmatmul.mubr.bf16.gmra.mrb[0].mxu0 %v620
      %v1096 = vpop.f32.mrb[0].mxu0
      %v1097 = vadd.f32 %v324, %v1096
      %v1098 = vpop.f32.mrb[0].mxu0
      %v1099 = vpop.f32.mrb[0].mxu0
      %v1100 = vadd.f32 %v324, %v1099
      %v1101 = vpop.f32.mrb[0].mxu0
      %1102 = vmatprep.mubr.bf16.mxu0 0
      %1103 = vmatmul.mubr.bf16.gmra.mrb[0].mxu0 %v621
      %v1104 = vpop.f32.mrb[0].mxu0
      %v1105 = vadd.f32 %v324, %v1104
      %v1106 = vpop.f32.mrb[0].mxu0
      %v1107 = vpop.f32.mrb[0].mxu0
      %v1108 = vadd.f32 %v324, %v1107
      %v1109 = vpop.f32.mrb[0].mxu0
      %1110 = vmatprep.mubr.bf16.mxu0 0
      %1111 = vmatmul.mubr.bf16.gmra.mrb[0].mxu0 %v622
      %v1112 = vpop.f32.mrb[0].mxu0
      %v1113 = vadd.f32 %v324, %v1112
      %v1114 = vpop.f32.mrb[0].mxu0
      %v1115 = vpop.f32.mrb[0].mxu0
      %v1116 = vadd.f32 %v324, %v1115
      %v1117 = vpop.f32.mrb[0].mxu0
      %1118 = vmatprep.mubr.bf16.mxu0 0
      %1119 = vmatmul.mubr.bf16.gmra.mrb[0].mxu0 %v623
      %v1120 = vpop.f32.mrb[0].mxu0
      %v1121 = vadd.f32 %v324, %v1120
      %v1122 = vpop.f32.mrb[0].mxu0
      %v1123 = vpop.f32.mrb[0].mxu0
      %v1124 = vadd.f32 %v324, %v1123
      %v1125 = vpop.f32.mrb[0].mxu0
      %1126 = vmatprep.mubr.bf16.mxu0 0
      %1127 = vmatmul.mubr.bf16.gmra.mrb[0].mxu0 %v624
      %v1128 = vpop.f32.mrb[0].mxu0
      %v1129 = vadd.f32 %v324, %v1128
      %v1130 = vpop.f32.mrb[0].mxu0
      %v1131 = vpop.f32.mrb[0].mxu0
      %v1132 = vadd.f32 %v324, %v1131
      %v1133 = vpop.f32.mrb[0].mxu0
      %1134 = vmatprep.mubr.bf16.mxu0 0
      %1135 = vmatmul.mubr.bf16.gmra.mrb[0].mxu0 %v625
      %v1136 = vpop.f32.mrb[0].mxu0
      %v1137 = vadd.f32 %v324, %v1136
      %v1138 = vpop.f32.mrb[0].mxu0
      %v1139 = vpop.f32.mrb[0].mxu0
      %v1140 = vadd.f32 %v324, %v1139
      %v1141 = vpop.f32.mrb[0].mxu0
      %1142 = vmatprep.mubr.bf16.mxu0 0
      %1143 = vmatmul.mubr.bf16.gmra.mrb[0].mxu0 %v626
      %v1144 = vpop.f32.mrb[0].mxu0
      %v1145 = vadd.f32 %v324, %v1144
      %v1146 = vpop.f32.mrb[0].mxu0
      %v1147 = vpop.f32.mrb[0].mxu0
      %v1148 = vadd.f32 %v324, %v1147
      %v1149 = vpop.f32.mrb[0].mxu0
      %1150 = vmatprep.mubr.bf16.mxu0 0
      %1151 = vmatmul.mubr.bf16.gmra.mrb[0].mxu0 %v627
      %v1152 = vpop.f32.mrb[0].mxu0
      %v1153 = vadd.f32 %v324, %v1152
      %v1154 = vpop.f32.mrb[0].mxu0
      %v1155 = vpop.f32.mrb[0].mxu0
      %v1156 = vadd.f32 %v324, %v1155
      %v1157 = vpop.f32.mrb[0].mxu0
      %1158 = vmatprep.mubr.bf16.mxu0 0
      %1159 = vmatmul.mubr.bf16.gmra.mrb[0].mxu0 %v628
      %v1160 = vpop.f32.mrb[0].mxu0
      %v1161 = vadd.f32 %v324, %v1160
      %v1162 = vpop.f32.mrb[0].mxu0
      %v1163 = vpop.f32.mrb[0].mxu0
      %v1164 = vadd.f32 %v324, %v1163
      %v1165 = vpop.f32.mrb[0].mxu0
      %1166 = vmatprep.mubr.bf16.mxu0 0
      %1167 = vmatmul.mubr.bf16.gmra.mrb[0].mxu0 %v629
      %v1168 = vpop.f32.mrb[0].mxu0
      %v1169 = vadd.f32 %v324, %v1168
      %v1170 = vpop.f32.mrb[0].mxu0
      %v1171 = vpop.f32.mrb[0].mxu0
      %v1172 = vadd.f32 %v324, %v1171
      %v1173 = vpop.f32.mrb[0].mxu0
      %1174 = vmatprep.mubr.bf16.mxu0 0
      %1175 = vmatmul.mubr.bf16.gmra.mrb[0].mxu0 %v630
      %v1176 = vpop.f32.mrb[0].mxu0
      %v1177 = vadd.f32 %v324, %v1176
      %v1178 = vpop.f32.mrb[0].mxu0
      %v1179 = vpop.f32.mrb[0].mxu0
      %v1180 = vadd.f32 %v324, %v1179
      %v1181 = vpop.f32.mrb[0].mxu0
      %1182 = vmatprep.mubr.bf16.mxu0 0
      %1183 = vmatmul.mubr.bf16.gmra.mrb[0].mxu0 %v631
      %v1184 = vpop.f32.mrb[0].mxu0
      %v1185 = vadd.f32 %v324, %v1184
      %v1186 = vpop.f32.mrb[0].mxu0
      %v1187 = vpop.f32.mrb[0].mxu0
      %v1188 = vadd.f32 %v324, %v1187
      %v1189 = vpop.f32.mrb[0].mxu0
      %1190 = vmatprep.mubr.bf16.mxu0 0
      %1191 = vmatmul.mubr.bf16.gmra.mrb[0].mxu0 %v632
      %v1192 = vpop.f32.mrb[0].mxu0
      %v1193 = vadd.f32 %v324, %v1192
      %v1194 = vpop.f32.mrb[0].mxu0
      %v1195 = vpop.f32.mrb[0].mxu0
      %v1196 = vadd.f32 %v324, %v1195
      %v1197 = vpop.f32.mrb[0].mxu0
      %1198 = vmatprep.mubr.bf16.mxu0 0
      %1199 = vmatmul.mubr.bf16.gmra.mrb[0].mxu0 %v633
      %v1200 = vpop.f32.mrb[0].mxu0
      %v1201 = vadd.f32 %v324, %v1200
      %v1202 = vpop.f32.mrb[0].mxu0
      %v1203 = vpop.f32.mrb[0].mxu0
      %v1204 = vadd.f32 %v324, %v1203
      %v1205 = vpop.f32.mrb[0].mxu0
      %1206 = vmatprep.mubr.bf16.mxu0 0
      %1207 = vmatmul.mubr.bf16.gmra.mrb[0].mxu0 %v634
      %v1208 = vpop.f32.mrb[0].mxu0
      %v1209 = vadd.f32 %v324, %v1208
      %v1210 = vpop.f32.mrb[0].mxu0
      %v1211 = vpop.f32.mrb[0].mxu0
      %v1212 = vadd.f32 %v324, %v1211
      %v1213 = vpop.f32.mrb[0].mxu0
      %1214 = vmatprep.mubr.bf16.mxu0 0
      %1215 = vmatmul.mubr.bf16.gmra.mrb[0].mxu0 %v635
      %v1216 = vpop.f32.mrb[0].mxu0
      %v1217 = vadd.f32 %v324, %v1216
      %v1218 = vpop.f32.mrb[0].mxu0
      %v1219 = vpop.f32.mrb[0].mxu0
      %v1220 = vadd.f32 %v324, %v1219
      %v1221 = vpop.f32.mrb[0].mxu0
      %1222 = vmatprep.mubr.bf16.mxu0 0
      %1223 = vmatmul.mubr.bf16.gmra.mrb[0].mxu0 %v636
      %v1224 = vpop.f32.mrb[0].mxu0
      %v1225 = vadd.f32 %v324, %v1224
      %v1226 = vpop.f32.mrb[0].mxu0
      %v1227 = vpop.f32.mrb[0].mxu0
      %v1228 = vadd.f32 %v324, %v1227
      %v1229 = vpop.f32.mrb[0].mxu0
      %1230 = vmatprep.mubr.bf16.mxu0 0
      %1231 = vmatmul.mubr.bf16.gmra.mrb[0].mxu0 %v637
      %v1232 = vpop.f32.mrb[0].mxu0
      %v1233 = vadd.f32 %v324, %v1232
      %v1234 = vpop.f32.mrb[0].mxu0
      %v1235 = vpop.f32.mrb[0].mxu0
      %v1236 = vadd.f32 %v324, %v1235
      %v1237 = vpop.f32.mrb[0].mxu0
      %1238 = vmatprep.mubr.bf16.mxu0 0
      %1239 = vmatmul.mubr.bf16.gmra.mrb[0].mxu0 %v638
      %v1240 = vpop.f32.mrb[0].mxu0
      %v1241 = vadd.f32 %v324, %v1240
      %v1242 = vpop.f32.mrb[0].mxu0
      %v1243 = vpop.f32.mrb[0].mxu0
      %v1244 = vadd.f32 %v324, %v1243
      %v1245 = vpop.f32.mrb[0].mxu0
      %1246 = vmatprep.mubr.bf16.mxu0 0
      %1247 = vmatmul.mubr.bf16.gmra.mrb[0].mxu0 %v639
      %v1248 = vpop.f32.mrb[0].mxu0
      %v1249 = vadd.f32 %v324, %v1248
      %v1250 = vpop.f32.mrb[0].mxu0
      %v1251 = vpop.f32.mrb[0].mxu0
      %v1252 = vadd.f32 %v324, %v1251
      %v1253 = vpop.f32.mrb[0].mxu0
      %1254 = vmatprep.mubr.bf16.mxu0 0
      %1255 = vmatmul.mubr.bf16.gmra.mrb[0].mxu0 %v640
      %v1256 = vpop.f32.mrb[0].mxu0
      %v1257 = vadd.f32 %v324, %v1256
      %v1258 = vpop.f32.mrb[0].mxu0
      %v1259 = vpop.f32.mrb[0].mxu0
      %v1260 = vadd.f32 %v324, %v1259
      %v1261 = vpop.f32.mrb[0].mxu0
      %1262 = vmatprep.mubr.bf16.mxu0 0
      %1263 = vmatmul.mubr.bf16.gmra.mrb[0].mxu0 %v641
      %v1264 = vpop.f32.mrb[0].mxu0
      %v1265 = vadd.f32 %v324, %v1264
      %v1266 = vpop.f32.mrb[0].mxu0
      %v1267 = vpop.f32.mrb[0].mxu0
      %v1268 = vadd.f32 %v324, %v1267
      %v1269 = vpop.f32.mrb[0].mxu0
      %1270 = vmatprep.mubr.bf16.mxu0 0
      %1271 = vmatmul.mubr.bf16.gmra.mrb[0].mxu0 %v642
      %v1272 = vpop.f32.mrb[0].mxu0
      %v1273 = vadd.f32 %v324, %v1272
      %v1274 = vpop.f32.mrb[0].mxu0
      %v1275 = vpop.f32.mrb[0].mxu0
      %v1276 = vadd.f32 %v324, %v1275
      %v1277 = vpop.f32.mrb[0].mxu0
      %1278 = vmatprep.mubr.bf16.mxu0 0
      %1279 = vmatmul.mubr.bf16.gmra.mrb[0].mxu0 %v643
      %v1280 = vpop.f32.mrb[0].mxu0
      %v1281 = vadd.f32 %v324, %v1280
      %v1282 = vpop.f32.mrb[0].mxu0
      %v1283 = vpop.f32.mrb[0].mxu0
      %v1284 = vadd.f32 %v324, %v1283
      %v1285 = vpop.f32.mrb[0].mxu0
      %1286 = vmatprep.mubr.bf16.mxu0 0
      %1287 = vmatmul.mubr.bf16.gmra.mrb[0].mxu0 %v644
      %v1288 = vpop.f32.mrb[0].mxu0
      %v1289 = vadd.f32 %v324, %v1288
      %v1290 = vpop.f32.mrb[0].mxu0
      %v1291 = vpop.f32.mrb[0].mxu0
      %v1292 = vadd.f32 %v324, %v1291
      %v1293 = vpop.f32.mrb[0].mxu0
      %1294 = vmatprep.mubr.bf16.mxu0 0
      %1295 = vmatmul.mubr.bf16.gmra.mrb[0].mxu0 %v645
      %v1296 = vpop.f32.mrb[0].mxu0
      %v1297 = vadd.f32 %v324, %v1296
      %v1298 = vpop.f32.mrb[0].mxu0
      %v1299 = vpop.f32.mrb[0].mxu0
      %v1300 = vadd.f32 %v324, %v1299
      %v1301 = vpop.f32.mrb[0].mxu0
      %1302 = vdwg.mxu0
      %vm1303 = vcmp.ge.f32.partialorder %v793, 0.0
      %vm1304 = vcmp.ge.f32.partialorder %v796, 0.0
      %vm1305 = vcmp.ge.f32.partialorder %v801, 0.0
      %vm1306 = vcmp.ge.f32.partialorder %v804, 0.0
      %vm1307 = vcmp.ge.f32.partialorder %v809, 0.0
      %vm1308 = vcmp.ge.f32.partialorder %v812, 0.0
      %vm1309 = vcmp.ge.f32.partialorder %v817, 0.0
      %vm1310 = vcmp.ge.f32.partialorder %v820, 0.0
      %vm1311 = vcmp.ge.f32.partialorder %v825, 0.0
      %vm1312 = vcmp.ge.f32.partialorder %v828, 0.0
      %vm1313 = vcmp.ge.f32.partialorder %v833, 0.0
      %vm1314 = vcmp.ge.f32.partialorder %v836, 0.0
      %vm1315 = vcmp.ge.f32.partialorder %v841, 0.0
      %vm1316 = vcmp.ge.f32.partialorder %v844, 0.0
      %vm1317 = vcmp.ge.f32.partialorder %v849, 0.0
      %vm1318 = vcmp.ge.f32.partialorder %v852, 0.0
      %vm1319 = vcmp.ge.f32.partialorder %v857, 0.0
      %vm1320 = vcmp.ge.f32.partialorder %v860, 0.0
      %vm1321 = vcmp.ge.f32.partialorder %v865, 0.0
      %vm1322 = vcmp.ge.f32.partialorder %v868, 0.0
      %vm1323 = vcmp.ge.f32.partialorder %v873, 0.0
      %vm1324 = vcmp.ge.f32.partialorder %v876, 0.0
      %vm1325 = vcmp.ge.f32.partialorder %v881, 0.0
      %vm1326 = vcmp.ge.f32.partialorder %v884, 0.0
      %vm1327 = vcmp.ge.f32.partialorder %v889, 0.0
      %vm1328 = vcmp.ge.f32.partialorder %v892, 0.0
      %vm1329 = vcmp.ge.f32.partialorder %v897, 0.0
      %vm1330 = vcmp.ge.f32.partialorder %v900, 0.0
      %vm1331 = vcmp.ge.f32.partialorder %v905, 0.0
      %vm1332 = vcmp.ge.f32.partialorder %v908, 0.0
      %vm1333 = vcmp.ge.f32.partialorder %v913, 0.0
      %vm1334 = vcmp.ge.f32.partialorder %v916, 0.0
      %vm1335 = vcmp.ge.f32.partialorder %v921, 0.0
      %vm1336 = vcmp.ge.f32.partialorder %v924, 0.0
      %vm1337 = vcmp.ge.f32.partialorder %v929, 0.0
      %vm1338 = vcmp.ge.f32.partialorder %v932, 0.0
      %vm1339 = vcmp.ge.f32.partialorder %v937, 0.0
      %vm1340 = vcmp.ge.f32.partialorder %v940, 0.0
      %vm1341 = vcmp.ge.f32.partialorder %v945, 0.0
      %vm1342 = vcmp.ge.f32.partialorder %v948, 0.0
      %vm1343 = vcmp.ge.f32.partialorder %v953, 0.0
      %vm1344 = vcmp.ge.f32.partialorder %v956, 0.0
      %vm1345 = vcmp.ge.f32.partialorder %v961, 0.0
      %vm1346 = vcmp.ge.f32.partialorder %v964, 0.0
      %vm1347 = vcmp.ge.f32.partialorder %v969, 0.0
      %vm1348 = vcmp.ge.f32.partialorder %v972, 0.0
      %vm1349 = vcmp.ge.f32.partialorder %v977, 0.0
      %vm1350 = vcmp.ge.f32.partialorder %v980, 0.0
      %vm1351 = vcmp.ge.f32.partialorder %v985, 0.0
      %vm1352 = vcmp.ge.f32.partialorder %v988, 0.0
      %vm1353 = vcmp.ge.f32.partialorder %v993, 0.0
      %vm1354 = vcmp.ge.f32.partialorder %v996, 0.0
      %vm1355 = vcmp.ge.f32.partialorder %v1001, 0.0
      %vm1356 = vcmp.ge.f32.partialorder %v1004, 0.0
      %vm1357 = vcmp.ge.f32.partialorder %v1009, 0.0
      %vm1358 = vcmp.ge.f32.partialorder %v1012, 0.0
      %vm1359 = vcmp.ge.f32.partialorder %v1017, 0.0
      %vm1360 = vcmp.ge.f32.partialorder %v1020, 0.0
      %vm1361 = vcmp.ge.f32.partialorder %v1025, 0.0
      %vm1362 = vcmp.ge.f32.partialorder %v1028, 0.0
      %vm1363 = vcmp.ge.f32.partialorder %v1033, 0.0
      %vm1364 = vcmp.ge.f32.partialorder %v1036, 0.0
      %vm1365 = vcmp.ge.f32.partialorder %v1041, 0.0
      %vm1366 = vcmp.ge.f32.partialorder %v1044, 0.0
      %vm1367 = vcmp.ge.f32.partialorder %v1049, 0.0
      %vm1368 = vcmp.ge.f32.partialorder %v1052, 0.0
      %vm1369 = vcmp.ge.f32.partialorder %v1057, 0.0
      %vm1370 = vcmp.ge.f32.partialorder %v1060, 0.0
      %vm1371 = vcmp.ge.f32.partialorder %v1065, 0.0
      %vm1372 = vcmp.ge.f32.partialorder %v1068, 0.0
      %vm1373 = vcmp.ge.f32.partialorder %v1073, 0.0
      %vm1374 = vcmp.ge.f32.partialorder %v1076, 0.0
      %vm1375 = vcmp.ge.f32.partialorder %v1081, 0.0
      %vm1376 = vcmp.ge.f32.partialorder %v1084, 0.0
      %vm1377 = vcmp.ge.f32.partialorder %v1089, 0.0
      %vm1378 = vcmp.ge.f32.partialorder %v1092, 0.0
      %vm1379 = vcmp.ge.f32.partialorder %v1097, 0.0
      %vm1380 = vcmp.ge.f32.partialorder %v1100, 0.0
      %vm1381 = vcmp.ge.f32.partialorder %v1105, 0.0
      %vm1382 = vcmp.ge.f32.partialorder %v1108, 0.0
      %vm1383 = vcmp.ge.f32.partialorder %v1113, 0.0
      %vm1384 = vcmp.ge.f32.partialorder %v1116, 0.0
      %vm1385 = vcmp.ge.f32.partialorder %v1121, 0.0
      %vm1386 = vcmp.ge.f32.partialorder %v1124, 0.0
      %vm1387 = vcmp.ge.f32.partialorder %v1129, 0.0
      %vm1388 = vcmp.ge.f32.partialorder %v1132, 0.0
      %vm1389 = vcmp.ge.f32.partialorder %v1137, 0.0
      %vm1390 = vcmp.ge.f32.partialorder %v1140, 0.0
      %vm1391 = vcmp.ge.f32.partialorder %v1145, 0.0
      %vm1392 = vcmp.ge.f32.partialorder %v1148, 0.0
      %vm1393 = vcmp.ge.f32.partialorder %v1153, 0.0
      %vm1394 = vcmp.ge.f32.partialorder %v1156, 0.0
      %vm1395 = vcmp.ge.f32.partialorder %v1161, 0.0
      %vm1396 = vcmp.ge.f32.partialorder %v1164, 0.0
      %vm1397 = vcmp.ge.f32.partialorder %v1169, 0.0
      %vm1398 = vcmp.ge.f32.partialorder %v1172, 0.0
      %vm1399 = vcmp.ge.f32.partialorder %v1177, 0.0
      %vm1400 = vcmp.ge.f32.partialorder %v1180, 0.0
      %vm1401 = vcmp.ge.f32.partialorder %v1185, 0.0
      %vm1402 = vcmp.ge.f32.partialorder %v1188, 0.0
      %vm1403 = vcmp.ge.f32.partialorder %v1193, 0.0
      %vm1404 = vcmp.ge.f32.partialorder %v1196, 0.0
      %vm1405 = vcmp.ge.f32.partialorder %v1201, 0.0
      %vm1406 = vcmp.ge.f32.partialorder %v1204, 0.0
      %vm1407 = vcmp.ge.f32.partialorder %v1209, 0.0
      %vm1408 = vcmp.ge.f32.partialorder %v1212, 0.0
      %vm1409 = vcmp.ge.f32.partialorder %v1217, 0.0
      %vm1410 = vcmp.ge.f32.partialorder %v1220, 0.0
      %vm1411 = vcmp.ge.f32.partialorder %v1225, 0.0
      %vm1412 = vcmp.ge.f32.partialorder %v1228, 0.0
      %vm1413 = vcmp.ge.f32.partialorder %v1233, 0.0
      %vm1414 = vcmp.ge.f32.partialorder %v1236, 0.0
      %vm1415 = vcmp.ge.f32.partialorder %v1241, 0.0
      %vm1416 = vcmp.ge.f32.partialorder %v1244, 0.0
      %vm1417 = vcmp.ge.f32.partialorder %v1249, 0.0
      %vm1418 = vcmp.ge.f32.partialorder %v1252, 0.0
      %vm1419 = vcmp.ge.f32.partialorder %v1257, 0.0
      %vm1420 = vcmp.ge.f32.partialorder %v1260, 0.0
      %vm1421 = vcmp.ge.f32.partialorder %v1265, 0.0
      %vm1422 = vcmp.ge.f32.partialorder %v1268, 0.0
      %vm1423 = vcmp.ge.f32.partialorder %v1273, 0.0
      %vm1424 = vcmp.ge.f32.partialorder %v1276, 0.0
      %vm1425 = vcmp.ge.f32.partialorder %v1281, 0.0
      %vm1426 = vcmp.ge.f32.partialorder %v1284, 0.0
      %vm1427 = vcmp.ge.f32.partialorder %v1289, 0.0
      %vm1428 = vcmp.ge.f32.partialorder %v1292, 0.0
      %vm1429 = vcmp.ge.f32.partialorder %v1297, 0.0
      %vm1430 = vcmp.ge.f32.partialorder %v1300, 0.0
      %v1431 = vmul.f32 %v793, 0.2
      %v1432 = vmul.f32 %v796, 0.2
      %v1433 = vmul.f32 %v801, 0.2
      %v1434 = vmul.f32 %v804, 0.2
      %v1435 = vmul.f32 %v809, 0.2
      %v1436 = vmul.f32 %v812, 0.2
      %v1437 = vmul.f32 %v817, 0.2
      %v1438 = vmul.f32 %v820, 0.2
      %v1439 = vmul.f32 %v825, 0.2
      %v1440 = vmul.f32 %v828, 0.2
      %v1441 = vmul.f32 %v833, 0.2
      %v1442 = vmul.f32 %v836, 0.2
      %v1443 = vmul.f32 %v841, 0.2
      %v1444 = vmul.f32 %v844, 0.2
      %v1445 = vmul.f32 %v849, 0.2
      %v1446 = vmul.f32 %v852, 0.2
      %v1447 = vmul.f32 %v857, 0.2
      %v1448 = vmul.f32 %v860, 0.2
      %v1449 = vmul.f32 %v865, 0.2
      %v1450 = vmul.f32 %v868, 0.2
      %v1451 = vmul.f32 %v873, 0.2
      %v1452 = vmul.f32 %v876, 0.2
      %v1453 = vmul.f32 %v881, 0.2
      %v1454 = vmul.f32 %v884, 0.2
      %v1455 = vmul.f32 %v889, 0.2
      %v1456 = vmul.f32 %v892, 0.2
      %v1457 = vmul.f32 %v897, 0.2
      %v1458 = vmul.f32 %v900, 0.2
      %v1459 = vmul.f32 %v905, 0.2
      %v1460 = vmul.f32 %v908, 0.2
      %v1461 = vmul.f32 %v913, 0.2
      %v1462 = vmul.f32 %v916, 0.2
      %v1463 = vmul.f32 %v921, 0.2
      %v1464 = vmul.f32 %v924, 0.2
      %v1465 = vmul.f32 %v929, 0.2
      %v1466 = vmul.f32 %v932, 0.2
      %v1467 = vmul.f32 %v937, 0.2
      %v1468 = vmul.f32 %v940, 0.2
      %v1469 = vmul.f32 %v945, 0.2
      %v1470 = vmul.f32 %v948, 0.2
      %v1471 = vmul.f32 %v953, 0.2
      %v1472 = vmul.f32 %v956, 0.2
      %v1473 = vmul.f32 %v961, 0.2
      %v1474 = vmul.f32 %v964, 0.2
      %v1475 = vmul.f32 %v969, 0.2
      %v1476 = vmul.f32 %v972, 0.2
      %v1477 = vmul.f32 %v977, 0.2
      %v1478 = vmul.f32 %v980, 0.2
      %v1479 = vmul.f32 %v985, 0.2
      %v1480 = vmul.f32 %v988, 0.2
      %v1481 = vmul.f32 %v993, 0.2
      %v1482 = vmul.f32 %v996, 0.2
      %v1483 = vmul.f32 %v1001, 0.2
      %v1484 = vmul.f32 %v1004, 0.2
      %v1485 = vmul.f32 %v1009, 0.2
      %v1486 = vmul.f32 %v1012, 0.2
      %v1487 = vmul.f32 %v1017, 0.2
      %v1488 = vmul.f32 %v1020, 0.2
      %v1489 = vmul.f32 %v1025, 0.2
      %v1490 = vmul.f32 %v1028, 0.2
      %v1491 = vmul.f32 %v1033, 0.2
      %v1492 = vmul.f32 %v1036, 0.2
      %v1493 = vmul.f32 %v1041, 0.2
      %v1494 = vmul.f32 %v1044, 0.2
      %v1495 = vmul.f32 %v1049, 0.2
      %v1496 = vmul.f32 %v1052, 0.2
      %v1497 = vmul.f32 %v1057, 0.2
      %v1498 = vmul.f32 %v1060, 0.2
      %v1499 = vmul.f32 %v1065, 0.2
      %v1500 = vmul.f32 %v1068, 0.2
      %v1501 = vmul.f32 %v1073, 0.2
      %v1502 = vmul.f32 %v1076, 0.2
      %v1503 = vmul.f32 %v1081, 0.2
      %v1504 = vmul.f32 %v1084, 0.2
      %v1505 = vmul.f32 %v1089, 0.2
      %v1506 = vmul.f32 %v1092, 0.2
      %v1507 = vmul.f32 %v1097, 0.2
      %v1508 = vmul.f32 %v1100, 0.2
      %v1509 = vmul.f32 %v1105, 0.2
      %v1510 = vmul.f32 %v1108, 0.2
      %v1511 = vmul.f32 %v1113, 0.2
      %v1512 = vmul.f32 %v1116, 0.2
      %v1513 = vmul.f32 %v1121, 0.2
      %v1514 = vmul.f32 %v1124, 0.2
      %v1515 = vmul.f32 %v1129, 0.2
      %v1516 = vmul.f32 %v1132, 0.2
      %v1517 = vmul.f32 %v1137, 0.2
      %v1518 = vmul.f32 %v1140, 0.2
      %v1519 = vmul.f32 %v1145, 0.2
      %v1520 = vmul.f32 %v1148, 0.2
      %v1521 = vmul.f32 %v1153, 0.2
      %v1522 = vmul.f32 %v1156, 0.2
      %v1523 = vmul.f32 %v1161, 0.2
      %v1524 = vmul.f32 %v1164, 0.2
      %v1525 = vmul.f32 %v1169, 0.2
      %v1526 = vmul.f32 %v1172, 0.2
      %v1527 = vmul.f32 %v1177, 0.2
      %v1528 = vmul.f32 %v1180, 0.2
      %v1529 = vmul.f32 %v1185, 0.2
      %v1530 = vmul.f32 %v1188, 0.2
      %v1531 = vmul.f32 %v1193, 0.2
      %v1532 = vmul.f32 %v1196, 0.2
      %v1533 = vmul.f32 %v1201, 0.2
      %v1534 = vmul.f32 %v1204, 0.2
      %v1535 = vmul.f32 %v1209, 0.2
      %v1536 = vmul.f32 %v1212, 0.2
      %v1537 = vmul.f32 %v1217, 0.2
      %v1538 = vmul.f32 %v1220, 0.2
      %v1539 = vmul.f32 %v1225, 0.2
      %v1540 = vmul.f32 %v1228, 0.2
      %v1541 = vmul.f32 %v1233, 0.2
      %v1542 = vmul.f32 %v1236, 0.2
      %v1543 = vmul.f32 %v1241, 0.2
      %v1544 = vmul.f32 %v1244, 0.2
      %v1545 = vmul.f32 %v1249, 0.2
      %v1546 = vmul.f32 %v1252, 0.2
      %v1547 = vmul.f32 %v1257, 0.2
      %v1548 = vmul.f32 %v1260, 0.2
      %v1549 = vmul.f32 %v1265, 0.2
      %v1550 = vmul.f32 %v1268, 0.2
      %v1551 = vmul.f32 %v1273, 0.2
      %v1552 = vmul.f32 %v1276, 0.2
      %v1553 = vmul.f32 %v1281, 0.2
      %v1554 = vmul.f32 %v1284, 0.2
      %v1555 = vmul.f32 %v1289, 0.2
      %v1556 = vmul.f32 %v1292, 0.2
      %v1557 = vmul.f32 %v1297, 0.2
      %v1558 = vmul.f32 %v1300, 0.2
      %v1559 = vsel %vm1303, %v793, %v1431
      %v1560 = vsel %vm1304, %v796, %v1432
      %v1561 = vsel %vm1305, %v801, %v1433
      %v1562 = vsel %vm1306, %v804, %v1434
      %v1563 = vsel %vm1307, %v809, %v1435
      %v1564 = vsel %vm1308, %v812, %v1436
      %v1565 = vsel %vm1309, %v817, %v1437
      %v1566 = vsel %vm1310, %v820, %v1438
      %v1567 = vsel %vm1311, %v825, %v1439
      %v1568 = vsel %vm1312, %v828, %v1440
      %v1569 = vsel %vm1313, %v833, %v1441
      %v1570 = vsel %vm1314, %v836, %v1442
      %v1571 = vsel %vm1315, %v841, %v1443
      %v1572 = vsel %vm1316, %v844, %v1444
      %v1573 = vsel %vm1317, %v849, %v1445
      %v1574 = vsel %vm1318, %v852, %v1446
      %v1575 = vsel %vm1319, %v857, %v1447
      %v1576 = vsel %vm1320, %v860, %v1448
      %v1577 = vsel %vm1321, %v865, %v1449
      %v1578 = vsel %vm1322, %v868, %v1450
      %v1579 = vsel %vm1323, %v873, %v1451
      %v1580 = vsel %vm1324, %v876, %v1452
      %v1581 = vsel %vm1325, %v881, %v1453
      %v1582 = vsel %vm1326, %v884, %v1454
      %v1583 = vsel %vm1327, %v889, %v1455
      %v1584 = vsel %vm1328, %v892, %v1456
      %v1585 = vsel %vm1329, %v897, %v1457
      %v1586 = vsel %vm1330, %v900, %v1458
      %v1587 = vsel %vm1331, %v905, %v1459
      %v1588 = vsel %vm1332, %v908, %v1460
      %v1589 = vsel %vm1333, %v913, %v1461
      %v1590 = vsel %vm1334, %v916, %v1462
      %v1591 = vsel %vm1335, %v921, %v1463
      %v1592 = vsel %vm1336, %v924, %v1464
      %v1593 = vsel %vm1337, %v929, %v1465
      %v1594 = vsel %vm1338, %v932, %v1466
      %v1595 = vsel %vm1339, %v937, %v1467
      %v1596 = vsel %vm1340, %v940, %v1468
      %v1597 = vsel %vm1341, %v945, %v1469
      %v1598 = vsel %vm1342, %v948, %v1470
      %v1599 = vsel %vm1343, %v953, %v1471
      %v1600 = vsel %vm1344, %v956, %v1472
      %v1601 = vsel %vm1345, %v961, %v1473
      %v1602 = vsel %vm1346, %v964, %v1474
      %v1603 = vsel %vm1347, %v969, %v1475
      %v1604 = vsel %vm1348, %v972, %v1476
      %v1605 = vsel %vm1349, %v977, %v1477
      %v1606 = vsel %vm1350, %v980, %v1478
      %v1607 = vsel %vm1351, %v985, %v1479
      %v1608 = vsel %vm1352, %v988, %v1480
      %v1609 = vsel %vm1353, %v993, %v1481
      %v1610 = vsel %vm1354, %v996, %v1482
      %v1611 = vsel %vm1355, %v1001, %v1483
      %v1612 = vsel %vm1356, %v1004, %v1484
      %v1613 = vsel %vm1357, %v1009, %v1485
      %v1614 = vsel %vm1358, %v1012, %v1486
      %v1615 = vsel %vm1359, %v1017, %v1487
      %v1616 = vsel %vm1360, %v1020, %v1488
      %v1617 = vsel %vm1361, %v1025, %v1489
      %v1618 = vsel %vm1362, %v1028, %v1490
      %v1619 = vsel %vm1363, %v1033, %v1491
      %v1620 = vsel %vm1364, %v1036, %v1492
      %v1621 = vsel %vm1365, %v1041, %v1493
      %v1622 = vsel %vm1366, %v1044, %v1494
      %v1623 = vsel %vm1367, %v1049, %v1495
      %v1624 = vsel %vm1368, %v1052, %v1496
      %v1625 = vsel %vm1369, %v1057, %v1497
      %v1626 = vsel %vm1370, %v1060, %v1498
      %v1627 = vsel %vm1371, %v1065, %v1499
      %v1628 = vsel %vm1372, %v1068, %v1500
      %v1629 = vsel %vm1373, %v1073, %v1501
      %v1630 = vsel %vm1374, %v1076, %v1502
      %v1631 = vsel %vm1375, %v1081, %v1503
      %v1632 = vsel %vm1376, %v1084, %v1504
      %v1633 = vsel %vm1377, %v1089, %v1505
      %v1634 = vsel %vm1378, %v1092, %v1506
      %v1635 = vsel %vm1379, %v1097, %v1507
      %v1636 = vsel %vm1380, %v1100, %v1508
      %v1637 = vsel %vm1381, %v1105, %v1509
      %v1638 = vsel %vm1382, %v1108, %v1510
      %v1639 = vsel %vm1383, %v1113, %v1511
      %v1640 = vsel %vm1384, %v1116, %v1512
      %v1641 = vsel %vm1385, %v1121, %v1513
      %v1642 = vsel %vm1386, %v1124, %v1514
      %v1643 = vsel %vm1387, %v1129, %v1515
      %v1644 = vsel %vm1388, %v1132, %v1516
      %v1645 = vsel %vm1389, %v1137, %v1517
      %v1646 = vsel %vm1390, %v1140, %v1518
      %v1647 = vsel %vm1391, %v1145, %v1519
      %v1648 = vsel %vm1392, %v1148, %v1520
      %v1649 = vsel %vm1393, %v1153, %v1521
      %v1650 = vsel %vm1394, %v1156, %v1522
      %v1651 = vsel %vm1395, %v1161, %v1523
      %v1652 = vsel %vm1396, %v1164, %v1524
      %v1653 = vsel %vm1397, %v1169, %v1525
      %v1654 = vsel %vm1398, %v1172, %v1526
      %v1655 = vsel %vm1399, %v1177, %v1527
      %v1656 = vsel %vm1400, %v1180, %v1528
      %v1657 = vsel %vm1401, %v1185, %v1529
      %v1658 = vsel %vm1402, %v1188, %v1530
      %v1659 = vsel %vm1403, %v1193, %v1531
      %v1660 = vsel %vm1404, %v1196, %v1532
      %v1661 = vsel %vm1405, %v1201, %v1533
      %v1662 = vsel %vm1406, %v1204, %v1534
      %v1663 = vsel %vm1407, %v1209, %v1535
      %v1664 = vsel %vm1408, %v1212, %v1536
      %v1665 = vsel %vm1409, %v1217, %v1537
      %v1666 = vsel %vm1410, %v1220, %v1538
      %v1667 = vsel %vm1411, %v1225, %v1539
      %v1668 = vsel %vm1412, %v1228, %v1540
      %v1669 = vsel %vm1413, %v1233, %v1541
      %v1670 = vsel %vm1414, %v1236, %v1542
      %v1671 = vsel %vm1415, %v1241, %v1543
      %v1672 = vsel %vm1416, %v1244, %v1544
      %v1673 = vsel %vm1417, %v1249, %v1545
      %v1674 = vsel %vm1418, %v1252, %v1546
      %v1675 = vsel %vm1419, %v1257, %v1547
      %v1676 = vsel %vm1420, %v1260, %v1548
      %v1677 = vsel %vm1421, %v1265, %v1549
      %v1678 = vsel %vm1422, %v1268, %v1550
      %v1679 = vsel %vm1423, %v1273, %v1551
      %v1680 = vsel %vm1424, %v1276, %v1552
      %v1681 = vsel %vm1425, %v1281, %v1553
      %v1682 = vsel %vm1426, %v1284, %v1554
      %v1683 = vsel %vm1427, %v1289, %v1555
      %v1684 = vsel %vm1428, %v1292, %v1556
      %v1685 = vsel %vm1429, %v1297, %v1557
      %v1686 = vsel %vm1430, %v1300, %v1558
      %v1687 = vpack.c.bf16 %v1560, %v1559
      %v1688 = vpack.c.bf16 %v1562, %v1561
      %v1689 = vpack.c.bf16 %v1564, %v1563
      %v1690 = vpack.c.bf16 %v1566, %v1565
      %v1691 = vpack.c.bf16 %v1568, %v1567
      %v1692 = vpack.c.bf16 %v1570, %v1569
      %v1693 = vpack.c.bf16 %v1572, %v1571
      %v1694 = vpack.c.bf16 %v1574, %v1573
      %v1695 = vpack.c.bf16 %v1576, %v1575
      %v1696 = vpack.c.bf16 %v1578, %v1577
      %v1697 = vpack.c.bf16 %v1580, %v1579
      %v1698 = vpack.c.bf16 %v1582, %v1581
      %v1699 = vpack.c.bf16 %v1584, %v1583
      %v1700 = vpack.c.bf16 %v1586, %v1585
      %v1701 = vpack.c.bf16 %v1588, %v1587
      %v1702 = vpack.c.bf16 %v1590, %v1589
      %v1703 = vpack.c.bf16 %v1592, %v1591
      %v1704 = vpack.c.bf16 %v1594, %v1593
      %v1705 = vpack.c.bf16 %v1596, %v1595
      %v1706 = vpack.c.bf16 %v1598, %v1597
      %v1707 = vpack.c.bf16 %v1600, %v1599
      %v1708 = vpack.c.bf16 %v1602, %v1601
      %v1709 = vpack.c.bf16 %v1604, %v1603
      %v1710 = vpack.c.bf16 %v1606, %v1605
      %v1711 = vpack.c.bf16 %v1608, %v1607
      %v1712 = vpack.c.bf16 %v1610, %v1609
      %v1713 = vpack.c.bf16 %v1612, %v1611
      %v1714 = vpack.c.bf16 %v1614, %v1613
      %v1715 = vpack.c.bf16 %v1616, %v1615
      %v1716 = vpack.c.bf16 %v1618, %v1617
      %v1717 = vpack.c.bf16 %v1620, %v1619
      %v1718 = vpack.c.bf16 %v1622, %v1621
      %v1719 = vpack.c.bf16 %v1624, %v1623
      %v1720 = vpack.c.bf16 %v1626, %v1625
      %v1721 = vpack.c.bf16 %v1628, %v1627
      %v1722 = vpack.c.bf16 %v1630, %v1629
      %v1723 = vpack.c.bf16 %v1632, %v1631
      %v1724 = vpack.c.bf16 %v1634, %v1633
      %v1725 = vpack.c.bf16 %v1636, %v1635
      %v1726 = vpack.c.bf16 %v1638, %v1637
      %v1727 = vpack.c.bf16 %v1640, %v1639
      %v1728 = vpack.c.bf16 %v1642, %v1641
      %v1729 = vpack.c.bf16 %v1644, %v1643
      %v1730 = vpack.c.bf16 %v1646, %v1645
      %v1731 = vpack.c.bf16 %v1648, %v1647
      %v1732 = vpack.c.bf16 %v1650, %v1649
      %v1733 = vpack.c.bf16 %v1652, %v1651
      %v1734 = vpack.c.bf16 %v1654, %v1653
      %v1735 = vpack.c.bf16 %v1656, %v1655
      %v1736 = vpack.c.bf16 %v1658, %v1657
      %v1737 = vpack.c.bf16 %v1660, %v1659
      %v1738 = vpack.c.bf16 %v1662, %v1661
      %v1739 = vpack.c.bf16 %v1664, %v1663
      %v1740 = vpack.c.bf16 %v1666, %v1665
      %v1741 = vpack.c.bf16 %v1668, %v1667
      %v1742 = vpack.c.bf16 %v1670, %v1669
      %v1743 = vpack.c.bf16 %v1672, %v1671
      %v1744 = vpack.c.bf16 %v1674, %v1673
      %v1745 = vpack.c.bf16 %v1676, %v1675
      %v1746 = vpack.c.bf16 %v1678, %v1677
      %v1747 = vpack.c.bf16 %v1680, %v1679
      %v1748 = vpack.c.bf16 %v1682, %v1681
      %v1749 = vpack.c.bf16 %v1684, %v1683
      %v1750 = vpack.c.bf16 %v1686, %v1685
      %v1815 = vunpack.c.l.b16 %v1687
      %v1816 = vunpack.c.h.b16 %v1687
      %v1817 = vunpack.c.l.b16 %v1688
      %v1818 = vunpack.c.h.b16 %v1688
      %v1819 = vunpack.c.l.b16 %v1689
      %v1820 = vunpack.c.h.b16 %v1689
      %v1821 = vunpack.c.l.b16 %v1690
      %v1822 = vunpack.c.h.b16 %v1690
      %v1823 = vunpack.c.l.b16 %v1691
      %v1824 = vunpack.c.h.b16 %v1691
      %v1825 = vunpack.c.l.b16 %v1692
      %v1826 = vunpack.c.h.b16 %v1692
      %v1827 = vunpack.c.l.b16 %v1693
      %v1828 = vunpack.c.h.b16 %v1693
      %v1829 = vunpack.c.l.b16 %v1694
      %v1830 = vunpack.c.h.b16 %v1694
      %v1831 = vunpack.c.l.b16 %v1695
      %v1832 = vunpack.c.h.b16 %v1695
      %v1833 = vunpack.c.l.b16 %v1696
      %v1834 = vunpack.c.h.b16 %v1696
      %v1835 = vunpack.c.l.b16 %v1697
      %v1836 = vunpack.c.h.b16 %v1697
      %v1837 = vunpack.c.l.b16 %v1698
      %v1838 = vunpack.c.h.b16 %v1698
      %v1839 = vunpack.c.l.b16 %v1699
      %v1840 = vunpack.c.h.b16 %v1699
      %v1841 = vunpack.c.l.b16 %v1700
      %v1842 = vunpack.c.h.b16 %v1700
      %v1843 = vunpack.c.l.b16 %v1701
      %v1844 = vunpack.c.h.b16 %v1701
      %v1845 = vunpack.c.l.b16 %v1702
      %v1846 = vunpack.c.h.b16 %v1702
      %v1847 = vunpack.c.l.b16 %v1703
      %v1848 = vunpack.c.h.b16 %v1703
      %v1849 = vunpack.c.l.b16 %v1704
      %v1850 = vunpack.c.h.b16 %v1704
      %v1851 = vunpack.c.l.b16 %v1705
      %v1852 = vunpack.c.h.b16 %v1705
      %v1853 = vunpack.c.l.b16 %v1706
      %v1854 = vunpack.c.h.b16 %v1706
      %v1855 = vunpack.c.l.b16 %v1707
      %v1856 = vunpack.c.h.b16 %v1707
      %v1857 = vunpack.c.l.b16 %v1708
      %v1858 = vunpack.c.h.b16 %v1708
      %v1859 = vunpack.c.l.b16 %v1709
      %v1860 = vunpack.c.h.b16 %v1709
      %v1861 = vunpack.c.l.b16 %v1710
      %v1862 = vunpack.c.h.b16 %v1710
      %v1863 = vunpack.c.l.b16 %v1711
      %v1864 = vunpack.c.h.b16 %v1711
      %v1865 = vunpack.c.l.b16 %v1712
      %v1866 = vunpack.c.h.b16 %v1712
      %v1867 = vunpack.c.l.b16 %v1713
      %v1868 = vunpack.c.h.b16 %v1713
      %v1869 = vunpack.c.l.b16 %v1714
      %v1870 = vunpack.c.h.b16 %v1714
      %v1871 = vunpack.c.l.b16 %v1715
      %v1872 = vunpack.c.h.b16 %v1715
      %v1873 = vunpack.c.l.b16 %v1716
      %v1874 = vunpack.c.h.b16 %v1716
      %v1875 = vunpack.c.l.b16 %v1717
      %v1876 = vunpack.c.h.b16 %v1717
      %v1877 = vunpack.c.l.b16 %v1718
      %v1878 = vunpack.c.h.b16 %v1718
      %v1879 = vunpack.c.l.b16 %v1719
      %v1880 = vunpack.c.h.b16 %v1719
      %v1881 = vunpack.c.l.b16 %v1720
      %v1882 = vunpack.c.h.b16 %v1720
      %v1883 = vunpack.c.l.b16 %v1721
      %v1884 = vunpack.c.h.b16 %v1721
      %v1885 = vunpack.c.l.b16 %v1722
      %v1886 = vunpack.c.h.b16 %v1722
      %v1887 = vunpack.c.l.b16 %v1723
      %v1888 = vunpack.c.h.b16 %v1723
      %v1889 = vunpack.c.l.b16 %v1724
      %v1890 = vunpack.c.h.b16 %v1724
      %v1891 = vunpack.c.l.b16 %v1725
      %v1892 = vunpack.c.h.b16 %v1725
      %v1893 = vunpack.c.l.b16 %v1726
      %v1894 = vunpack.c.h.b16 %v1726
      %v1895 = vunpack.c.l.b16 %v1727
      %v1896 = vunpack.c.h.b16 %v1727
      %v1897 = vunpack.c.l.b16 %v1728
      %v1898 = vunpack.c.h.b16 %v1728
      %v1899 = vunpack.c.l.b16 %v1729
      %v1900 = vunpack.c.h.b16 %v1729
      %v1901 = vunpack.c.l.b16 %v1730
      %v1902 = vunpack.c.h.b16 %v1730
      %v1903 = vunpack.c.l.b16 %v1731
      %v1904 = vunpack.c.h.b16 %v1731
      %v1905 = vunpack.c.l.b16 %v1732
      %v1906 = vunpack.c.h.b16 %v1732
      %v1907 = vunpack.c.l.b16 %v1733
      %v1908 = vunpack.c.h.b16 %v1733
      %v1909 = vunpack.c.l.b16 %v1734
      %v1910 = vunpack.c.h.b16 %v1734
      %v1911 = vunpack.c.l.b16 %v1735
      %v1912 = vunpack.c.h.b16 %v1735
      %v1913 = vunpack.c.l.b16 %v1736
      %v1914 = vunpack.c.h.b16 %v1736
      %v1915 = vunpack.c.l.b16 %v1737
      %v1916 = vunpack.c.h.b16 %v1737
      %v1917 = vunpack.c.l.b16 %v1738
      %v1918 = vunpack.c.h.b16 %v1738
      %v1919 = vunpack.c.l.b16 %v1739
      %v1920 = vunpack.c.h.b16 %v1739
      %v1921 = vunpack.c.l.b16 %v1740
      %v1922 = vunpack.c.h.b16 %v1740
      %v1923 = vunpack.c.l.b16 %v1741
      %v1924 = vunpack.c.h.b16 %v1741
      %v1925 = vunpack.c.l.b16 %v1742
      %v1926 = vunpack.c.h.b16 %v1742
      %v1927 = vunpack.c.l.b16 %v1743
      %v1928 = vunpack.c.h.b16 %v1743
      %v1929 = vunpack.c.l.b16 %v1744
      %v1930 = vunpack.c.h.b16 %v1744
      %v1931 = vunpack.c.l.b16 %v1745
      %v1932 = vunpack.c.h.b16 %v1745
      %v1933 = vunpack.c.l.b16 %v1746
      %v1934 = vunpack.c.h.b16 %v1746
      %v1935 = vunpack.c.l.b16 %v1747
      %v1936 = vunpack.c.h.b16 %v1747
      %v1937 = vunpack.c.l.b16 %v1748
      %v1938 = vunpack.c.h.b16 %v1748
      %v1939 = vunpack.c.l.b16 %v1749
      %v1940 = vunpack.c.h.b16 %v1749
      %v1941 = vunpack.c.l.b16 %v1750
      %v1942 = vunpack.c.h.b16 %v1750
      %v1943 = vpack.c.b16 %v1815, %v1815
      %v1944 = vpack.c.b16 %v1816, %v1816
      %v1945 = vpack.c.b16 %v1817, %v1817
      %v1946 = vpack.c.b16 %v1818, %v1818
      %v1947 = vpack.c.b16 %v1819, %v1819
      %v1948 = vpack.c.b16 %v1820, %v1820
      %v1949 = vpack.c.b16 %v1821, %v1821
      %v1950 = vpack.c.b16 %v1822, %v1822
      %v1951 = vpack.c.b16 %v1823, %v1823
      %v1952 = vpack.c.b16 %v1824, %v1824
      %v1953 = vpack.c.b16 %v1825, %v1825
      %v1954 = vpack.c.b16 %v1826, %v1826
      %v1955 = vpack.c.b16 %v1827, %v1827
      %v1956 = vpack.c.b16 %v1828, %v1828
      %v1957 = vpack.c.b16 %v1829, %v1829
      %v1958 = vpack.c.b16 %v1830, %v1830
      %v1959 = vpack.c.b16 %v1831, %v1831
      %v1960 = vpack.c.b16 %v1832, %v1832
      %v1961 = vpack.c.b16 %v1833, %v1833
      %v1962 = vpack.c.b16 %v1834, %v1834
      %v1963 = vpack.c.b16 %v1835, %v1835
      %v1964 = vpack.c.b16 %v1836, %v1836
      %v1965 = vpack.c.b16 %v1837, %v1837
      %v1966 = vpack.c.b16 %v1838, %v1838
      %v1967 = vpack.c.b16 %v1839, %v1839
      %v1968 = vpack.c.b16 %v1840, %v1840
      %v1969 = vpack.c.b16 %v1841, %v1841
      %v1970 = vpack.c.b16 %v1842, %v1842
      %v1971 = vpack.c.b16 %v1843, %v1843
      %v1972 = vpack.c.b16 %v1844, %v1844
      %v1973 = vpack.c.b16 %v1845, %v1845
      %v1974 = vpack.c.b16 %v1846, %v1846
      %v1975 = vpack.c.b16 %v1847, %v1847
      %v1976 = vpack.c.b16 %v1848, %v1848
      %v1977 = vpack.c.b16 %v1849, %v1849
      %v1978 = vpack.c.b16 %v1850, %v1850
      %v1979 = vpack.c.b16 %v1851, %v1851
      %v1980 = vpack.c.b16 %v1852, %v1852
      %v1981 = vpack.c.b16 %v1853, %v1853
      %v1982 = vpack.c.b16 %v1854, %v1854
      %v1983 = vpack.c.b16 %v1855, %v1855
      %v1984 = vpack.c.b16 %v1856, %v1856
      %v1985 = vpack.c.b16 %v1857, %v1857
      %v1986 = vpack.c.b16 %v1858, %v1858
      %v1987 = vpack.c.b16 %v1859, %v1859
      %v1988 = vpack.c.b16 %v1860, %v1860
      %v1989 = vpack.c.b16 %v1861, %v1861
      %v1990 = vpack.c.b16 %v1862, %v1862
      %v1991 = vpack.c.b16 %v1863, %v1863
      %v1992 = vpack.c.b16 %v1864, %v1864
      %v1993 = vpack.c.b16 %v1865, %v1865
      %v1994 = vpack.c.b16 %v1866, %v1866
      %v1995 = vpack.c.b16 %v1867, %v1867
      %v1996 = vpack.c.b16 %v1868, %v1868
      %v1997 = vpack.c.b16 %v1869, %v1869
      %v1998 = vpack.c.b16 %v1870, %v1870
      %v1999 = vpack.c.b16 %v1871, %v1871
      %v2000 = vpack.c.b16 %v1872, %v1872
      %v2001 = vpack.c.b16 %v1873, %v1873
      %v2002 = vpack.c.b16 %v1874, %v1874
      %v2003 = vpack.c.b16 %v1875, %v1875
      %v2004 = vpack.c.b16 %v1876, %v1876
      %v2005 = vpack.c.b16 %v1877, %v1877
      %v2006 = vpack.c.b16 %v1878, %v1878
      %v2007 = vpack.c.b16 %v1879, %v1879
      %v2008 = vpack.c.b16 %v1880, %v1880
      %v2009 = vpack.c.b16 %v1881, %v1881
      %v2010 = vpack.c.b16 %v1882, %v1882
      %v2011 = vpack.c.b16 %v1883, %v1883
      %v2012 = vpack.c.b16 %v1884, %v1884
      %v2013 = vpack.c.b16 %v1885, %v1885
      %v2014 = vpack.c.b16 %v1886, %v1886
      %v2015 = vpack.c.b16 %v1887, %v1887
      %v2016 = vpack.c.b16 %v1888, %v1888
      %v2017 = vpack.c.b16 %v1889, %v1889
      %v2018 = vpack.c.b16 %v1890, %v1890
      %v2019 = vpack.c.b16 %v1891, %v1891
      %v2020 = vpack.c.b16 %v1892, %v1892
      %v2021 = vpack.c.b16 %v1893, %v1893
      %v2022 = vpack.c.b16 %v1894, %v1894
      %v2023 = vpack.c.b16 %v1895, %v1895
      %v2024 = vpack.c.b16 %v1896, %v1896
      %v2025 = vpack.c.b16 %v1897, %v1897
      %v2026 = vpack.c.b16 %v1898, %v1898
      %v2027 = vpack.c.b16 %v1899, %v1899
      %v2028 = vpack.c.b16 %v1900, %v1900
      %v2029 = vpack.c.b16 %v1901, %v1901
      %v2030 = vpack.c.b16 %v1902, %v1902
      %v2031 = vpack.c.b16 %v1903, %v1903
      %v2032 = vpack.c.b16 %v1904, %v1904
      %v2033 = vpack.c.b16 %v1905, %v1905
      %v2034 = vpack.c.b16 %v1906, %v1906
      %v2035 = vpack.c.b16 %v1907, %v1907
      %v2036 = vpack.c.b16 %v1908, %v1908
      %v2037 = vpack.c.b16 %v1909, %v1909
      %v2038 = vpack.c.b16 %v1910, %v1910
      %v2039 = vpack.c.b16 %v1911, %v1911
      %v2040 = vpack.c.b16 %v1912, %v1912
      %v2041 = vpack.c.b16 %v1913, %v1913
      %v2042 = vpack.c.b16 %v1914, %v1914
      %v2043 = vpack.c.b16 %v1915, %v1915
      %v2044 = vpack.c.b16 %v1916, %v1916
      %v2045 = vpack.c.b16 %v1917, %v1917
      %v2046 = vpack.c.b16 %v1918, %v1918
      %v2047 = vpack.c.b16 %v1919, %v1919
      %v2048 = vpack.c.b16 %v1920, %v1920
      %v2049 = vpack.c.b16 %v1921, %v1921
      %v2050 = vpack.c.b16 %v1922, %v1922
      %v2051 = vpack.c.b16 %v1923, %v1923
      %v2052 = vpack.c.b16 %v1924, %v1924
      %v2053 = vpack.c.b16 %v1925, %v1925
      %v2054 = vpack.c.b16 %v1926, %v1926
      %v2055 = vpack.c.b16 %v1927, %v1927
      %v2056 = vpack.c.b16 %v1928, %v1928
      %v2057 = vpack.c.b16 %v1929, %v1929
      %v2058 = vpack.c.b16 %v1930, %v1930
      %v2059 = vpack.c.b16 %v1931, %v1931
      %v2060 = vpack.c.b16 %v1932, %v1932
      %v2061 = vpack.c.b16 %v1933, %v1933
      %v2062 = vpack.c.b16 %v1934, %v1934
      %v2063 = vpack.c.b16 %v1935, %v1935
      %v2064 = vpack.c.b16 %v1936, %v1936
      %v2065 = vpack.c.b16 %v1937, %v1937
      %v2066 = vpack.c.b16 %v1938, %v1938
      %v2067 = vpack.c.b16 %v1939, %v1939
      %v2068 = vpack.c.b16 %v1940, %v1940
      %v2069 = vpack.c.b16 %v1941, %v1941
      %v2070 = vpack.c.b16 %v1942, %v1942
      %2199 = vst [vmem:[%s172] sm:$0xf] %v1943
      %2200 = vst [vmem:[%s172 + $0x4] sm:$0xf] %v1944
      %2201 = vst [vmem:[%s172 + $0x8] sm:$0xf] %v1945
      %2202 = vst [vmem:[%s172 + $0xc] sm:$0xf] %v1946
      %2203 = vst [vmem:[%s172 + $0x10] sm:$0xf] %v1947
      %2204 = vst [vmem:[%s172 + $0x14] sm:$0xf] %v1948
      %2205 = vst [vmem:[%s172 + $0x18] sm:$0xf] %v1949
      %2206 = vst [vmem:[%s172 + $0x1c] sm:$0xf] %v1950
      %2207 = vst [vmem:[%s172 + $0x20] sm:$0xf] %v1951
      %2208 = vst [vmem:[%s172 + $0x24] sm:$0xf] %v1952
      %2209 = vst [vmem:[%s172 + $0x28] sm:$0xf] %v1953
      %2210 = vst [vmem:[%s172 + $0x2c] sm:$0xf] %v1954
      %2211 = vst [vmem:[%s172 + $0x30] sm:$0xf] %v1955
      %2212 = vst [vmem:[%s172 + $0x34] sm:$0xf] %v1956
      %2213 = vst [vmem:[%s172 + $0x38] sm:$0xf] %v1957
      %2214 = vst [vmem:[%s172 + $0x3c] sm:$0xf] %v1958
      %2215 = vst [vmem:[%s172 + $0x40] sm:$0xf] %v1959
      %2216 = vst [vmem:[%s172 + $0x44] sm:$0xf] %v1960
      %2217 = vst [vmem:[%s172 + $0x48] sm:$0xf] %v1961
      %2218 = vst [vmem:[%s172 + $0x4c] sm:$0xf] %v1962
      %2219 = vst [vmem:[%s172 + $0x50] sm:$0xf] %v1963
      %2220 = vst [vmem:[%s172 + $0x54] sm:$0xf] %v1964
      %2221 = vst [vmem:[%s172 + $0x58] sm:$0xf] %v1965
      %2222 = vst [vmem:[%s172 + $0x5c] sm:$0xf] %v1966
      %2223 = vst [vmem:[%s172 + $0x60] sm:$0xf] %v1967
      %2224 = vst [vmem:[%s172 + $0x64] sm:$0xf] %v1968
      %2225 = vst [vmem:[%s172 + $0x68] sm:$0xf] %v1969
      %2226 = vst [vmem:[%s172 + $0x6c] sm:$0xf] %v1970
      %2227 = vst [vmem:[%s172 + $0x70] sm:$0xf] %v1971
      %2228 = vst [vmem:[%s172 + $0x74] sm:$0xf] %v1972
      %2229 = vst [vmem:[%s172 + $0x78] sm:$0xf] %v1973
      %2230 = vst [vmem:[%s172 + $0x7c] sm:$0xf] %v1974
      %2231 = vst [vmem:[%s172 + $0x80] sm:$0xf] %v1975
      %2232 = vst [vmem:[%s172 + $0x84] sm:$0xf] %v1976
      %2233 = vst [vmem:[%s172 + $0x88] sm:$0xf] %v1977
      %2234 = vst [vmem:[%s172 + $0x8c] sm:$0xf] %v1978
      %2235 = vst [vmem:[%s172 + $0x90] sm:$0xf] %v1979
      %2236 = vst [vmem:[%s172 + $0x94] sm:$0xf] %v1980
      %2237 = vst [vmem:[%s172 + $0x98] sm:$0xf] %v1981
      %2238 = vst [vmem:[%s172 + $0x9c] sm:$0xf] %v1982
      %2239 = vst [vmem:[%s172 + $0xa0] sm:$0xf] %v1983
      %2240 = vst [vmem:[%s172 + $0xa4] sm:$0xf] %v1984
      %2241 = vst [vmem:[%s172 + $0xa8] sm:$0xf] %v1985
      %2242 = vst [vmem:[%s172 + $0xac] sm:$0xf] %v1986
      %2243 = vst [vmem:[%s172 + $0xb0] sm:$0xf] %v1987
      %2244 = vst [vmem:[%s172 + $0xb4] sm:$0xf] %v1988
      %2245 = vst [vmem:[%s172 + $0xb8] sm:$0xf] %v1989
      %2246 = vst [vmem:[%s172 + $0xbc] sm:$0xf] %v1990
      %2247 = vst [vmem:[%s172 + $0xc0] sm:$0xf] %v1991
      %2248 = vst [vmem:[%s172 + $0xc4] sm:$0xf] %v1992
      %2249 = vst [vmem:[%s172 + $0xc8] sm:$0xf] %v1993
      %2250 = vst [vmem:[%s172 + $0xcc] sm:$0xf] %v1994
      %2251 = vst [vmem:[%s172 + $0xd0] sm:$0xf] %v1995
      %2252 = vst [vmem:[%s172 + $0xd4] sm:$0xf] %v1996
      %2253 = vst [vmem:[%s172 + $0xd8] sm:$0xf] %v1997
      %2254 = vst [vmem:[%s172 + $0xdc] sm:$0xf] %v1998
      %2255 = vst [vmem:[%s172 + $0xe0] sm:$0xf] %v1999
      %2256 = vst [vmem:[%s172 + $0xe4] sm:$0xf] %v2000
      %2257 = vst [vmem:[%s172 + $0xe8] sm:$0xf] %v2001
      %2258 = vst [vmem:[%s172 + $0xec] sm:$0xf] %v2002
      %2259 = vst [vmem:[%s172 + $0xf0] sm:$0xf] %v2003
      %2260 = vst [vmem:[%s172 + $0xf4] sm:$0xf] %v2004
      %2261 = vst [vmem:[%s172 + $0xf8] sm:$0xf] %v2005
      %2262 = vst [vmem:[%s172 + $0xfc] sm:$0xf] %v2006
      %2263 = vst [vmem:[%s172 + $0x100] sm:$0xf] %v2007
      %2264 = vst [vmem:[%s172 + $0x104] sm:$0xf] %v2008
      %2265 = vst [vmem:[%s172 + $0x108] sm:$0xf] %v2009
      %2266 = vst [vmem:[%s172 + $0x10c] sm:$0xf] %v2010
      %2267 = vst [vmem:[%s172 + $0x110] sm:$0xf] %v2011
      %2268 = vst [vmem:[%s172 + $0x114] sm:$0xf] %v2012
      %2269 = vst [vmem:[%s172 + $0x118] sm:$0xf] %v2013
      %2270 = vst [vmem:[%s172 + $0x11c] sm:$0xf] %v2014
      %2271 = vst [vmem:[%s172 + $0x120] sm:$0xf] %v2015
      %2272 = vst [vmem:[%s172 + $0x124] sm:$0xf] %v2016
      %2273 = vst [vmem:[%s172 + $0x128] sm:$0xf] %v2017
      %2274 = vst [vmem:[%s172 + $0x12c] sm:$0xf] %v2018
      %2275 = vst [vmem:[%s172 + $0x130] sm:$0xf] %v2019
      %2276 = vst [vmem:[%s172 + $0x134] sm:$0xf] %v2020
      %2277 = vst [vmem:[%s172 + $0x138] sm:$0xf] %v2021
      %2278 = vst [vmem:[%s172 + $0x13c] sm:$0xf] %v2022
      %2279 = vst [vmem:[%s172 + $0x140] sm:$0xf] %v2023
      %2280 = vst [vmem:[%s172 + $0x144] sm:$0xf] %v2024
      %2281 = vst [vmem:[%s172 + $0x148] sm:$0xf] %v2025
      %2282 = vst [vmem:[%s172 + $0x14c] sm:$0xf] %v2026
      %2283 = vst [vmem:[%s172 + $0x150] sm:$0xf] %v2027
      %2284 = vst [vmem:[%s172 + $0x154] sm:$0xf] %v2028
      %2285 = vst [vmem:[%s172 + $0x158] sm:$0xf] %v2029
      %2286 = vst [vmem:[%s172 + $0x15c] sm:$0xf] %v2030
      %2287 = vst [vmem:[%s172 + $0x160] sm:$0xf] %v2031
      %2288 = vst [vmem:[%s172 + $0x164] sm:$0xf] %v2032
      %2289 = vst [vmem:[%s172 + $0x168] sm:$0xf] %v2033
      %2290 = vst [vmem:[%s172 + $0x16c] sm:$0xf] %v2034
      %2291 = vst [vmem:[%s172 + $0x170] sm:$0xf] %v2035
      %2292 = vst [vmem:[%s172 + $0x174] sm:$0xf] %v2036
      %2293 = vst [vmem:[%s172 + $0x178] sm:$0xf] %v2037
      %2294 = vst [vmem:[%s172 + $0x17c] sm:$0xf] %v2038
      %2295 = vst [vmem:[%s172 + $0x180] sm:$0xf] %v2039
      %2296 = vst [vmem:[%s172 + $0x184] sm:$0xf] %v2040
      %2297 = vst [vmem:[%s172 + $0x188] sm:$0xf] %v2041
      %2298 = vst [vmem:[%s172 + $0x18c] sm:$0xf] %v2042
      %2299 = vst [vmem:[%s172 + $0x190] sm:$0xf] %v2043
      %2300 = vst [vmem:[%s172 + $0x194] sm:$0xf] %v2044
      %2301 = vst [vmem:[%s172 + $0x198] sm:$0xf] %v2045
      %2302 = vst [vmem:[%s172 + $0x19c] sm:$0xf] %v2046
      %2303 = vst [vmem:[%s172 + $0x1a0] sm:$0xf] %v2047
      %2304 = vst [vmem:[%s172 + $0x1a4] sm:$0xf] %v2048
      %2305 = vst [vmem:[%s172 + $0x1a8] sm:$0xf] %v2049
      %2306 = vst [vmem:[%s172 + $0x1ac] sm:$0xf] %v2050
      %2307 = vst [vmem:[%s172 + $0x1b0] sm:$0xf] %v2051
      %2308 = vst [vmem:[%s172 + $0x1b4] sm:$0xf] %v2052
      %2309 = vst [vmem:[%s172 + $0x1b8] sm:$0xf] %v2053
      %2310 = vst [vmem:[%s172 + $0x1bc] sm:$0xf] %v2054
      %2311 = vst [vmem:[%s172 + $0x1c0] sm:$0xf] %v2055
      %2312 = vst [vmem:[%s172 + $0x1c4] sm:$0xf] %v2056
      %2313 = vst [vmem:[%s172 + $0x1c8] sm:$0xf] %v2057
      %2314 = vst [vmem:[%s172 + $0x1cc] sm:$0xf] %v2058
      %2315 = vst [vmem:[%s172 + $0x1d0] sm:$0xf] %v2059
      %2316 = vst [vmem:[%s172 + $0x1d4] sm:$0xf] %v2060
      %2317 = vst [vmem:[%s172 + $0x1d8] sm:$0xf] %v2061
      %2318 = vst [vmem:[%s172 + $0x1dc] sm:$0xf] %v2062
      %2319 = vst [vmem:[%s172 + $0x1e0] sm:$0xf] %v2063
      %2320 = vst [vmem:[%s172 + $0x1e4] sm:$0xf] %v2064
      %2321 = vst [vmem:[%s172 + $0x1e8] sm:$0xf] %v2065
      %2322 = vst [vmem:[%s172 + $0x1ec] sm:$0xf] %v2066
      %2323 = vst [vmem:[%s172 + $0x1f0] sm:$0xf] %v2067
      %2324 = vst [vmem:[%s172 + $0x1f4] sm:$0xf] %v2068
      %2325 = vst [vmem:[%s172 + $0x1f8] sm:$0xf] %v2069
      %2326 = vst [vmem:[%s172 + $0x1fc] sm:$0xf] %v2070
      %s2327 = smul.u32 128, %s14
      %p2328 = scmp.lt.s32.totalorder %s2327, 255
      %s2329 = scalar_select %p2328, %s2327, 255
      %s2330 = smul.addr %s2329, 4
      %s2331 = scalar_lea.vmem %s3, %s2330
      // Predicated region
      $region33: #{wasserstein_critic_forward.4} parent=31 // pred_check
        %p2332 = pneg %p100
      $region34: #{wasserstein_critic_forward.4} parent=31 // pred_check_branch
        %2334 = sbr.rel (%p2332) target = $region36
      $region35: #{wasserstein_critic_forward.4} parent=31 // pred_region
        %s2335 = smul.u32 128, %s14
      $region36: #{wasserstein_critic_forward.4} parent=31 // pred_fallthru
        _
    $region32: #{wasserstein_critic_forward.4} parent=5 // pred_fallthru
      _
    %p2336 = scmp.le.s32.totalorder 2, %s9
    // Predicated region
    $region37: #{wasserstein_critic_forward.4} parent=5 // pred_check
      %p2337 = pneg %p2336
    $region38: #{wasserstein_critic_forward.4} parent=5 // pred_check_branch
      %2339 = sbr.rel (%p2337) target = $region40
    $region39: #{wasserstein_critic_forward.4} parent=5 // pred_region
      %s2340 = ssub.s32 %s9, 2
      // Predicated region
      $region41: #{wasserstein_critic_forward.4} parent=39 // pred_check
        %p2341 = pneg %p106
      $region42: #{wasserstein_critic_forward.4} parent=39 // pred_check_branch
        %2343 = sbr.rel (%p2341) target = $region44
      $region43: #{wasserstein_critic_forward.4} parent=39 // pred_region
        %s2344 = smul.u32 128, %s15
        %p2345 = scmp.lt.s32.totalorder %s2344, 255
        %s2346 = scalar_select %p2345, %s2344, 255
        %s2347 = smul.addr %s2346, 4
        %s2348 = scalar_lea.vmem %s3, %s2347
      $region44: #{wasserstein_critic_forward.4} parent=39 // pred_fallthru
        _
    $region40: #{wasserstein_critic_forward.4} parent=5 // pred_fallthru
      _
  $region6: #{wasserstein_critic_forward.4} parent=0 // loop_footer
    %s13 = sadd.s32 1, %s9
  $region7: #{wasserstein_critic_forward.4} parent=0 // loop_footer_branch
    %8 = sbr.rel target = $region3
  $region8: #{wasserstein_critic_forward.4} parent=0 // loop_exit
    _

// kernel: wasserstein_critic_forward.5
$region0: #{wasserstein_critic_forward.5}
  #allocation0 [shape = 'u32[]', space=smem, size = 0x4, offset = 0x4, fixed_abs, tag = 'smem constant byte address 0x4 - core index']
  #allocation1 [shape = 'u32[144,128]{1,0:T(1,128)}', space=vmem, size = 0x12000, scoped, tag = 'internal scratch']
  %s0 = inlined_call_operand.vmem [shape: bf16[2,256,128], index: 0, kind: input, shape index: {}]
  %s1 = inlined_call_operand.vmem [shape: bf16[128,128], index: 1, kind: input, shape index: {}]
  %s2 = inlined_call_operand.vmem [shape: f32[1,128], index: 2, kind: input, shape index: {}]
  %s3 = inlined_call_operand.vmem [shape: f32[1,128], index: 3, kind: input, shape index: {}]
  %s4 = inlined_call_operand.vmem [shape: bf16[2,256,128], index: 4, kind: output, shape index: {}]
  %s5 = sld [smem:[#allocation0]]
  $region49: #{wasserstein_critic_forward.5} parent=0
    _
  %s7 = ssub.s32 1, %s5
  %s8 = scalar_select 0, %s7, %s5
  loop: start=0, step=1, limit=4
  $region2: #{wasserstein_critic_forward.5} parent=0 // loop_pre_header
    _
  $region3: #{wasserstein_critic_forward.5} parent=0 // loop_header
    %s10 = sphi 0, %s14
    %p11 = scmp.ge.s32.totalorder %s10, 4
    %s20 = sphi 0, %s22
    %s23 = sphi 0, %s20
    %s24 = sphi 0, %s23
    %s40 = sphi 0, %s24
    %s44 = sphi 0, %s44
    %s46 = sphi 0, %s44
    %s47 = sphi 0, %s46
    %s61 = sphi 0, %s47
    %s65 = sphi 0, %s65
    %s67 = sphi 0, %s65
    %s68 = sphi 0, %s67
    %s82 = sphi 0, %s68
    %s86 = sphi 0, %s86
    %s88 = sphi 0, %s86
    %s89 = sphi 0, %s88
    %s103 = sphi 0, %s89
    %s109 = sphi 0, %s111
    %s112 = sphi 0, %s109
    %s113 = sphi 0, %s112
    %s129 = sphi 0, %s113
  $region4: #{wasserstein_critic_forward.5} parent=0 // loop_header_branch
    %13 = sbr.rel (%p11) target = $region8
  $region5: #{wasserstein_critic_forward.5} parent=0 // loop_body
    %s15 = ssub.s32 %s10, 1
    %s16 = ssub.s32 %s10, 2
    %s17 = sadd.s32 %s10, 1
    %s18 = ssub.s32 %s10, %s17
    %p19 = scmp.eq.s32.totalorder %s18, 0
    %s21 = sadd.s32 %s20, 1
    %s22 = scalar_select %p19, %s20, %s21
    %p25 = pneg %p19
    %p26 = scmp.eq.s32.totalorder %s10, 1
    %p27 = por %p25, %p26
    %p28 = scmp.ne.s32.totalorder %s20, %s23
    %p29 = scmp.eq.s32.totalorder %s10, 0
    %p30 = por %p28, %p29
    %p31 = scmp.ne.s32.totalorder %s20, %s23
    %p32 = scmp.eq.s32.totalorder %s15, 1
    %p33 = por %p31, %p32
    %p34 = scmp.ne.s32.totalorder %s23, %s24
    %p35 = scmp.eq.s32.totalorder %s15, 0
    %p36 = por %p34, %p35
    %p37 = scmp.ne.s32.totalorder %s23, %s24
    %p38 = scmp.eq.s32.totalorder %s16, 1
    %p39 = por %p37, %p38
    %p41 = scmp.ne.s32.totalorder %s24, %s40
    %p42 = scmp.eq.s32.totalorder %s16, 0
    %p43 = por %p41, %p42
    %s45 = sadd.s32 %s44, 1
    %p48 = scmp.eq.s32.totalorder %s10, 1
    %p49 = scmp.ne.s32.totalorder %s44, %s46
    %p50 = scmp.eq.s32.totalorder %s10, 0
    %p51 = por %p49, %p50
    %p52 = scmp.ne.s32.totalorder %s44, %s46
    %p53 = scmp.eq.s32.totalorder %s15, 1
    %p54 = por %p52, %p53
    %p55 = scmp.ne.s32.totalorder %s46, %s47
    %p56 = scmp.eq.s32.totalorder %s15, 0
    %p57 = por %p55, %p56
    %p58 = scmp.ne.s32.totalorder %s46, %s47
    %p59 = scmp.eq.s32.totalorder %s16, 1
    %p60 = por %p58, %p59
    %p62 = scmp.ne.s32.totalorder %s47, %s61
    %p63 = scmp.eq.s32.totalorder %s16, 0
    %p64 = por %p62, %p63
    %s66 = sadd.s32 %s65, 1
    %p69 = scmp.eq.s32.totalorder %s10, 1
    %p70 = scmp.ne.s32.totalorder %s65, %s67
    %p71 = scmp.eq.s32.totalorder %s10, 0
    %p72 = por %p70, %p71
    %p73 = scmp.ne.s32.totalorder %s65, %s67
    %p74 = scmp.eq.s32.totalorder %s15, 1
    %p75 = por %p73, %p74
    %p76 = scmp.ne.s32.totalorder %s67, %s68
    %p77 = scmp.eq.s32.totalorder %s15, 0
    %p78 = por %p76, %p77
    %p79 = scmp.ne.s32.totalorder %s67, %s68
    %p80 = scmp.eq.s32.totalorder %s16, 1
    %p81 = por %p79, %p80
    %p83 = scmp.ne.s32.totalorder %s68, %s82
    %p84 = scmp.eq.s32.totalorder %s16, 0
    %p85 = por %p83, %p84
    %s87 = sadd.s32 %s86, 1
    %p90 = scmp.eq.s32.totalorder %s10, 1
    %p91 = scmp.ne.s32.totalorder %s86, %s88
    %p92 = scmp.eq.s32.totalorder %s10, 0
    %p93 = por %p91, %p92
    %p94 = scmp.ne.s32.totalorder %s86, %s88
    %p95 = scmp.eq.s32.totalorder %s15, 1
    %p96 = por %p94, %p95
    %p97 = scmp.ne.s32.totalorder %s88, %s89
    %p98 = scmp.eq.s32.totalorder %s15, 0
    %p99 = por %p97, %p98
    %p100 = scmp.ne.s32.totalorder %s88, %s89
    %p101 = scmp.eq.s32.totalorder %s16, 1
    %p102 = por %p100, %p101
    %p104 = scmp.ne.s32.totalorder %s89, %s103
    %p105 = scmp.eq.s32.totalorder %s16, 0
    %p106 = por %p104, %p105
    %s107 = ssub.s32 %s10, %s17
    %p108 = scmp.eq.s32.totalorder %s107, 0
    %s110 = sadd.s32 %s109, 1
    %s111 = scalar_select %p108, %s109, %s110
    %p114 = pneg %p108
    %p115 = scmp.eq.s32.totalorder %s10, 1
    %p116 = por %p114, %p115
    %p117 = scmp.ne.s32.totalorder %s109, %s112
    %p118 = scmp.eq.s32.totalorder %s10, 0
    %p119 = por %p117, %p118
    %p120 = scmp.ne.s32.totalorder %s109, %s112
    %p121 = scmp.eq.s32.totalorder %s15, 1
    %p122 = por %p120, %p121
    %p123 = scmp.ne.s32.totalorder %s112, %s113
    %p124 = scmp.eq.s32.totalorder %s15, 0
    %p125 = por %p123, %p124
    %p126 = scmp.ne.s32.totalorder %s112, %s113
    %p127 = scmp.eq.s32.totalorder %s16, 1
    %p128 = por %p126, %p127
    %p130 = scmp.ne.s32.totalorder %s113, %s129
    %p131 = scmp.eq.s32.totalorder %s16, 0
    %p132 = por %p130, %p131
    %p133 = scmp.le.s32.totalorder 1, %s10
    %p134 = scmp.lt.s32.totalorder %s10, 3
    %p135 = pnand %p133, %p134
    %p136 = pneg %p135
    // Predicated region
    $region9: #{wasserstein_critic_forward.5} parent=5 // pred_check
      _
    $region10: #{wasserstein_critic_forward.5} parent=5 // pred_check_branch
      %138 = sbr.rel (%p135) target = $region12
    $region11: #{wasserstein_critic_forward.5} parent=5 // pred_region
      %s139 = ssub.s32 %s10, 1
      // Predicated region
      $region13: #{wasserstein_critic_forward.5} parent=11 // pred_check
        %p140 = pneg %p57
      $region14: #{wasserstein_critic_forward.5} parent=11 // pred_check_branch
        %142 = sbr.rel (%p140) target = $region16
      $region15: #{wasserstein_critic_forward.5} parent=11 // pred_region
        _
      $region16: #{wasserstein_critic_forward.5} parent=11 // pred_fallthru
        _
      // Predicated region
      $region17: #{wasserstein_critic_forward.5} parent=11 // pred_check
        %p143 = pneg %p78
      $region18: #{wasserstein_critic_forward.5} parent=11 // pred_check_branch
        %145 = sbr.rel (%p143) target = $region20
      $region19: #{wasserstein_critic_forward.5} parent=11 // pred_region
        _
      $region20: #{wasserstein_critic_forward.5} parent=11 // pred_fallthru
        _
      // Predicated region
      $region21: #{wasserstein_critic_forward.5} parent=11 // pred_check
        %p146 = pneg %p99
      $region22: #{wasserstein_critic_forward.5} parent=11 // pred_check_branch
        %148 = sbr.rel (%p146) target = $region24
      $region23: #{wasserstein_critic_forward.5} parent=11 // pred_region
        _
      $region24: #{wasserstein_critic_forward.5} parent=11 // pred_fallthru
        _
    $region12: #{wasserstein_critic_forward.5} parent=5 // pred_fallthru
      _
    %p149 = scmp.lt.s32.totalorder %s10, 2
    // Predicated region
    $region25: #{wasserstein_critic_forward.5} parent=5 // pred_check
      %p150 = pneg %p149
    $region26: #{wasserstein_critic_forward.5} parent=5 // pred_check_branch
      %152 = sbr.rel (%p150) target = $region28
    $region27: #{wasserstein_critic_forward.5} parent=5 // pred_region
      // Predicated region
      $region29: #{wasserstein_critic_forward.5} parent=27 // pred_check
        %p153 = pneg %p30
      $region30: #{wasserstein_critic_forward.5} parent=27 // pred_check_branch
        %155 = sbr.rel (%p153) target = $region32
      $region31: #{wasserstein_critic_forward.5} parent=27 // pred_region
        %p156 = scmp.lt.s32.totalorder %s10, 1
        %s157 = scalar_select %p156, %s10, 1
        %s158 = smul.addr %s157, 32
        %s159 = smul.addr %s158, 4
        %s160 = scalar_lea.vmem %s0, %s159
      $region32: #{wasserstein_critic_forward.5} parent=27 // pred_fallthru
        _
    $region28: #{wasserstein_critic_forward.5} parent=5 // pred_fallthru
      _
    %p161 = scmp.le.s32.totalorder 1, %s10
    %p162 = scmp.lt.s32.totalorder %s10, 3
    %p163 = pnand %p161, %p162
    %p164 = pneg %p163
    // Predicated region
    $region33: #{wasserstein_critic_forward.5} parent=5 // pred_check
      _
    $region34: #{wasserstein_critic_forward.5} parent=5 // pred_check_branch
      %166 = sbr.rel (%p163) target = $region36
    $region35: #{wasserstein_critic_forward.5} parent=5 // pred_region
      %s167 = ssub.s32 %s10, 1
      %p168 = scmp.lt.s32.totalorder %s15, 1
      %s169 = scalar_select %p168, %s15, 1
      %s170 = smul.addr %s169, 32
      %s171 = smul.addr %s170, 4
      %s172 = scalar_lea.vmem %s0, %s171
      %p173 = pneg %p36
      %p174 = pneg %p33
      %p175 = pneg %p57
      %p176 = pneg %p54
      %p177 = pneg %p78
      %p178 = pneg %p75
      %p179 = pneg %p99
      %p180 = pneg %p96
      %p181 = pneg %p125
      %p182 = pneg %p122
      %p183 = scmp.lt.s32.totalorder %s15, 1
      %s184 = scalar_select %p183, %s15, 1
      %s185 = smul.addr %s184, 32
      %s186 = smul.addr %s185, 4
      %s187 = scalar_lea.vmem %s4, %s186
      %p188 = scmp.lt.s32.totalorder %s15, 1
      %s189 = scalar_select %p188, %s15, 1
      %s190 = smul.addr %s189, 32
      %s191 = smul.addr %s190, 4
      %s192 = scalar_lea.vmem %s0, %s191
      %p193 = scmp.lt.s32.totalorder %s15, 1
      %s194 = scalar_select %p193, %s15, 1
      %s195 = smul.addr %s194, 32
      %s196 = smul.addr %s195, 4
      %s197 = scalar_lea.vmem %s4, %s196
      %v199 = vld [vmem:[%s192] sm:$0xf]
      %v200 = vld [vmem:[%s192 + $0x4] sm:$0xf]
      %v201 = vld [vmem:[%s192 + $0x8] sm:$0xf]
      %v202 = vld [vmem:[%s192 + $0xc] sm:$0xf]
      %v203 = vld [vmem:[%s192 + $0x10] sm:$0xf]
      %v204 = vld [vmem:[%s192 + $0x14] sm:$0xf]
      %v205 = vld [vmem:[%s192 + $0x18] sm:$0xf]
      %v206 = vld [vmem:[%s192 + $0x1c] sm:$0xf]
      %v207 = vld [vmem:[%s192 + $0x20] sm:$0xf]
      %v208 = vld [vmem:[%s192 + $0x24] sm:$0xf]
      %v209 = vld [vmem:[%s192 + $0x28] sm:$0xf]
      %v210 = vld [vmem:[%s192 + $0x2c] sm:$0xf]
      %v211 = vld [vmem:[%s192 + $0x30] sm:$0xf]
      %v212 = vld [vmem:[%s192 + $0x34] sm:$0xf]
      %v213 = vld [vmem:[%s192 + $0x38] sm:$0xf]
      %v214 = vld [vmem:[%s192 + $0x3c] sm:$0xf]
      %v215 = vld [vmem:[%s192 + $0x40] sm:$0xf]
      %v216 = vld [vmem:[%s192 + $0x44] sm:$0xf]
      %v217 = vld [vmem:[%s192 + $0x48] sm:$0xf]
      %v218 = vld [vmem:[%s192 + $0x4c] sm:$0xf]
      %v219 = vld [vmem:[%s192 + $0x50] sm:$0xf]
      %v220 = vld [vmem:[%s192 + $0x54] sm:$0xf]
      %v221 = vld [vmem:[%s192 + $0x58] sm:$0xf]
      %v222 = vld [vmem:[%s192 + $0x5c] sm:$0xf]
      %v223 = vld [vmem:[%s192 + $0x60] sm:$0xf]
      %v224 = vld [vmem:[%s192 + $0x64] sm:$0xf]
      %v225 = vld [vmem:[%s192 + $0x68] sm:$0xf]
      %v226 = vld [vmem:[%s192 + $0x6c] sm:$0xf]
      %v227 = vld [vmem:[%s192 + $0x70] sm:$0xf]
      %v228 = vld [vmem:[%s192 + $0x74] sm:$0xf]
      %v229 = vld [vmem:[%s192 + $0x78] sm:$0xf]
      %v230 = vld [vmem:[%s192 + $0x7c] sm:$0xf]
      %v231 = vld [vmem:[%s1] sm:$0xf]
      %v232 = vld [vmem:[%s1 + $0x4] sm:$0xf]
      %v233 = vld [vmem:[%s1 + $0x8] sm:$0xf]
      %v234 = vld [vmem:[%s1 + $0xc] sm:$0xf]
      %v235 = vld [vmem:[%s1 + $0x10] sm:$0xf]
      %v236 = vld [vmem:[%s1 + $0x14] sm:$0xf]
      %v237 = vld [vmem:[%s1 + $0x18] sm:$0xf]
      %v238 = vld [vmem:[%s1 + $0x1c] sm:$0xf]
      %v239 = vld [vmem:[%s1 + $0x20] sm:$0xf]
      %v240 = vld [vmem:[%s1 + $0x24] sm:$0xf]
      %v241 = vld [vmem:[%s1 + $0x28] sm:$0xf]
      %v242 = vld [vmem:[%s1 + $0x2c] sm:$0xf]
      %v243 = vld [vmem:[%s1 + $0x30] sm:$0xf]
      %v244 = vld [vmem:[%s1 + $0x34] sm:$0xf]
      %v245 = vld [vmem:[%s1 + $0x38] sm:$0xf]
      %v246 = vld [vmem:[%s1 + $0x3c] sm:$0xf]
      %v279 = vunpack.c.l.b16 %v199
      %v280 = vunpack.c.l.b16 %v200
      %v281 = vunpack.c.l.b16 %v201
      %v282 = vunpack.c.l.b16 %v202
      %v283 = vunpack.c.l.b16 %v203
      %v284 = vunpack.c.l.b16 %v204
      %v285 = vunpack.c.l.b16 %v205
      %v286 = vunpack.c.l.b16 %v206
      %v287 = vunpack.c.l.b16 %v207
      %v288 = vunpack.c.l.b16 %v208
      %v289 = vunpack.c.l.b16 %v209
      %v290 = vunpack.c.l.b16 %v210
      %v291 = vunpack.c.l.b16 %v211
      %v292 = vunpack.c.l.b16 %v212
      %v293 = vunpack.c.l.b16 %v213
      %v294 = vunpack.c.l.b16 %v214
      %v295 = vunpack.c.l.b16 %v215
      %v296 = vunpack.c.l.b16 %v216
      %v297 = vunpack.c.l.b16 %v217
      %v298 = vunpack.c.l.b16 %v218
      %v299 = vunpack.c.l.b16 %v219
      %v300 = vunpack.c.l.b16 %v220
      %v301 = vunpack.c.l.b16 %v221
      %v302 = vunpack.c.l.b16 %v222
      %v303 = vunpack.c.l.b16 %v223
      %v304 = vunpack.c.l.b16 %v224
      %v305 = vunpack.c.l.b16 %v225
      %v306 = vunpack.c.l.b16 %v226
      %v307 = vunpack.c.l.b16 %v227
      %v308 = vunpack.c.l.b16 %v228
      %v309 = vunpack.c.l.b16 %v229
      %v310 = vunpack.c.l.b16 %v230
      %v311 = vpack.c.b16 %v280, %v279
      %v312 = vpack.c.b16 %v282, %v281
      %v313 = vpack.c.b16 %v284, %v283
      %v314 = vpack.c.b16 %v286, %v285
      %v315 = vpack.c.b16 %v288, %v287
      %v316 = vpack.c.b16 %v290, %v289
      %v317 = vpack.c.b16 %v292, %v291
      %v318 = vpack.c.b16 %v294, %v293
      %v319 = vpack.c.b16 %v296, %v295
      %v320 = vpack.c.b16 %v298, %v297
      %v321 = vpack.c.b16 %v300, %v299
      %v322 = vpack.c.b16 %v302, %v301
      %v323 = vpack.c.b16 %v304, %v303
      %v324 = vpack.c.b16 %v306, %v305
      %v325 = vpack.c.b16 %v308, %v307
      %v326 = vpack.c.b16 %v310, %v309
      %v359 = vunpack.c.l.b16 %v231
      %v360 = vunpack.c.l.b16 %v232
      %v361 = vunpack.c.l.b16 %v233
      %v362 = vunpack.c.l.b16 %v234
      %v363 = vunpack.c.l.b16 %v235
      %v364 = vunpack.c.l.b16 %v236
      %v365 = vunpack.c.l.b16 %v237
      %v366 = vunpack.c.l.b16 %v238
      %v367 = vunpack.c.l.b16 %v239
      %v368 = vunpack.c.l.b16 %v240
      %v369 = vunpack.c.l.b16 %v241
      %v370 = vunpack.c.l.b16 %v242
      %v371 = vunpack.c.l.b16 %v243
      %v372 = vunpack.c.l.b16 %v244
      %v373 = vunpack.c.l.b16 %v245
      %v374 = vunpack.c.l.b16 %v246
      %v375 = vpack.c.b16 %v360, %v359
      %v376 = vpack.c.b16 %v362, %v361
      %v377 = vpack.c.b16 %v364, %v363
      %v378 = vpack.c.b16 %v366, %v365
      %v379 = vpack.c.b16 %v368, %v367
      %v380 = vpack.c.b16 %v370, %v369
      %v381 = vpack.c.b16 %v372, %v371
      %v382 = vpack.c.b16 %v374, %v373
      %391 = vmatprep.subr.bf16.mxu0 0
      %392 = vmatpush1.bf16.msra.mxu0 %v375
      %393 = vmatprep.subr.bf16.mxu0 0
      %394 = vmatpush1.bf16.msra.mxu0 %v376
      %395 = vmatprep.subr.bf16.mxu0 0
      %396 = vmatpush1.bf16.msra.mxu0 %v377
      %397 = vmatprep.subr.bf16.mxu0 0
      %398 = vmatpush1.bf16.msra.mxu0 %v378
      %399 = vmatprep.subr.bf16.mxu0 0
      %400 = vmatpush1.bf16.msra.mxu0 %v379
      %401 = vmatprep.subr.bf16.mxu0 0
      %402 = vmatpush1.bf16.msra.mxu0 %v380
      %403 = vmatprep.subr.bf16.mxu0 0
      %404 = vmatpush1.bf16.msra.mxu0 %v381
      %405 = vmatprep.subr.bf16.mxu0 0
      %406 = vmatpush1.bf16.msra.mxu0 %v382
      %407 = vmatprep.subr.bf16.mxu0 0
      %408 = vmatpush1.bf16.msra.mxu0 0
      %409 = vmatprep.subr.bf16.mxu0 0
      %410 = vmatpush1.bf16.msra.mxu0 0
      %411 = vmatprep.subr.bf16.mxu0 0
      %412 = vmatpush1.bf16.msra.mxu0 0
      %413 = vmatprep.subr.bf16.mxu0 0
      %414 = vmatpush1.bf16.msra.mxu0 0
      %415 = vmatprep.subr.bf16.mxu0 0
      %416 = vmatpush1.bf16.msra.mxu0 0
      %417 = vmatprep.subr.bf16.mxu0 0
      %418 = vmatpush1.bf16.msra.mxu0 0
      %419 = vmatprep.subr.bf16.mxu0 0
      %420 = vmatpush1.bf16.msra.mxu0 0
      %421 = vmatprep.subr.bf16.mxu0 0
      %422 = vmatpush1.bf16.msra.mxu0 0
      %423 = vmatprep.mubr.bf16.mxu0 0
      %424 = vmatmul.mubr.bf16.gmra.mrb[0].mxu0 %v311
      %v425 = vpop.f32.mrb[0].mxu0
      %v426 = vadd.f32 0.0, %v425
      %v427 = vpop.f32.mrb[0].mxu0
      %v428 = vpop.f32.mrb[0].mxu0
      %v429 = vadd.f32 0.0, %v428
      %v430 = vpop.f32.mrb[0].mxu0
      %431 = vmatprep.mubr.bf16.mxu0 0
      %432 = vmatmul.mubr.bf16.gmra.mrb[0].mxu0 %v312
      %v433 = vpop.f32.mrb[0].mxu0
      %v434 = vadd.f32 0.0, %v433
      %v435 = vpop.f32.mrb[0].mxu0
      %v436 = vpop.f32.mrb[0].mxu0
      %v437 = vadd.f32 0.0, %v436
      %v438 = vpop.f32.mrb[0].mxu0
      %439 = vmatprep.mubr.bf16.mxu0 0
      %440 = vmatmul.mubr.bf16.gmra.mrb[0].mxu0 %v313
      %v441 = vpop.f32.mrb[0].mxu0
      %v442 = vadd.f32 0.0, %v441
      %v443 = vpop.f32.mrb[0].mxu0
      %v444 = vpop.f32.mrb[0].mxu0
      %v445 = vadd.f32 0.0, %v444
      %v446 = vpop.f32.mrb[0].mxu0
      %447 = vmatprep.mubr.bf16.mxu0 0
      %448 = vmatmul.mubr.bf16.gmra.mrb[0].mxu0 %v314
      %v449 = vpop.f32.mrb[0].mxu0
      %v450 = vadd.f32 0.0, %v449
      %v451 = vpop.f32.mrb[0].mxu0
      %v452 = vpop.f32.mrb[0].mxu0
      %v453 = vadd.f32 0.0, %v452
      %v454 = vpop.f32.mrb[0].mxu0
      %455 = vmatprep.mubr.bf16.mxu0 0
      %456 = vmatmul.mubr.bf16.gmra.mrb[0].mxu0 %v315
      %v457 = vpop.f32.mrb[0].mxu0
      %v458 = vadd.f32 0.0, %v457
      %v459 = vpop.f32.mrb[0].mxu0
      %v460 = vpop.f32.mrb[0].mxu0
      %v461 = vadd.f32 0.0, %v460
      %v462 = vpop.f32.mrb[0].mxu0
      %463 = vmatprep.mubr.bf16.mxu0 0
      %464 = vmatmul.mubr.bf16.gmra.mrb[0].mxu0 %v316
      %v465 = vpop.f32.mrb[0].mxu0
      %v466 = vadd.f32 0.0, %v465
      %v467 = vpop.f32.mrb[0].mxu0
      %v468 = vpop.f32.mrb[0].mxu0
      %v469 = vadd.f32 0.0, %v468
      %v470 = vpop.f32.mrb[0].mxu0
      %471 = vmatprep.mubr.bf16.mxu0 0
      %472 = vmatmul.mubr.bf16.gmra.mrb[0].mxu0 %v317
      %v473 = vpop.f32.mrb[0].mxu0
      %v474 = vadd.f32 0.0, %v473
      %v475 = vpop.f32.mrb[0].mxu0
      %v476 = vpop.f32.mrb[0].mxu0
      %v477 = vadd.f32 0.0, %v476
      %v478 = vpop.f32.mrb[0].mxu0
      %479 = vmatprep.mubr.bf16.mxu0 0
      %480 = vmatmul.mubr.bf16.gmra.mrb[0].mxu0 %v318
      %v481 = vpop.f32.mrb[0].mxu0
      %v482 = vadd.f32 0.0, %v481
      %v483 = vpop.f32.mrb[0].mxu0
      %v484 = vpop.f32.mrb[0].mxu0
      %v485 = vadd.f32 0.0, %v484
      %v486 = vpop.f32.mrb[0].mxu0
      %487 = vmatprep.mubr.bf16.mxu0 0
      %488 = vmatmul.mubr.bf16.gmra.mrb[0].mxu0 %v319
      %v489 = vpop.f32.mrb[0].mxu0
      %v490 = vadd.f32 0.0, %v489
      %v491 = vpop.f32.mrb[0].mxu0
      %v492 = vpop.f32.mrb[0].mxu0
      %v493 = vadd.f32 0.0, %v492
      %v494 = vpop.f32.mrb[0].mxu0
      %495 = vmatprep.mubr.bf16.mxu0 0
      %496 = vmatmul.mubr.bf16.gmra.mrb[0].mxu0 %v320
      %v497 = vpop.f32.mrb[0].mxu0
      %v498 = vadd.f32 0.0, %v497
      %v499 = vpop.f32.mrb[0].mxu0
      %v500 = vpop.f32.mrb[0].mxu0
      %v501 = vadd.f32 0.0, %v500
      %v502 = vpop.f32.mrb[0].mxu0
      %503 = vmatprep.mubr.bf16.mxu0 0
      %504 = vmatmul.mubr.bf16.gmra.mrb[0].mxu0 %v321
      %v505 = vpop.f32.mrb[0].mxu0
      %v506 = vadd.f32 0.0, %v505
      %v507 = vpop.f32.mrb[0].mxu0
      %v508 = vpop.f32.mrb[0].mxu0
      %v509 = vadd.f32 0.0, %v508
      %v510 = vpop.f32.mrb[0].mxu0
      %511 = vmatprep.mubr.bf16.mxu0 0
      %512 = vmatmul.mubr.bf16.gmra.mrb[0].mxu0 %v322
      %v513 = vpop.f32.mrb[0].mxu0
      %v514 = vadd.f32 0.0, %v513
      %v515 = vpop.f32.mrb[0].mxu0
      %v516 = vpop.f32.mrb[0].mxu0
      %v517 = vadd.f32 0.0, %v516
      %v518 = vpop.f32.mrb[0].mxu0
      %519 = vmatprep.mubr.bf16.mxu0 0
      %520 = vmatmul.mubr.bf16.gmra.mrb[0].mxu0 %v323
      %v521 = vpop.f32.mrb[0].mxu0
      %v522 = vadd.f32 0.0, %v521
      %v523 = vpop.f32.mrb[0].mxu0
      %v524 = vpop.f32.mrb[0].mxu0
      %v525 = vadd.f32 0.0, %v524
      %v526 = vpop.f32.mrb[0].mxu0
      %527 = vmatprep.mubr.bf16.mxu0 0
      %528 = vmatmul.mubr.bf16.gmra.mrb[0].mxu0 %v324
      %v529 = vpop.f32.mrb[0].mxu0
      %v530 = vadd.f32 0.0, %v529
      %v531 = vpop.f32.mrb[0].mxu0
      %v532 = vpop.f32.mrb[0].mxu0
      %v533 = vadd.f32 0.0, %v532
      %v534 = vpop.f32.mrb[0].mxu0
      %535 = vmatprep.mubr.bf16.mxu0 0
      %536 = vmatmul.mubr.bf16.gmra.mrb[0].mxu0 %v325
      %v537 = vpop.f32.mrb[0].mxu0
      %v538 = vadd.f32 0.0, %v537
      %v539 = vpop.f32.mrb[0].mxu0
      %v540 = vpop.f32.mrb[0].mxu0
      %v541 = vadd.f32 0.0, %v540
      %v542 = vpop.f32.mrb[0].mxu0
      %543 = vmatprep.mubr.bf16.mxu0 0
      %544 = vmatmul.mubr.bf16.gmra.mrb[0].mxu0 %v326
      %v545 = vpop.f32.mrb[0].mxu0
      %v546 = vadd.f32 0.0, %v545
      %v547 = vpop.f32.mrb[0].mxu0
      %v548 = vpop.f32.mrb[0].mxu0
      %v549 = vadd.f32 0.0, %v548
      %v550 = vpop.f32.mrb[0].mxu0
      %551 = vdwg.mxu0
      %v552 = vadd.f32 %v426, %v429
      %v553 = vadd.f32 %v552, %v434
      %v554 = vadd.f32 %v553, %v437
      %v555 = vadd.f32 %v554, %v442
      %v556 = vadd.f32 %v555, %v445
      %v557 = vadd.f32 %v556, %v450
      %v558 = vadd.f32 %v557, %v453
      %v559 = vadd.f32 %v558, %v458
      %v560 = vadd.f32 %v559, %v461
      %v561 = vadd.f32 %v560, %v466
      %v562 = vadd.f32 %v561, %v469
      %v563 = vadd.f32 %v562, %v474
      %v564 = vadd.f32 %v563, %v477
      %v565 = vadd.f32 %v564, %v482
      %v566 = vadd.f32 %v565, %v485
      %v567 = vadd.f32 %v566, %v490
      %v568 = vadd.f32 %v567, %v493
      %v569 = vadd.f32 %v568, %v498
      %v570 = vadd.f32 %v569, %v501
      %v571 = vadd.f32 %v570, %v506
      %v572 = vadd.f32 %v571, %v509
      %v573 = vadd.f32 %v572, %v514
      %v574 = vadd.f32 %v573, %v517
      %v575 = vadd.f32 %v574, %v522
      %v576 = vadd.f32 %v575, %v525
      %v577 = vadd.f32 %v576, %v530
      %v578 = vadd.f32 %v577, %v533
      %v579 = vadd.f32 %v578, %v538
      %v580 = vadd.f32 %v579, %v541
      %v581 = vadd.f32 %v580, %v546
      %v582 = vadd.f32 %v581, %v549
      %v583 = vrot.slane %v582, 4
      %v584 = vadd.f32 %v582, %v583
      %v585 = vrot.slane %v584, 2
      %v586 = vadd.f32 %v584, %v585
      %v587 = vrot.slane %v586, 1
      %v588 = vadd.f32 %v586, %v587
      %v589 = vrcp.pop 256.0
      %v590 = vmul.f32 %v588, %v589
      %v591 = vmul.f32 %v426, %v426
      %v592 = vmul.f32 %v429, %v429
      %v593 = vmul.f32 %v434, %v434
      %v594 = vmul.f32 %v437, %v437
      %v595 = vmul.f32 %v442, %v442
      %v596 = vmul.f32 %v445, %v445
      %v597 = vmul.f32 %v450, %v450
      %v598 = vmul.f32 %v453, %v453
      %v599 = vmul.f32 %v458, %v458
      %v600 = vmul.f32 %v461, %v461
      %v601 = vmul.f32 %v466, %v466
      %v602 = vmul.f32 %v469, %v469
      %v603 = vmul.f32 %v474, %v474
      %v604 = vmul.f32 %v477, %v477
      %v605 = vmul.f32 %v482, %v482
      %v606 = vmul.f32 %v485, %v485
      %v607 = vmul.f32 %v490, %v490
      %v608 = vmul.f32 %v493, %v493
      %v609 = vmul.f32 %v498, %v498
      %v610 = vmul.f32 %v501, %v501
      %v611 = vmul.f32 %v506, %v506
      %v612 = vmul.f32 %v509, %v509
      %v613 = vmul.f32 %v514, %v514
      %v614 = vmul.f32 %v517, %v517
      %v615 = vmul.f32 %v522, %v522
      %v616 = vmul.f32 %v525, %v525
      %v617 = vmul.f32 %v530, %v530
      %v618 = vmul.f32 %v533, %v533
      %v619 = vmul.f32 %v538, %v538
      %v620 = vmul.f32 %v541, %v541
      %v621 = vmul.f32 %v546, %v546
      %v622 = vmul.f32 %v549, %v549
      %v623 = vadd.f32 %v591, %v592
      %v624 = vadd.f32 %v623, %v593
      %v625 = vadd.f32 %v624, %v594
      %v626 = vadd.f32 %v625, %v595
      %v627 = vadd.f32 %v626, %v596
      %v628 = vadd.f32 %v627, %v597
      %v629 = vadd.f32 %v628, %v598
      %v630 = vadd.f32 %v629, %v599
      %v631 = vadd.f32 %v630, %v600
      %v632 = vadd.f32 %v631, %v601
      %v633 = vadd.f32 %v632, %v602
      %v634 = vadd.f32 %v633, %v603
      %v635 = vadd.f32 %v634, %v604
      %v636 = vadd.f32 %v635, %v605
      %v637 = vadd.f32 %v636, %v606
      %v638 = vadd.f32 %v637, %v607
      %v639 = vadd.f32 %v638, %v608
      %v640 = vadd.f32 %v639, %v609
      %v641 = vadd.f32 %v640, %v610
      %v642 = vadd.f32 %v641, %v611
      %v643 = vadd.f32 %v642, %v612
      %v644 = vadd.f32 %v643, %v613
      %v645 = vadd.f32 %v644, %v614
      %v646 = vadd.f32 %v645, %v615
      %v647 = vadd.f32 %v646, %v616
      %v648 = vadd.f32 %v647, %v617
      %v649 = vadd.f32 %v648, %v618
      %v650 = vadd.f32 %v649, %v619
      %v651 = vadd.f32 %v650, %v620
      %v652 = vadd.f32 %v651, %v621
      %v653 = vadd.f32 %v652, %v622
      %v654 = vrot.slane %v653, 4
      %v655 = vadd.f32 %v653, %v654
      %v656 = vrot.slane %v655, 2
      %v657 = vadd.f32 %v655, %v656
      %v658 = vrot.slane %v657, 1
      %v659 = vadd.f32 %v657, %v658
      %v660 = vmul.f32 %v659, %v589
      %v661 = vmul.f32 %v590, %v590
      %v662 = vsub.f32 %v660, %v661
      %v663 = vmax.f32 %v662, 0.0
      %v664 = vsub.f32 %v426, %v590
      %v665 = vsub.f32 %v429, %v590
      %v666 = vsub.f32 %v434, %v590
      %v667 = vsub.f32 %v437, %v590
      %v668 = vsub.f32 %v442, %v590
      %v669 = vsub.f32 %v445, %v590
      %v670 = vsub.f32 %v450, %v590
      %v671 = vsub.f32 %v453, %v590
      %v672 = vsub.f32 %v458, %v590
      %v673 = vsub.f32 %v461, %v590
      %v674 = vsub.f32 %v466, %v590
      %v675 = vsub.f32 %v469, %v590
      %v676 = vsub.f32 %v474, %v590
      %v677 = vsub.f32 %v477, %v590
      %v678 = vsub.f32 %v482, %v590
      %v679 = vsub.f32 %v485, %v590
      %v680 = vsub.f32 %v490, %v590
      %v681 = vsub.f32 %v493, %v590
      %v682 = vsub.f32 %v498, %v590
      %v683 = vsub.f32 %v501, %v590
      %v684 = vsub.f32 %v506, %v590
      %v685 = vsub.f32 %v509, %v590
      %v686 = vsub.f32 %v514, %v590
      %v687 = vsub.f32 %v517, %v590
      %v688 = vsub.f32 %v522, %v590
      %v689 = vsub.f32 %v525, %v590
      %v690 = vsub.f32 %v530, %v590
      %v691 = vsub.f32 %v533, %v590
      %v692 = vsub.f32 %v538, %v590
      %v693 = vsub.f32 %v541, %v590
      %v694 = vsub.f32 %v546, %v590
      %v695 = vsub.f32 %v549, %v590
      %v696 = vadd.f32 %v663, 1e-05
      %v697 = vrsqrt.pop %v696
      %v698 = vmul.f32 %v664, %v697
      %v699 = vmul.f32 %v665, %v697
      %v700 = vmul.f32 %v666, %v697
      %v701 = vmul.f32 %v667, %v697
      %v702 = vmul.f32 %v668, %v697
      %v703 = vmul.f32 %v669, %v697
      %v704 = vmul.f32 %v670, %v697
      %v705 = vmul.f32 %v671, %v697
      %v706 = vmul.f32 %v672, %v697
      %v707 = vmul.f32 %v673, %v697
      %v708 = vmul.f32 %v674, %v697
      %v709 = vmul.f32 %v675, %v697
      %v710 = vmul.f32 %v676, %v697
      %v711 = vmul.f32 %v677, %v697
      %v712 = vmul.f32 %v678, %v697
      %v713 = vmul.f32 %v679, %v697
      %v714 = vmul.f32 %v680, %v697
      %v715 = vmul.f32 %v681, %v697
      %v716 = vmul.f32 %v682, %v697
      %v717 = vmul.f32 %v683, %v697
      %v718 = vmul.f32 %v684, %v697
      %v719 = vmul.f32 %v685, %v697
      %v720 = vmul.f32 %v686, %v697
      %v721 = vmul.f32 %v687, %v697
      %v722 = vmul.f32 %v688, %v697
      %v723 = vmul.f32 %v689, %v697
      %v724 = vmul.f32 %v690, %v697
      %v725 = vmul.f32 %v691, %v697
      %v726 = vmul.f32 %v692, %v697
      %v727 = vmul.f32 %v693, %v697
      %v728 = vmul.f32 %v694, %v697
      %v729 = vmul.f32 %v695, %v697
      %v730 = vld [vmem:[%s2] sm:$0x1]
      %v732 = vlaneseq
      %v733 = vshrl.u32 %v732, 7
      %v734 = vsub.s32 0, %v733
      %v735 = vrot.slane %v730, %v734
      %v737 = vmul.f32 %v698, %v735
      %v738 = vmul.f32 %v699, %v735
      %v739 = vmul.f32 %v700, %v735
      %v740 = vmul.f32 %v701, %v735
      %v741 = vmul.f32 %v702, %v735
      %v742 = vmul.f32 %v703, %v735
      %v743 = vmul.f32 %v704, %v735
      %v744 = vmul.f32 %v705, %v735
      %v745 = vmul.f32 %v706, %v735
      %v746 = vmul.f32 %v707, %v735
      %v747 = vmul.f32 %v708, %v735
      %v748 = vmul.f32 %v709, %v735
      %v749 = vmul.f32 %v710, %v735
      %v750 = vmul.f32 %v711, %v735
      %v751 = vmul.f32 %v712, %v735
      %v752 = vmul.f32 %v713, %v735
      %v753 = vmul.f32 %v714, %v735
      %v754 = vmul.f32 %v715, %v735
      %v755 = vmul.f32 %v716, %v735
      %v756 = vmul.f32 %v717, %v735
      %v757 = vmul.f32 %v718, %v735
      %v758 = vmul.f32 %v719, %v735
      %v759 = vmul.f32 %v720, %v735
      %v760 = vmul.f32 %v721, %v735
      %v761 = vmul.f32 %v722, %v735
      %v762 = vmul.f32 %v723, %v735
      %v763 = vmul.f32 %v724, %v735
      %v764 = vmul.f32 %v725, %v735
      %v765 = vmul.f32 %v726, %v735
      %v766 = vmul.f32 %v727, %v735
      %v767 = vmul.f32 %v728, %v735
      %v768 = vmul.f32 %v729, %v735
      %v769 = vld [vmem:[%s3] sm:$0x1]
      %v771 = vlaneseq
      %v772 = vshrl.u32 %v771, 7
      %v773 = vsub.s32 0, %v772
      %v774 = vrot.slane %v769, %v773
      %v776 = vadd.f32 %v737, %v774
      %v777 = vadd.f32 %v738, %v774
      %v778 = vadd.f32 %v739, %v774
      %v779 = vadd.f32 %v740, %v774
      %v780 = vadd.f32 %v741, %v774
      %v781 = vadd.f32 %v742, %v774
      %v782 = vadd.f32 %v743, %v774
      %v783 = vadd.f32 %v744, %v774
      %v784 = vadd.f32 %v745, %v774
      %v785 = vadd.f32 %v746, %v774
      %v786 = vadd.f32 %v747, %v774
      %v787 = vadd.f32 %v748, %v774
      %v788 = vadd.f32 %v749, %v774
      %v789 = vadd.f32 %v750, %v774
      %v790 = vadd.f32 %v751, %v774
      %v791 = vadd.f32 %v752, %v774
      %v792 = vadd.f32 %v753, %v774
      %v793 = vadd.f32 %v754, %v774
      %v794 = vadd.f32 %v755, %v774
      %v795 = vadd.f32 %v756, %v774
      %v796 = vadd.f32 %v757, %v774
      %v797 = vadd.f32 %v758, %v774
      %v798 = vadd.f32 %v759, %v774
      %v799 = vadd.f32 %v760, %v774
      %v800 = vadd.f32 %v761, %v774
      %v801 = vadd.f32 %v762, %v774
      %v802 = vadd.f32 %v763, %v774
      %v803 = vadd.f32 %v764, %v774
      %v804 = vadd.f32 %v765, %v774
      %v805 = vadd.f32 %v766, %v774
      %v806 = vadd.f32 %v767, %v774
      %v807 = vadd.f32 %v768, %v774
      %vm808 = vcmp.ge.f32.partialorder %v776, 0.0
      %vm809 = vcmp.ge.f32.partialorder %v777, 0.0
      %vm810 = vcmp.ge.f32.partialorder %v778, 0.0
      %vm811 = vcmp.ge.f32.partialorder %v779, 0.0
      %vm812 = vcmp.ge.f32.partialorder %v780, 0.0
      %vm813 = vcmp.ge.f32.partialorder %v781, 0.0
      %vm814 = vcmp.ge.f32.partialorder %v782, 0.0
      %vm815 = vcmp.ge.f32.partialorder %v783, 0.0
      %vm816 = vcmp.ge.f32.partialorder %v784, 0.0
      %vm817 = vcmp.ge.f32.partialorder %v785, 0.0
      %vm818 = vcmp.ge.f32.partialorder %v786, 0.0
      %vm819 = vcmp.ge.f32.partialorder %v787, 0.0
      %vm820 = vcmp.ge.f32.partialorder %v788, 0.0
      %vm821 = vcmp.ge.f32.partialorder %v789, 0.0
      %vm822 = vcmp.ge.f32.partialorder %v790, 0.0
      %vm823 = vcmp.ge.f32.partialorder %v791, 0.0
      %vm824 = vcmp.ge.f32.partialorder %v792, 0.0
      %vm825 = vcmp.ge.f32.partialorder %v793, 0.0
      %vm826 = vcmp.ge.f32.partialorder %v794, 0.0
      %vm827 = vcmp.ge.f32.partialorder %v795, 0.0
      %vm828 = vcmp.ge.f32.partialorder %v796, 0.0
      %vm829 = vcmp.ge.f32.partialorder %v797, 0.0
      %vm830 = vcmp.ge.f32.partialorder %v798, 0.0
      %vm831 = vcmp.ge.f32.partialorder %v799, 0.0
      %vm832 = vcmp.ge.f32.partialorder %v800, 0.0
      %vm833 = vcmp.ge.f32.partialorder %v801, 0.0
      %vm834 = vcmp.ge.f32.partialorder %v802, 0.0
      %vm835 = vcmp.ge.f32.partialorder %v803, 0.0
      %vm836 = vcmp.ge.f32.partialorder %v804, 0.0
      %vm837 = vcmp.ge.f32.partialorder %v805, 0.0
      %vm838 = vcmp.ge.f32.partialorder %v806, 0.0
      %vm839 = vcmp.ge.f32.partialorder %v807, 0.0
      %v840 = vmul.f32 %v776, 0.2
      %v841 = vmul.f32 %v777, 0.2
      %v842 = vmul.f32 %v778, 0.2
      %v843 = vmul.f32 %v779, 0.2
      %v844 = vmul.f32 %v780, 0.2
      %v845 = vmul.f32 %v781, 0.2
      %v846 = vmul.f32 %v782, 0.2
      %v847 = vmul.f32 %v783, 0.2
      %v848 = vmul.f32 %v784, 0.2
      %v849 = vmul.f32 %v785, 0.2
      %v850 = vmul.f32 %v786, 0.2
      %v851 = vmul.f32 %v787, 0.2
      %v852 = vmul.f32 %v788, 0.2
      %v853 = vmul.f32 %v789, 0.2
      %v854 = vmul.f32 %v790, 0.2
      %v855 = vmul.f32 %v791, 0.2
      %v856 = vmul.f32 %v792, 0.2
      %v857 = vmul.f32 %v793, 0.2
      %v858 = vmul.f32 %v794, 0.2
      %v859 = vmul.f32 %v795, 0.2
      %v860 = vmul.f32 %v796, 0.2
      %v861 = vmul.f32 %v797, 0.2
      %v862 = vmul.f32 %v798, 0.2
      %v863 = vmul.f32 %v799, 0.2
      %v864 = vmul.f32 %v800, 0.2
      %v865 = vmul.f32 %v801, 0.2
      %v866 = vmul.f32 %v802, 0.2
      %v867 = vmul.f32 %v803, 0.2
      %v868 = vmul.f32 %v804, 0.2
      %v869 = vmul.f32 %v805, 0.2
      %v870 = vmul.f32 %v806, 0.2
      %v871 = vmul.f32 %v807, 0.2
      %v872 = vsel %vm808, %v776, %v840
      %v873 = vsel %vm809, %v777, %v841
      %v874 = vsel %vm810, %v778, %v842
      %v875 = vsel %vm811, %v779, %v843
      %v876 = vsel %vm812, %v780, %v844
      %v877 = vsel %vm813, %v781, %v845
      %v878 = vsel %vm814, %v782, %v846
      %v879 = vsel %vm815, %v783, %v847
      %v880 = vsel %vm816, %v784, %v848
      %v881 = vsel %vm817, %v785, %v849
      %v882 = vsel %vm818, %v786, %v850
      %v883 = vsel %vm819, %v787, %v851
      %v884 = vsel %vm820, %v788, %v852
      %v885 = vsel %vm821, %v789, %v853
      %v886 = vsel %vm822, %v790, %v854
      %v887 = vsel %vm823, %v791, %v855
      %v888 = vsel %vm824, %v792, %v856
      %v889 = vsel %vm825, %v793, %v857
      %v890 = vsel %vm826, %v794, %v858
      %v891 = vsel %vm827, %v795, %v859
      %v892 = vsel %vm828, %v796, %v860
      %v893 = vsel %vm829, %v797, %v861
      %v894 = vsel %vm830, %v798, %v862
      %v895 = vsel %vm831, %v799, %v863
      %v896 = vsel %vm832, %v800, %v864
      %v897 = vsel %vm833, %v801, %v865
      %v898 = vsel %vm834, %v802, %v866
      %v899 = vsel %vm835, %v803, %v867
      %v900 = vsel %vm836, %v804, %v868
      %v901 = vsel %vm837, %v805, %v869
      %v902 = vsel %vm838, %v806, %v870
      %v903 = vsel %vm839, %v807, %v871
      %v904 = vpack.c.bf16 %v873, %v872
      %v905 = vpack.c.bf16 %v875, %v874
      %v906 = vpack.c.bf16 %v877, %v876
      %v907 = vpack.c.bf16 %v879, %v878
      %v908 = vpack.c.bf16 %v881, %v880
      %v909 = vpack.c.bf16 %v883, %v882
      %v910 = vpack.c.bf16 %v885, %v884
      %v911 = vpack.c.bf16 %v887, %v886
      %v912 = vpack.c.bf16 %v889, %v888
      %v913 = vpack.c.bf16 %v891, %v890
      %v914 = vpack.c.bf16 %v893, %v892
      %v915 = vpack.c.bf16 %v895, %v894
      %v916 = vpack.c.bf16 %v897, %v896
      %v917 = vpack.c.bf16 %v899, %v898
      %v918 = vpack.c.bf16 %v901, %v900
      %v919 = vpack.c.bf16 %v903, %v902
      %v936 = vunpack.c.l.b16 %v904
      %v937 = vunpack.c.h.b16 %v904
      %v938 = vunpack.c.l.b16 %v905
      %v939 = vunpack.c.h.b16 %v905
      %v940 = vunpack.c.l.b16 %v906
      %v941 = vunpack.c.h.b16 %v906
      %v942 = vunpack.c.l.b16 %v907
      %v943 = vunpack.c.h.b16 %v907
      %v944 = vunpack.c.l.b16 %v908
      %v945 = vunpack.c.h.b16 %v908
      %v946 = vunpack.c.l.b16 %v909
      %v947 = vunpack.c.h.b16 %v909
      %v948 = vunpack.c.l.b16 %v910
      %v949 = vunpack.c.h.b16 %v910
      %v950 = vunpack.c.l.b16 %v911
      %v951 = vunpack.c.h.b16 %v911
      %v952 = vunpack.c.l.b16 %v912
      %v953 = vunpack.c.h.b16 %v912
      %v954 = vunpack.c.l.b16 %v913
      %v955 = vunpack.c.h.b16 %v913
      %v956 = vunpack.c.l.b16 %v914
      %v957 = vunpack.c.h.b16 %v914
      %v958 = vunpack.c.l.b16 %v915
      %v959 = vunpack.c.h.b16 %v915
      %v960 = vunpack.c.l.b16 %v916
      %v961 = vunpack.c.h.b16 %v916
      %v962 = vunpack.c.l.b16 %v917
      %v963 = vunpack.c.h.b16 %v917
      %v964 = vunpack.c.l.b16 %v918
      %v965 = vunpack.c.h.b16 %v918
      %v966 = vunpack.c.l.b16 %v919
      %v967 = vunpack.c.h.b16 %v919
      %v968 = vpack.c.b16 %v936, %v936
      %v969 = vpack.c.b16 %v937, %v937
      %v970 = vpack.c.b16 %v938, %v938
      %v971 = vpack.c.b16 %v939, %v939
      %v972 = vpack.c.b16 %v940, %v940
      %v973 = vpack.c.b16 %v941, %v941
      %v974 = vpack.c.b16 %v942, %v942
      %v975 = vpack.c.b16 %v943, %v943
      %v976 = vpack.c.b16 %v944, %v944
      %v977 = vpack.c.b16 %v945, %v945
      %v978 = vpack.c.b16 %v946, %v946
      %v979 = vpack.c.b16 %v947, %v947
      %v980 = vpack.c.b16 %v948, %v948
      %v981 = vpack.c.b16 %v949, %v949
      %v982 = vpack.c.b16 %v950, %v950
      %v983 = vpack.c.b16 %v951, %v951
      %v984 = vpack.c.b16 %v952, %v952
      %v985 = vpack.c.b16 %v953, %v953
      %v986 = vpack.c.b16 %v954, %v954
      %v987 = vpack.c.b16 %v955, %v955
      %v988 = vpack.c.b16 %v956, %v956
      %v989 = vpack.c.b16 %v957, %v957
      %v990 = vpack.c.b16 %v958, %v958
      %v991 = vpack.c.b16 %v959, %v959
      %v992 = vpack.c.b16 %v960, %v960
      %v993 = vpack.c.b16 %v961, %v961
      %v994 = vpack.c.b16 %v962, %v962
      %v995 = vpack.c.b16 %v963, %v963
      %v996 = vpack.c.b16 %v964, %v964
      %v997 = vpack.c.b16 %v965, %v965
      %v998 = vpack.c.b16 %v966, %v966
      %v999 = vpack.c.b16 %v967, %v967
      %1032 = vst [vmem:[%s197] sm:$0xf] %v968
      %1033 = vst [vmem:[%s197 + $0x4] sm:$0xf] %v969
      %1034 = vst [vmem:[%s197 + $0x8] sm:$0xf] %v970
      %1035 = vst [vmem:[%s197 + $0xc] sm:$0xf] %v971
      %1036 = vst [vmem:[%s197 + $0x10] sm:$0xf] %v972
      %1037 = vst [vmem:[%s197 + $0x14] sm:$0xf] %v973
      %1038 = vst [vmem:[%s197 + $0x18] sm:$0xf] %v974
      %1039 = vst [vmem:[%s197 + $0x1c] sm:$0xf] %v975
      %1040 = vst [vmem:[%s197 + $0x20] sm:$0xf] %v976
      %1041 = vst [vmem:[%s197 + $0x24] sm:$0xf] %v977
      %1042 = vst [vmem:[%s197 + $0x28] sm:$0xf] %v978
      %1043 = vst [vmem:[%s197 + $0x2c] sm:$0xf] %v979
      %1044 = vst [vmem:[%s197 + $0x30] sm:$0xf] %v980
      %1045 = vst [vmem:[%s197 + $0x34] sm:$0xf] %v981
      %1046 = vst [vmem:[%s197 + $0x38] sm:$0xf] %v982
      %1047 = vst [vmem:[%s197 + $0x3c] sm:$0xf] %v983
      %1048 = vst [vmem:[%s197 + $0x40] sm:$0xf] %v984
      %1049 = vst [vmem:[%s197 + $0x44] sm:$0xf] %v985
      %1050 = vst [vmem:[%s197 + $0x48] sm:$0xf] %v986
      %1051 = vst [vmem:[%s197 + $0x4c] sm:$0xf] %v987
      %1052 = vst [vmem:[%s197 + $0x50] sm:$0xf] %v988
      %1053 = vst [vmem:[%s197 + $0x54] sm:$0xf] %v989
      %1054 = vst [vmem:[%s197 + $0x58] sm:$0xf] %v990
      %1055 = vst [vmem:[%s197 + $0x5c] sm:$0xf] %v991
      %1056 = vst [vmem:[%s197 + $0x60] sm:$0xf] %v992
      %1057 = vst [vmem:[%s197 + $0x64] sm:$0xf] %v993
      %1058 = vst [vmem:[%s197 + $0x68] sm:$0xf] %v994
      %1059 = vst [vmem:[%s197 + $0x6c] sm:$0xf] %v995
      %1060 = vst [vmem:[%s197 + $0x70] sm:$0xf] %v996
      %1061 = vst [vmem:[%s197 + $0x74] sm:$0xf] %v997
      %1062 = vst [vmem:[%s197 + $0x78] sm:$0xf] %v998
      %1063 = vst [vmem:[%s197 + $0x7c] sm:$0xf] %v999
      %p1064 = scmp.lt.s32.totalorder %s15, 1
      %s1065 = scalar_select %p1064, %s15, 1
      %s1066 = smul.addr %s1065, 32
      %s1067 = smul.addr %s1066, 4
      %s1068 = scalar_lea.vmem %s4, %s1067
      // Predicated region
      $region37: #{wasserstein_critic_forward.5} parent=35 // pred_check
        %p1069 = pneg %p122
      $region38: #{wasserstein_critic_forward.5} parent=35 // pred_check_branch
        %1071 = sbr.rel (%p1069) target = $region40
      $region39: #{wasserstein_critic_forward.5} parent=35 // pred_region
        _
      $region40: #{wasserstein_critic_forward.5} parent=35 // pred_fallthru
        _
    $region36: #{wasserstein_critic_forward.5} parent=5 // pred_fallthru
      _
    %p1072 = scmp.le.s32.totalorder 2, %s10
    // Predicated region
    $region41: #{wasserstein_critic_forward.5} parent=5 // pred_check
      %p1073 = pneg %p1072
    $region42: #{wasserstein_critic_forward.5} parent=5 // pred_check_branch
      %1075 = sbr.rel (%p1073) target = $region44
    $region43: #{wasserstein_critic_forward.5} parent=5 // pred_region
      %s1076 = ssub.s32 %s10, 2
      // Predicated region
      $region45: #{wasserstein_critic_forward.5} parent=43 // pred_check
        %p1077 = pneg %p128
      $region46: #{wasserstein_critic_forward.5} parent=43 // pred_check_branch
        %1079 = sbr.rel (%p1077) target = $region48
      $region47: #{wasserstein_critic_forward.5} parent=43 // pred_region
        %p1080 = scmp.lt.s32.totalorder %s16, 1
        %s1081 = scalar_select %p1080, %s16, 1
        %s1082 = smul.addr %s1081, 32
        %s1083 = smul.addr %s1082, 4
        %s1084 = scalar_lea.vmem %s4, %s1083
      $region48: #{wasserstein_critic_forward.5} parent=43 // pred_fallthru
        _
    $region44: #{wasserstein_critic_forward.5} parent=5 // pred_fallthru
      _
  $region6: #{wasserstein_critic_forward.5} parent=0 // loop_footer
    %s14 = sadd.s32 1, %s10
  $region7: #{wasserstein_critic_forward.5} parent=0 // loop_footer_branch
    %9 = sbr.rel target = $region3
  $region8: #{wasserstein_critic_forward.5} parent=0 // loop_exit
    _

// kernel: wasserstein_critic_forward.6
$region0: #{wasserstein_critic_forward.6}
  #allocation0 [shape = 'u32[]', space=smem, size = 0x4, offset = 0x4, fixed_abs, tag = 'smem constant byte address 0x4 - core index']
  #allocation1 [shape = 'u32[144,128]{1,0:T(1,128)}', space=vmem, size = 0x12000, scoped, tag = 'internal scratch']
  %s0 = inlined_call_operand.vmem [shape: bf16[2,64,256], index: 0, kind: input, shape index: {}]
  %s1 = inlined_call_operand.vmem [shape: bf16[256,128], index: 1, kind: input, shape index: {}]
  %s2 = inlined_call_operand.vmem [shape: f32[1,128], index: 2, kind: input, shape index: {}]
  %s3 = inlined_call_operand.vmem [shape: f32[1,128], index: 3, kind: input, shape index: {}]
  %s4 = inlined_call_operand.vmem [shape: bf16[2,64,128], index: 4, kind: output, shape index: {}]
  %s5 = sld [smem:[#allocation0]]
  $region26: #{wasserstein_critic_forward.6} parent=0
    _
  %s7 = ssub.s32 1, %s5
  %s8 = scalar_select 0, %s7, %s5
  // Predicated region
  $region2: #{wasserstein_critic_forward.6} parent=0 // pred_check
    _
  $region3: #{wasserstein_critic_forward.6} parent=0 // pred_check_branch
    %10 = sbr.rel (0) target = $region5
  $region4: #{wasserstein_critic_forward.6} parent=0 // pred_region
    _
  $region5: #{wasserstein_critic_forward.6} parent=0 // pred_fallthru
    _
  // Predicated region
  $region6: #{wasserstein_critic_forward.6} parent=0 // pred_check
    _
  $region7: #{wasserstein_critic_forward.6} parent=0 // pred_check_branch
    %12 = sbr.rel (0) target = $region9
  $region8: #{wasserstein_critic_forward.6} parent=0 // pred_region
    _
  $region9: #{wasserstein_critic_forward.6} parent=0 // pred_fallthru
    _
  // Predicated region
  $region10: #{wasserstein_critic_forward.6} parent=0 // pred_check
    _
  $region11: #{wasserstein_critic_forward.6} parent=0 // pred_check_branch
    %14 = sbr.rel (0) target = $region13
  $region12: #{wasserstein_critic_forward.6} parent=0 // pred_region
    _
  $region13: #{wasserstein_critic_forward.6} parent=0 // pred_fallthru
    _
  // Predicated region
  $region14: #{wasserstein_critic_forward.6} parent=0 // pred_check
    _
  $region15: #{wasserstein_critic_forward.6} parent=0 // pred_check_branch
    %16 = sbr.rel (0) target = $region17
  $region16: #{wasserstein_critic_forward.6} parent=0 // pred_region
    _
  $region17: #{wasserstein_critic_forward.6} parent=0 // pred_fallthru
    _
  %v18 = vld [vmem:[%s0] sm:$0xff]
  %v19 = vld [vmem:[%s0 + $0x8] sm:$0xff]
  %v20 = vld [vmem:[%s0 + $0x10] sm:$0xff]
  %v21 = vld [vmem:[%s0 + $0x18] sm:$0xff]
  %v22 = vld [vmem:[%s0 + $0x20] sm:$0xff]
  %v23 = vld [vmem:[%s0 + $0x28] sm:$0xff]
  %v24 = vld [vmem:[%s0 + $0x30] sm:$0xff]
  %v25 = vld [vmem:[%s0 + $0x38] sm:$0xff]
  %v26 = vld [vmem:[%s0 + $0x40] sm:$0xff]
  %v27 = vld [vmem:[%s0 + $0x48] sm:$0xff]
  %v28 = vld [vmem:[%s0 + $0x50] sm:$0xff]
  %v29 = vld [vmem:[%s0 + $0x58] sm:$0xff]
  %v30 = vld [vmem:[%s0 + $0x60] sm:$0xff]
  %v31 = vld [vmem:[%s0 + $0x68] sm:$0xff]
  %v32 = vld [vmem:[%s0 + $0x70] sm:$0xff]
  %v33 = vld [vmem:[%s0 + $0x78] sm:$0xff]
  %v34 = vld [vmem:[%s1] sm:$0xf]
  %v35 = vld [vmem:[%s1 + $0x4] sm:$0xf]
  %v36 = vld [vmem:[%s1 + $0x8] sm:$0xf]
  %v37 = vld [vmem:[%s1 + $0xc] sm:$0xf]
  %v38 = vld [vmem:[%s1 + $0x10] sm:$0xf]
  %v39 = vld [vmem:[%s1 + $0x14] sm:$0xf]
  %v40 = vld [vmem:[%s1 + $0x18] sm:$0xf]
  %v41 = vld [vmem:[%s1 + $0x1c] sm:$0xf]
  %v42 = vld [vmem:[%s1 + $0x20] sm:$0xf]
  %v43 = vld [vmem:[%s1 + $0x24] sm:$0xf]
  %v44 = vld [vmem:[%s1 + $0x28] sm:$0xf]
  %v45 = vld [vmem:[%s1 + $0x2c] sm:$0xf]
  %v46 = vld [vmem:[%s1 + $0x30] sm:$0xf]
  %v47 = vld [vmem:[%s1 + $0x34] sm:$0xf]
  %v48 = vld [vmem:[%s1 + $0x38] sm:$0xf]
  %v49 = vld [vmem:[%s1 + $0x3c] sm:$0xf]
  %v50 = vld [vmem:[%s1 + $0x40] sm:$0xf]
  %v51 = vld [vmem:[%s1 + $0x44] sm:$0xf]
  %v52 = vld [vmem:[%s1 + $0x48] sm:$0xf]
  %v53 = vld [vmem:[%s1 + $0x4c] sm:$0xf]
  %v54 = vld [vmem:[%s1 + $0x50] sm:$0xf]
  %v55 = vld [vmem:[%s1 + $0x54] sm:$0xf]
  %v56 = vld [vmem:[%s1 + $0x58] sm:$0xf]
  %v57 = vld [vmem:[%s1 + $0x5c] sm:$0xf]
  %v58 = vld [vmem:[%s1 + $0x60] sm:$0xf]
  %v59 = vld [vmem:[%s1 + $0x64] sm:$0xf]
  %v60 = vld [vmem:[%s1 + $0x68] sm:$0xf]
  %v61 = vld [vmem:[%s1 + $0x6c] sm:$0xf]
  %v62 = vld [vmem:[%s1 + $0x70] sm:$0xf]
  %v63 = vld [vmem:[%s1 + $0x74] sm:$0xf]
  %v64 = vld [vmem:[%s1 + $0x78] sm:$0xf]
  %v65 = vld [vmem:[%s1 + $0x7c] sm:$0xf]
  %v82 = vunpack.c.l.b16 %v18
  %v83 = vunpack.c.h.b16 %v18
  %v84 = vunpack.c.l.b16 %v19
  %v85 = vunpack.c.h.b16 %v19
  %v86 = vunpack.c.l.b16 %v20
  %v87 = vunpack.c.h.b16 %v20
  %v88 = vunpack.c.l.b16 %v21
  %v89 = vunpack.c.h.b16 %v21
  %v90 = vunpack.c.l.b16 %v22
  %v91 = vunpack.c.h.b16 %v22
  %v92 = vunpack.c.l.b16 %v23
  %v93 = vunpack.c.h.b16 %v23
  %v94 = vunpack.c.l.b16 %v24
  %v95 = vunpack.c.h.b16 %v24
  %v96 = vunpack.c.l.b16 %v25
  %v97 = vunpack.c.h.b16 %v25
  %v98 = vunpack.c.l.b16 %v26
  %v99 = vunpack.c.h.b16 %v26
  %v100 = vunpack.c.l.b16 %v27
  %v101 = vunpack.c.h.b16 %v27
  %v102 = vunpack.c.l.b16 %v28
  %v103 = vunpack.c.h.b16 %v28
  %v104 = vunpack.c.l.b16 %v29
  %v105 = vunpack.c.h.b16 %v29
  %v106 = vunpack.c.l.b16 %v30
  %v107 = vunpack.c.h.b16 %v30
  %v108 = vunpack.c.l.b16 %v31
  %v109 = vunpack.c.h.b16 %v31
  %v110 = vunpack.c.l.b16 %v32
  %v111 = vunpack.c.h.b16 %v32
  %v112 = vunpack.c.l.b16 %v33
  %v113 = vunpack.c.h.b16 %v33
  %v114 = vpack.c.b16 %v84, %v82
  %v115 = vpack.c.b16 %v85, %v83
  %v116 = vpack.c.b16 %v88, %v86
  %v117 = vpack.c.b16 %v89, %v87
  %v118 = vpack.c.b16 %v92, %v90
  %v119 = vpack.c.b16 %v93, %v91
  %v120 = vpack.c.b16 %v96, %v94
  %v121 = vpack.c.b16 %v97, %v95
  %v122 = vpack.c.b16 %v100, %v98
  %v123 = vpack.c.b16 %v101, %v99
  %v124 = vpack.c.b16 %v104, %v102
  %v125 = vpack.c.b16 %v105, %v103
  %v126 = vpack.c.b16 %v108, %v106
  %v127 = vpack.c.b16 %v109, %v107
  %v128 = vpack.c.b16 %v112, %v110
  %v129 = vpack.c.b16 %v113, %v111
  %v178 = vunpack.c.l.b16 %v34
  %v179 = vunpack.c.l.b16 %v35
  %v180 = vunpack.c.l.b16 %v36
  %v181 = vunpack.c.l.b16 %v37
  %v182 = vunpack.c.l.b16 %v38
  %v183 = vunpack.c.l.b16 %v39
  %v184 = vunpack.c.l.b16 %v40
  %v185 = vunpack.c.l.b16 %v41
  %v186 = vunpack.c.l.b16 %v42
  %v187 = vunpack.c.l.b16 %v43
  %v188 = vunpack.c.l.b16 %v44
  %v189 = vunpack.c.l.b16 %v45
  %v190 = vunpack.c.l.b16 %v46
  %v191 = vunpack.c.l.b16 %v47
  %v192 = vunpack.c.l.b16 %v48
  %v193 = vunpack.c.l.b16 %v49
  %v194 = vunpack.c.l.b16 %v50
  %v195 = vunpack.c.l.b16 %v51
  %v196 = vunpack.c.l.b16 %v52
  %v197 = vunpack.c.l.b16 %v53
  %v198 = vunpack.c.l.b16 %v54
  %v199 = vunpack.c.l.b16 %v55
  %v200 = vunpack.c.l.b16 %v56
  %v201 = vunpack.c.l.b16 %v57
  %v202 = vunpack.c.l.b16 %v58
  %v203 = vunpack.c.l.b16 %v59
  %v204 = vunpack.c.l.b16 %v60
  %v205 = vunpack.c.l.b16 %v61
  %v206 = vunpack.c.l.b16 %v62
  %v207 = vunpack.c.l.b16 %v63
  %v208 = vunpack.c.l.b16 %v64
  %v209 = vunpack.c.l.b16 %v65
  %v210 = vpack.c.b16 %v179, %v178
  %v211 = vpack.c.b16 %v181, %v180
  %v212 = vpack.c.b16 %v183, %v182
  %v213 = vpack.c.b16 %v185, %v184
  %v214 = vpack.c.b16 %v187, %v186
  %v215 = vpack.c.b16 %v189, %v188
  %v216 = vpack.c.b16 %v191, %v190
  %v217 = vpack.c.b16 %v193, %v192
  %v218 = vpack.c.b16 %v195, %v194
  %v219 = vpack.c.b16 %v197, %v196
  %v220 = vpack.c.b16 %v199, %v198
  %v221 = vpack.c.b16 %v201, %v200
  %v222 = vpack.c.b16 %v203, %v202
  %v223 = vpack.c.b16 %v205, %v204
  %v224 = vpack.c.b16 %v207, %v206
  %v225 = vpack.c.b16 %v209, %v208
  %242 = vmatprep.subr.bf16.mxu0 0
  %243 = vmatpush1.bf16.msra.mxu0 %v210
  %244 = vmatprep.subr.bf16.mxu0 0
  %245 = vmatpush1.bf16.msra.mxu0 %v211
  %246 = vmatprep.subr.bf16.mxu0 0
  %247 = vmatpush1.bf16.msra.mxu0 %v212
  %248 = vmatprep.subr.bf16.mxu0 0
  %249 = vmatpush1.bf16.msra.mxu0 %v213
  %250 = vmatprep.subr.bf16.mxu0 0
  %251 = vmatpush1.bf16.msra.mxu0 %v214
  %252 = vmatprep.subr.bf16.mxu0 0
  %253 = vmatpush1.bf16.msra.mxu0 %v215
  %254 = vmatprep.subr.bf16.mxu0 0
  %255 = vmatpush1.bf16.msra.mxu0 %v216
  %256 = vmatprep.subr.bf16.mxu0 0
  %257 = vmatpush1.bf16.msra.mxu0 %v217
  %258 = vmatprep.subr.bf16.mxu0 0
  %259 = vmatpush1.bf16.msra.mxu0 %v218
  %260 = vmatprep.subr.bf16.mxu0 0
  %261 = vmatpush1.bf16.msra.mxu0 %v219
  %262 = vmatprep.subr.bf16.mxu0 0
  %263 = vmatpush1.bf16.msra.mxu0 %v220
  %264 = vmatprep.subr.bf16.mxu0 0
  %265 = vmatpush1.bf16.msra.mxu0 %v221
  %266 = vmatprep.subr.bf16.mxu0 0
  %267 = vmatpush1.bf16.msra.mxu0 %v222
  %268 = vmatprep.subr.bf16.mxu0 0
  %269 = vmatpush1.bf16.msra.mxu0 %v223
  %270 = vmatprep.subr.bf16.mxu0 0
  %271 = vmatpush1.bf16.msra.mxu0 %v224
  %272 = vmatprep.subr.bf16.mxu0 0
  %273 = vmatpush1.bf16.msra.mxu0 %v225
  %274 = vmatprep.mubr.bf16.mxu0 %v115
  %275 = vmatmul.mubr.bf16.gmra.mrb[0].mxu0 %v114
  %v276 = vpop.f32.mrb[0].mxu0
  %v277 = vadd.f32 0.0, %v276
  %v278 = vpop.f32.mrb[0].mxu0
  %v279 = vpop.f32.mrb[0].mxu0
  %v280 = vadd.f32 0.0, %v279
  %v281 = vpop.f32.mrb[0].mxu0
  %282 = vmatprep.mubr.bf16.mxu0 %v117
  %283 = vmatmul.mubr.bf16.gmra.mrb[0].mxu0 %v116
  %v284 = vpop.f32.mrb[0].mxu0
  %v285 = vadd.f32 0.0, %v284
  %v286 = vpop.f32.mrb[0].mxu0
  %v287 = vpop.f32.mrb[0].mxu0
  %v288 = vadd.f32 0.0, %v287
  %v289 = vpop.f32.mrb[0].mxu0
  %290 = vmatprep.mubr.bf16.mxu0 %v119
  %291 = vmatmul.mubr.bf16.gmra.mrb[0].mxu0 %v118
  %v292 = vpop.f32.mrb[0].mxu0
  %v293 = vadd.f32 0.0, %v292
  %v294 = vpop.f32.mrb[0].mxu0
  %v295 = vpop.f32.mrb[0].mxu0
  %v296 = vadd.f32 0.0, %v295
  %v297 = vpop.f32.mrb[0].mxu0
  %298 = vmatprep.mubr.bf16.mxu0 %v121
  %299 = vmatmul.mubr.bf16.gmra.mrb[0].mxu0 %v120
  %v300 = vpop.f32.mrb[0].mxu0
  %v301 = vadd.f32 0.0, %v300
  %v302 = vpop.f32.mrb[0].mxu0
  %v303 = vpop.f32.mrb[0].mxu0
  %v304 = vadd.f32 0.0, %v303
  %v305 = vpop.f32.mrb[0].mxu0
  %306 = vmatprep.mubr.bf16.mxu0 %v123
  %307 = vmatmul.mubr.bf16.gmra.mrb[0].mxu0 %v122
  %v308 = vpop.f32.mrb[0].mxu0
  %v309 = vadd.f32 0.0, %v308
  %v310 = vpop.f32.mrb[0].mxu0
  %v311 = vpop.f32.mrb[0].mxu0
  %v312 = vadd.f32 0.0, %v311
  %v313 = vpop.f32.mrb[0].mxu0
  %314 = vmatprep.mubr.bf16.mxu0 %v125
  %315 = vmatmul.mubr.bf16.gmra.mrb[0].mxu0 %v124
  %v316 = vpop.f32.mrb[0].mxu0
  %v317 = vadd.f32 0.0, %v316
  %v318 = vpop.f32.mrb[0].mxu0
  %v319 = vpop.f32.mrb[0].mxu0
  %v320 = vadd.f32 0.0, %v319
  %v321 = vpop.f32.mrb[0].mxu0
  %322 = vmatprep.mubr.bf16.mxu0 %v127
  %323 = vmatmul.mubr.bf16.gmra.mrb[0].mxu0 %v126
  %v324 = vpop.f32.mrb[0].mxu0
  %v325 = vadd.f32 0.0, %v324
  %v326 = vpop.f32.mrb[0].mxu0
  %v327 = vpop.f32.mrb[0].mxu0
  %v328 = vadd.f32 0.0, %v327
  %v329 = vpop.f32.mrb[0].mxu0
  %330 = vmatprep.mubr.bf16.mxu0 %v129
  %331 = vmatmul.mubr.bf16.gmra.mrb[0].mxu0 %v128
  %v332 = vpop.f32.mrb[0].mxu0
  %v333 = vadd.f32 0.0, %v332
  %v334 = vpop.f32.mrb[0].mxu0
  %v335 = vpop.f32.mrb[0].mxu0
  %v336 = vadd.f32 0.0, %v335
  %v337 = vpop.f32.mrb[0].mxu0
  %338 = vdwg.mxu0
  %v339 = vadd.f32 %v277, %v280
  %v340 = vadd.f32 %v339, %v285
  %v341 = vadd.f32 %v340, %v288
  %v342 = vadd.f32 %v341, %v293
  %v343 = vadd.f32 %v342, %v296
  %v344 = vadd.f32 %v343, %v301
  %v345 = vadd.f32 %v344, %v304
  %v346 = vrot.slane %v345, 4
  %v347 = vadd.f32 %v345, %v346
  %v348 = vrot.slane %v347, 2
  %v349 = vadd.f32 %v347, %v348
  %v350 = vrot.slane %v349, 1
  %v351 = vadd.f32 %v349, %v350
  %v352 = vadd.f32 %v309, %v312
  %v353 = vadd.f32 %v352, %v317
  %v354 = vadd.f32 %v353, %v320
  %v355 = vadd.f32 %v354, %v325
  %v356 = vadd.f32 %v355, %v328
  %v357 = vadd.f32 %v356, %v333
  %v358 = vadd.f32 %v357, %v336
  %v359 = vrot.slane %v358, 4
  %v360 = vadd.f32 %v358, %v359
  %v361 = vrot.slane %v360, 2
  %v362 = vadd.f32 %v360, %v361
  %v363 = vrot.slane %v362, 1
  %v364 = vadd.f32 %v362, %v363
  %v365 = vrcp.pop 64.0
  %v366 = vmul.f32 %v351, %v365
  %v367 = vmul.f32 %v364, %v365
  %v368 = vmul.f32 %v277, %v277
  %v369 = vmul.f32 %v280, %v280
  %v370 = vmul.f32 %v285, %v285
  %v371 = vmul.f32 %v288, %v288
  %v372 = vmul.f32 %v293, %v293
  %v373 = vmul.f32 %v296, %v296
  %v374 = vmul.f32 %v301, %v301
  %v375 = vmul.f32 %v304, %v304
  %v376 = vmul.f32 %v309, %v309
  %v377 = vmul.f32 %v312, %v312
  %v378 = vmul.f32 %v317, %v317
  %v379 = vmul.f32 %v320, %v320
  %v380 = vmul.f32 %v325, %v325
  %v381 = vmul.f32 %v328, %v328
  %v382 = vmul.f32 %v333, %v333
  %v383 = vmul.f32 %v336, %v336
  %v384 = vadd.f32 %v368, %v369
  %v385 = vadd.f32 %v384, %v370
  %v386 = vadd.f32 %v385, %v371
  %v387 = vadd.f32 %v386, %v372
  %v388 = vadd.f32 %v387, %v373
  %v389 = vadd.f32 %v388, %v374
  %v390 = vadd.f32 %v389, %v375
  %v391 = vrot.slane %v390, 4
  %v392 = vadd.f32 %v390, %v391
  %v393 = vrot.slane %v392, 2
  %v394 = vadd.f32 %v392, %v393
  %v395 = vrot.slane %v394, 1
  %v396 = vadd.f32 %v394, %v395
  %v397 = vadd.f32 %v376, %v377
  %v398 = vadd.f32 %v397, %v378
  %v399 = vadd.f32 %v398, %v379
  %v400 = vadd.f32 %v399, %v380
  %v401 = vadd.f32 %v400, %v381
  %v402 = vadd.f32 %v401, %v382
  %v403 = vadd.f32 %v402, %v383
  %v404 = vrot.slane %v403, 4
  %v405 = vadd.f32 %v403, %v404
  %v406 = vrot.slane %v405, 2
  %v407 = vadd.f32 %v405, %v406
  %v408 = vrot.slane %v407, 1
  %v409 = vadd.f32 %v407, %v408
  %v410 = vmul.f32 %v396, %v365
  %v411 = vmul.f32 %v409, %v365
  %v412 = vmul.f32 %v366, %v366
  %v413 = vmul.f32 %v367, %v367
  %v414 = vsub.f32 %v410, %v412
  %v415 = vsub.f32 %v411, %v413
  %v416 = vmax.f32 %v414, 0.0
  %v417 = vmax.f32 %v415, 0.0
  %v418 = vsub.f32 %v277, %v366
  %v419 = vsub.f32 %v280, %v366
  %v420 = vsub.f32 %v285, %v366
  %v421 = vsub.f32 %v288, %v366
  %v422 = vsub.f32 %v293, %v366
  %v423 = vsub.f32 %v296, %v366
  %v424 = vsub.f32 %v301, %v366
  %v425 = vsub.f32 %v304, %v366
  %v426 = vsub.f32 %v309, %v367
  %v427 = vsub.f32 %v312, %v367
  %v428 = vsub.f32 %v317, %v367
  %v429 = vsub.f32 %v320, %v367
  %v430 = vsub.f32 %v325, %v367
  %v431 = vsub.f32 %v328, %v367
  %v432 = vsub.f32 %v333, %v367
  %v433 = vsub.f32 %v336, %v367
  %v434 = vadd.f32 %v416, 1e-05
  %v435 = vadd.f32 %v417, 1e-05
  %v436 = vrsqrt.pop %v434
  %v437 = vrsqrt.pop %v435
  %v438 = vmul.f32 %v418, %v436
  %v439 = vmul.f32 %v419, %v436
  %v440 = vmul.f32 %v420, %v436
  %v441 = vmul.f32 %v421, %v436
  %v442 = vmul.f32 %v422, %v436
  %v443 = vmul.f32 %v423, %v436
  %v444 = vmul.f32 %v424, %v436
  %v445 = vmul.f32 %v425, %v436
  %v446 = vmul.f32 %v426, %v437
  %v447 = vmul.f32 %v427, %v437
  %v448 = vmul.f32 %v428, %v437
  %v449 = vmul.f32 %v429, %v437
  %v450 = vmul.f32 %v430, %v437
  %v451 = vmul.f32 %v431, %v437
  %v452 = vmul.f32 %v432, %v437
  %v453 = vmul.f32 %v433, %v437
  %v454 = vld [vmem:[%s2] sm:$0x1]
  %v456 = vlaneseq
  %v457 = vshrl.u32 %v456, 7
  %v458 = vsub.s32 0, %v457
  %v459 = vrot.slane %v454, %v458
  %v461 = vmul.f32 %v438, %v459
  %v462 = vmul.f32 %v439, %v459
  %v463 = vmul.f32 %v440, %v459
  %v464 = vmul.f32 %v441, %v459
  %v465 = vmul.f32 %v442, %v459
  %v466 = vmul.f32 %v443, %v459
  %v467 = vmul.f32 %v444, %v459
  %v468 = vmul.f32 %v445, %v459
  %v469 = vmul.f32 %v446, %v459
  %v470 = vmul.f32 %v447, %v459
  %v471 = vmul.f32 %v448, %v459
  %v472 = vmul.f32 %v449, %v459
  %v473 = vmul.f32 %v450, %v459
  %v474 = vmul.f32 %v451, %v459
  %v475 = vmul.f32 %v452, %v459
  %v476 = vmul.f32 %v453, %v459
  %v477 = vld [vmem:[%s3] sm:$0x1]
  %v479 = vlaneseq
  %v480 = vshrl.u32 %v479, 7
  %v481 = vsub.s32 0, %v480
  %v482 = vrot.slane %v477, %v481
  %v484 = vadd.f32 %v461, %v482
  %v485 = vadd.f32 %v462, %v482
  %v486 = vadd.f32 %v463, %v482
  %v487 = vadd.f32 %v464, %v482
  %v488 = vadd.f32 %v465, %v482
  %v489 = vadd.f32 %v466, %v482
  %v490 = vadd.f32 %v467, %v482
  %v491 = vadd.f32 %v468, %v482
  %v492 = vadd.f32 %v469, %v482
  %v493 = vadd.f32 %v470, %v482
  %v494 = vadd.f32 %v471, %v482
  %v495 = vadd.f32 %v472, %v482
  %v496 = vadd.f32 %v473, %v482
  %v497 = vadd.f32 %v474, %v482
  %v498 = vadd.f32 %v475, %v482
  %v499 = vadd.f32 %v476, %v482
  %vm500 = vcmp.ge.f32.partialorder %v484, 0.0
  %vm501 = vcmp.ge.f32.partialorder %v485, 0.0
  %vm502 = vcmp.ge.f32.partialorder %v486, 0.0
  %vm503 = vcmp.ge.f32.partialorder %v487, 0.0
  %vm504 = vcmp.ge.f32.partialorder %v488, 0.0
  %vm505 = vcmp.ge.f32.partialorder %v489, 0.0
  %vm506 = vcmp.ge.f32.partialorder %v490, 0.0
  %vm507 = vcmp.ge.f32.partialorder %v491, 0.0
  %vm508 = vcmp.ge.f32.partialorder %v492, 0.0
  %vm509 = vcmp.ge.f32.partialorder %v493, 0.0
  %vm510 = vcmp.ge.f32.partialorder %v494, 0.0
  %vm511 = vcmp.ge.f32.partialorder %v495, 0.0
  %vm512 = vcmp.ge.f32.partialorder %v496, 0.0
  %vm513 = vcmp.ge.f32.partialorder %v497, 0.0
  %vm514 = vcmp.ge.f32.partialorder %v498, 0.0
  %vm515 = vcmp.ge.f32.partialorder %v499, 0.0
  %v516 = vmul.f32 %v484, 0.2
  %v517 = vmul.f32 %v485, 0.2
  %v518 = vmul.f32 %v486, 0.2
  %v519 = vmul.f32 %v487, 0.2
  %v520 = vmul.f32 %v488, 0.2
  %v521 = vmul.f32 %v489, 0.2
  %v522 = vmul.f32 %v490, 0.2
  %v523 = vmul.f32 %v491, 0.2
  %v524 = vmul.f32 %v492, 0.2
  %v525 = vmul.f32 %v493, 0.2
  %v526 = vmul.f32 %v494, 0.2
  %v527 = vmul.f32 %v495, 0.2
  %v528 = vmul.f32 %v496, 0.2
  %v529 = vmul.f32 %v497, 0.2
  %v530 = vmul.f32 %v498, 0.2
  %v531 = vmul.f32 %v499, 0.2
  %v532 = vsel %vm500, %v484, %v516
  %v533 = vsel %vm501, %v485, %v517
  %v534 = vsel %vm502, %v486, %v518
  %v535 = vsel %vm503, %v487, %v519
  %v536 = vsel %vm504, %v488, %v520
  %v537 = vsel %vm505, %v489, %v521
  %v538 = vsel %vm506, %v490, %v522
  %v539 = vsel %vm507, %v491, %v523
  %v540 = vsel %vm508, %v492, %v524
  %v541 = vsel %vm509, %v493, %v525
  %v542 = vsel %vm510, %v494, %v526
  %v543 = vsel %vm511, %v495, %v527
  %v544 = vsel %vm512, %v496, %v528
  %v545 = vsel %vm513, %v497, %v529
  %v546 = vsel %vm514, %v498, %v530
  %v547 = vsel %vm515, %v499, %v531
  %v548 = vpack.c.bf16 %v533, %v532
  %v549 = vpack.c.bf16 %v535, %v534
  %v550 = vpack.c.bf16 %v537, %v536
  %v551 = vpack.c.bf16 %v539, %v538
  %v552 = vpack.c.bf16 %v541, %v540
  %v553 = vpack.c.bf16 %v543, %v542
  %v554 = vpack.c.bf16 %v545, %v544
  %v555 = vpack.c.bf16 %v547, %v546
  %v564 = vunpack.c.l.b16 %v548
  %v565 = vunpack.c.h.b16 %v548
  %v566 = vunpack.c.l.b16 %v549
  %v567 = vunpack.c.h.b16 %v549
  %v568 = vunpack.c.l.b16 %v550
  %v569 = vunpack.c.h.b16 %v550
  %v570 = vunpack.c.l.b16 %v551
  %v571 = vunpack.c.h.b16 %v551
  %v572 = vunpack.c.l.b16 %v552
  %v573 = vunpack.c.h.b16 %v552
  %v574 = vunpack.c.l.b16 %v553
  %v575 = vunpack.c.h.b16 %v553
  %v576 = vunpack.c.l.b16 %v554
  %v577 = vunpack.c.h.b16 %v554
  %v578 = vunpack.c.l.b16 %v555
  %v579 = vunpack.c.h.b16 %v555
  %v580 = vpack.c.b16 %v564, %v564
  %v581 = vpack.c.b16 %v565, %v565
  %v582 = vpack.c.b16 %v566, %v566
  %v583 = vpack.c.b16 %v567, %v567
  %v584 = vpack.c.b16 %v568, %v568
  %v585 = vpack.c.b16 %v569, %v569
  %v586 = vpack.c.b16 %v570, %v570
  %v587 = vpack.c.b16 %v571, %v571
  %v588 = vpack.c.b16 %v572, %v572
  %v589 = vpack.c.b16 %v573, %v573
  %v590 = vpack.c.b16 %v574, %v574
  %v591 = vpack.c.b16 %v575, %v575
  %v592 = vpack.c.b16 %v576, %v576
  %v593 = vpack.c.b16 %v577, %v577
  %v594 = vpack.c.b16 %v578, %v578
  %v595 = vpack.c.b16 %v579, %v579
  %612 = vst [vmem:[%s4] sm:$0xf] %v580
  %613 = vst [vmem:[%s4 + $0x4] sm:$0xf] %v581
  %614 = vst [vmem:[%s4 + $0x8] sm:$0xf] %v582
  %615 = vst [vmem:[%s4 + $0xc] sm:$0xf] %v583
  %616 = vst [vmem:[%s4 + $0x10] sm:$0xf] %v584
  %617 = vst [vmem:[%s4 + $0x14] sm:$0xf] %v585
  %618 = vst [vmem:[%s4 + $0x18] sm:$0xf] %v586
  %619 = vst [vmem:[%s4 + $0x1c] sm:$0xf] %v587
  %620 = vst [vmem:[%s4 + $0x20] sm:$0xf] %v588
  %621 = vst [vmem:[%s4 + $0x24] sm:$0xf] %v589
  %622 = vst [vmem:[%s4 + $0x28] sm:$0xf] %v590
  %623 = vst [vmem:[%s4 + $0x2c] sm:$0xf] %v591
  %624 = vst [vmem:[%s4 + $0x30] sm:$0xf] %v592
  %625 = vst [vmem:[%s4 + $0x34] sm:$0xf] %v593
  %626 = vst [vmem:[%s4 + $0x38] sm:$0xf] %v594
  %627 = vst [vmem:[%s4 + $0x3c] sm:$0xf] %v595
  // Predicated region
  $region18: #{wasserstein_critic_forward.6} parent=0 // pred_check
    _
  $region19: #{wasserstein_critic_forward.6} parent=0 // pred_check_branch
    %629 = sbr.rel (0) target = $region21
  $region20: #{wasserstein_critic_forward.6} parent=0 // pred_region
    _
  $region21: #{wasserstein_critic_forward.6} parent=0 // pred_fallthru
    _
  // Predicated region
  $region22: #{wasserstein_critic_forward.6} parent=0 // pred_check
    _
  $region23: #{wasserstein_critic_forward.6} parent=0 // pred_check_branch
    %631 = sbr.rel (0) target = $region25
  $region24: #{wasserstein_critic_forward.6} parent=0 // pred_region
    _
  $region25: #{wasserstein_critic_forward.6} parent=0 // pred_fallthru
    _

// kernel: wasserstein_critic_forward.7
$region0: #{wasserstein_critic_forward.7}
  #allocation0 [shape = 'u32[]', space=smem, size = 0x4, offset = 0x4, fixed_abs, tag = 'smem constant byte address 0x4 - core index']
  #allocation1 [shape = 'u32[144,128]{1,0:T(1,128)}', space=vmem, size = 0x12000, scoped, tag = 'internal scratch']
  #allocation2 [shape = 'f32[1]{0:T(128)S(6)}', space=smem, size = 0x200, scoped, tag = 'scoped memory for wasserstein_critic_forward.7']
  %s0 = inlined_call_operand.vmem [shape: bf16[2,16,512], index: 0, kind: input, shape index: {}]
  %s1 = inlined_call_operand.vmem [shape: bf16[512,128], index: 1, kind: input, shape index: {}]
  %s2 = inlined_call_operand.vmem [shape: f32[1,128], index: 2, kind: input, shape index: {}]
  %s3 = inlined_call_operand.vmem [shape: f32[1,128], index: 3, kind: input, shape index: {}]
  %s4 = inlined_call_operand.vmem [shape: f32[16,128], index: 4, kind: input, shape index: {}]
  %s5 = inlined_call_operand.<no memory space> [shape: f32[1], index: 5, kind: input, shape index: {}]
  %s6 = inlined_call_operand.vmem [shape: f32[2,128], index: 6, kind: output, shape index: {}]
  %s7 = sld [smem:[#allocation0]]
  $region34: #{wasserstein_critic_forward.7} parent=0
    _
  %s9 = ssub.s32 1, %s7
  %s10 = scalar_select 0, %s9, %s7
  %11 = sst [smem:[#allocation2]] %s5
  // Predicated region
  $region2: #{wasserstein_critic_forward.7} parent=0 // pred_check
    _
  $region3: #{wasserstein_critic_forward.7} parent=0 // pred_check_branch
    %13 = sbr.rel (0) target = $region5
  $region4: #{wasserstein_critic_forward.7} parent=0 // pred_region
    _
  $region5: #{wasserstein_critic_forward.7} parent=0 // pred_fallthru
    _
  // Predicated region
  $region6: #{wasserstein_critic_forward.7} parent=0 // pred_check
    _
  $region7: #{wasserstein_critic_forward.7} parent=0 // pred_check_branch
    %15 = sbr.rel (0) target = $region9
  $region8: #{wasserstein_critic_forward.7} parent=0 // pred_region
    _
  $region9: #{wasserstein_critic_forward.7} parent=0 // pred_fallthru
    _
  // Predicated region
  $region10: #{wasserstein_critic_forward.7} parent=0 // pred_check
    _
  $region11: #{wasserstein_critic_forward.7} parent=0 // pred_check_branch
    %17 = sbr.rel (0) target = $region13
  $region12: #{wasserstein_critic_forward.7} parent=0 // pred_region
    _
  $region13: #{wasserstein_critic_forward.7} parent=0 // pred_fallthru
    _
  // Predicated region
  $region14: #{wasserstein_critic_forward.7} parent=0 // pred_check
    _
  $region15: #{wasserstein_critic_forward.7} parent=0 // pred_check_branch
    %19 = sbr.rel (0) target = $region17
  $region16: #{wasserstein_critic_forward.7} parent=0 // pred_region
    _
  $region17: #{wasserstein_critic_forward.7} parent=0 // pred_fallthru
    _
  // Predicated region
  $region18: #{wasserstein_critic_forward.7} parent=0 // pred_check
    _
  $region19: #{wasserstein_critic_forward.7} parent=0 // pred_check_branch
    %21 = sbr.rel (0) target = $region21
  $region20: #{wasserstein_critic_forward.7} parent=0 // pred_region
    _
  $region21: #{wasserstein_critic_forward.7} parent=0 // pred_fallthru
    _
  // Predicated region
  $region22: #{wasserstein_critic_forward.7} parent=0 // pred_check
    _
  $region23: #{wasserstein_critic_forward.7} parent=0 // pred_check_branch
    %23 = sbr.rel (0) target = $region25
  $region24: #{wasserstein_critic_forward.7} parent=0 // pred_region
    _
  $region25: #{wasserstein_critic_forward.7} parent=0 // pred_fallthru
    _
  %v25 = vld [vmem:[%s0] sm:$0xff]
  %v26 = vld [vmem:[%s0 + $0x8] sm:$0xff]
  %v27 = vld [vmem:[%s0 + $0x10] sm:$0xff]
  %v28 = vld [vmem:[%s0 + $0x18] sm:$0xff]
  %v29 = vld [vmem:[%s0 + $0x20] sm:$0xff]
  %v30 = vld [vmem:[%s0 + $0x28] sm:$0xff]
  %v31 = vld [vmem:[%s0 + $0x30] sm:$0xff]
  %v32 = vld [vmem:[%s0 + $0x38] sm:$0xff]
  %v33 = vld [vmem:[%s1] sm:$0xf]
  %v34 = vld [vmem:[%s1 + $0x4] sm:$0xf]
  %v35 = vld [vmem:[%s1 + $0x8] sm:$0xf]
  %v36 = vld [vmem:[%s1 + $0xc] sm:$0xf]
  %v37 = vld [vmem:[%s1 + $0x10] sm:$0xf]
  %v38 = vld [vmem:[%s1 + $0x14] sm:$0xf]
  %v39 = vld [vmem:[%s1 + $0x18] sm:$0xf]
  %v40 = vld [vmem:[%s1 + $0x1c] sm:$0xf]
  %v41 = vld [vmem:[%s1 + $0x20] sm:$0xf]
  %v42 = vld [vmem:[%s1 + $0x24] sm:$0xf]
  %v43 = vld [vmem:[%s1 + $0x28] sm:$0xf]
  %v44 = vld [vmem:[%s1 + $0x2c] sm:$0xf]
  %v45 = vld [vmem:[%s1 + $0x30] sm:$0xf]
  %v46 = vld [vmem:[%s1 + $0x34] sm:$0xf]
  %v47 = vld [vmem:[%s1 + $0x38] sm:$0xf]
  %v48 = vld [vmem:[%s1 + $0x3c] sm:$0xf]
  %v49 = vld [vmem:[%s1 + $0x40] sm:$0xf]
  %v50 = vld [vmem:[%s1 + $0x44] sm:$0xf]
  %v51 = vld [vmem:[%s1 + $0x48] sm:$0xf]
  %v52 = vld [vmem:[%s1 + $0x4c] sm:$0xf]
  %v53 = vld [vmem:[%s1 + $0x50] sm:$0xf]
  %v54 = vld [vmem:[%s1 + $0x54] sm:$0xf]
  %v55 = vld [vmem:[%s1 + $0x58] sm:$0xf]
  %v56 = vld [vmem:[%s1 + $0x5c] sm:$0xf]
  %v57 = vld [vmem:[%s1 + $0x60] sm:$0xf]
  %v58 = vld [vmem:[%s1 + $0x64] sm:$0xf]
  %v59 = vld [vmem:[%s1 + $0x68] sm:$0xf]
  %v60 = vld [vmem:[%s1 + $0x6c] sm:$0xf]
  %v61 = vld [vmem:[%s1 + $0x70] sm:$0xf]
  %v62 = vld [vmem:[%s1 + $0x74] sm:$0xf]
  %v63 = vld [vmem:[%s1 + $0x78] sm:$0xf]
  %v64 = vld [vmem:[%s1 + $0x7c] sm:$0xf]
  %v65 = vld [vmem:[%s1 + $0x80] sm:$0xf]
  %v66 = vld [vmem:[%s1 + $0x84] sm:$0xf]
  %v67 = vld [vmem:[%s1 + $0x88] sm:$0xf]
  %v68 = vld [vmem:[%s1 + $0x8c] sm:$0xf]
  %v69 = vld [vmem:[%s1 + $0x90] sm:$0xf]
  %v70 = vld [vmem:[%s1 + $0x94] sm:$0xf]
  %v71 = vld [vmem:[%s1 + $0x98] sm:$0xf]
  %v72 = vld [vmem:[%s1 + $0x9c] sm:$0xf]
  %v73 = vld [vmem:[%s1 + $0xa0] sm:$0xf]
  %v74 = vld [vmem:[%s1 + $0xa4] sm:$0xf]
  %v75 = vld [vmem:[%s1 + $0xa8] sm:$0xf]
  %v76 = vld [vmem:[%s1 + $0xac] sm:$0xf]
  %v77 = vld [vmem:[%s1 + $0xb0] sm:$0xf]
  %v78 = vld [vmem:[%s1 + $0xb4] sm:$0xf]
  %v79 = vld [vmem:[%s1 + $0xb8] sm:$0xf]
  %v80 = vld [vmem:[%s1 + $0xbc] sm:$0xf]
  %v81 = vld [vmem:[%s1 + $0xc0] sm:$0xf]
  %v82 = vld [vmem:[%s1 + $0xc4] sm:$0xf]
  %v83 = vld [vmem:[%s1 + $0xc8] sm:$0xf]
  %v84 = vld [vmem:[%s1 + $0xcc] sm:$0xf]
  %v85 = vld [vmem:[%s1 + $0xd0] sm:$0xf]
  %v86 = vld [vmem:[%s1 + $0xd4] sm:$0xf]
  %v87 = vld [vmem:[%s1 + $0xd8] sm:$0xf]
  %v88 = vld [vmem:[%s1 + $0xdc] sm:$0xf]
  %v89 = vld [vmem:[%s1 + $0xe0] sm:$0xf]
  %v90 = vld [vmem:[%s1 + $0xe4] sm:$0xf]
  %v91 = vld [vmem:[%s1 + $0xe8] sm:$0xf]
  %v92 = vld [vmem:[%s1 + $0xec] sm:$0xf]
  %v93 = vld [vmem:[%s1 + $0xf0] sm:$0xf]
  %v94 = vld [vmem:[%s1 + $0xf4] sm:$0xf]
  %v95 = vld [vmem:[%s1 + $0xf8] sm:$0xf]
  %v96 = vld [vmem:[%s1 + $0xfc] sm:$0xf]
  %v105 = vunpack.c.l.b16 %v25
  %v106 = vunpack.c.h.b16 %v25
  %v107 = vunpack.c.l.b16 %v26
  %v108 = vunpack.c.h.b16 %v26
  %v109 = vunpack.c.l.b16 %v27
  %v110 = vunpack.c.h.b16 %v27
  %v111 = vunpack.c.l.b16 %v28
  %v112 = vunpack.c.h.b16 %v28
  %v113 = vunpack.c.l.b16 %v29
  %v114 = vunpack.c.h.b16 %v29
  %v115 = vunpack.c.l.b16 %v30
  %v116 = vunpack.c.h.b16 %v30
  %v117 = vunpack.c.l.b16 %v31
  %v118 = vunpack.c.h.b16 %v31
  %v119 = vunpack.c.l.b16 %v32
  %v120 = vunpack.c.h.b16 %v32
  %v121 = vpack.c.b16 %v109, %v105
  %v122 = vpack.c.b16 %v110, %v106
  %v123 = vpack.c.b16 %v111, %v107
  %v124 = vpack.c.b16 %v112, %v108
  %v125 = vpack.c.b16 %v117, %v113
  %v126 = vpack.c.b16 %v118, %v114
  %v127 = vpack.c.b16 %v119, %v115
  %v128 = vpack.c.b16 %v120, %v116
  %v201 = vunpack.c.l.b16 %v33
  %v202 = vunpack.c.l.b16 %v34
  %v203 = vunpack.c.l.b16 %v35
  %v204 = vunpack.c.l.b16 %v36
  %v205 = vunpack.c.l.b16 %v37
  %v206 = vunpack.c.l.b16 %v38
  %v207 = vunpack.c.l.b16 %v39
  %v208 = vunpack.c.l.b16 %v40
  %v209 = vunpack.c.l.b16 %v41
  %v210 = vunpack.c.l.b16 %v42
  %v211 = vunpack.c.l.b16 %v43
  %v212 = vunpack.c.l.b16 %v44
  %v213 = vunpack.c.l.b16 %v45
  %v214 = vunpack.c.l.b16 %v46
  %v215 = vunpack.c.l.b16 %v47
  %v216 = vunpack.c.l.b16 %v48
  %v217 = vunpack.c.l.b16 %v49
  %v218 = vunpack.c.l.b16 %v50
  %v219 = vunpack.c.l.b16 %v51
  %v220 = vunpack.c.l.b16 %v52
  %v221 = vunpack.c.l.b16 %v53
  %v222 = vunpack.c.l.b16 %v54
  %v223 = vunpack.c.l.b16 %v55
  %v224 = vunpack.c.l.b16 %v56
  %v225 = vunpack.c.l.b16 %v57
  %v226 = vunpack.c.l.b16 %v58
  %v227 = vunpack.c.l.b16 %v59
  %v228 = vunpack.c.l.b16 %v60
  %v229 = vunpack.c.l.b16 %v61
  %v230 = vunpack.c.l.b16 %v62
  %v231 = vunpack.c.l.b16 %v63
  %v232 = vunpack.c.l.b16 %v64
  %v233 = vunpack.c.l.b16 %v65
  %v234 = vunpack.c.l.b16 %v66
  %v235 = vunpack.c.l.b16 %v67
  %v236 = vunpack.c.l.b16 %v68
  %v237 = vunpack.c.l.b16 %v69
  %v238 = vunpack.c.l.b16 %v70
  %v239 = vunpack.c.l.b16 %v71
  %v240 = vunpack.c.l.b16 %v72
  %v241 = vunpack.c.l.b16 %v73
  %v242 = vunpack.c.l.b16 %v74
  %v243 = vunpack.c.l.b16 %v75
  %v244 = vunpack.c.l.b16 %v76
  %v245 = vunpack.c.l.b16 %v77
  %v246 = vunpack.c.l.b16 %v78
  %v247 = vunpack.c.l.b16 %v79
  %v248 = vunpack.c.l.b16 %v80
  %v249 = vunpack.c.l.b16 %v81
  %v250 = vunpack.c.l.b16 %v82
  %v251 = vunpack.c.l.b16 %v83
  %v252 = vunpack.c.l.b16 %v84
  %v253 = vunpack.c.l.b16 %v85
  %v254 = vunpack.c.l.b16 %v86
  %v255 = vunpack.c.l.b16 %v87
  %v256 = vunpack.c.l.b16 %v88
  %v257 = vunpack.c.l.b16 %v89
  %v258 = vunpack.c.l.b16 %v90
  %v259 = vunpack.c.l.b16 %v91
  %v260 = vunpack.c.l.b16 %v92
  %v261 = vunpack.c.l.b16 %v93
  %v262 = vunpack.c.l.b16 %v94
  %v263 = vunpack.c.l.b16 %v95
  %v264 = vunpack.c.l.b16 %v96
  %v265 = vpack.c.b16 %v202, %v201
  %v266 = vpack.c.b16 %v204, %v203
  %v267 = vpack.c.b16 %v206, %v205
  %v268 = vpack.c.b16 %v208, %v207
  %v269 = vpack.c.b16 %v210, %v209
  %v270 = vpack.c.b16 %v212, %v211
  %v271 = vpack.c.b16 %v214, %v213
  %v272 = vpack.c.b16 %v216, %v215
  %v273 = vpack.c.b16 %v218, %v217
  %v274 = vpack.c.b16 %v220, %v219
  %v275 = vpack.c.b16 %v222, %v221
  %v276 = vpack.c.b16 %v224, %v223
  %v277 = vpack.c.b16 %v226, %v225
  %v278 = vpack.c.b16 %v228, %v227
  %v279 = vpack.c.b16 %v230, %v229
  %v280 = vpack.c.b16 %v232, %v231
  %v281 = vpack.c.b16 %v234, %v233
  %v282 = vpack.c.b16 %v236, %v235
  %v283 = vpack.c.b16 %v238, %v237
  %v284 = vpack.c.b16 %v240, %v239
  %v285 = vpack.c.b16 %v242, %v241
  %v286 = vpack.c.b16 %v244, %v243
  %v287 = vpack.c.b16 %v246, %v245
  %v288 = vpack.c.b16 %v248, %v247
  %v289 = vpack.c.b16 %v250, %v249
  %v290 = vpack.c.b16 %v252, %v251
  %v291 = vpack.c.b16 %v254, %v253
  %v292 = vpack.c.b16 %v256, %v255
  %v293 = vpack.c.b16 %v258, %v257
  %v294 = vpack.c.b16 %v260, %v259
  %v295 = vpack.c.b16 %v262, %v261
  %v296 = vpack.c.b16 %v264, %v263
  %329 = vmatprep.subr.bf16.mxu0 0
  %330 = vmatpush1.bf16.msra.mxu0 %v265
  %331 = vmatprep.subr.bf16.mxu0 0
  %332 = vmatpush1.bf16.msra.mxu0 %v266
  %333 = vmatprep.subr.bf16.mxu0 0
  %334 = vmatpush1.bf16.msra.mxu0 %v267
  %335 = vmatprep.subr.bf16.mxu0 0
  %336 = vmatpush1.bf16.msra.mxu0 %v268
  %337 = vmatprep.subr.bf16.mxu0 0
  %338 = vmatpush1.bf16.msra.mxu0 %v269
  %339 = vmatprep.subr.bf16.mxu0 0
  %340 = vmatpush1.bf16.msra.mxu0 %v270
  %341 = vmatprep.subr.bf16.mxu0 0
  %342 = vmatpush1.bf16.msra.mxu0 %v271
  %343 = vmatprep.subr.bf16.mxu0 0
  %344 = vmatpush1.bf16.msra.mxu0 %v272
  %345 = vmatprep.subr.bf16.mxu0 0
  %346 = vmatpush1.bf16.msra.mxu0 %v273
  %347 = vmatprep.subr.bf16.mxu0 0
  %348 = vmatpush1.bf16.msra.mxu0 %v274
  %349 = vmatprep.subr.bf16.mxu0 0
  %350 = vmatpush1.bf16.msra.mxu0 %v275
  %351 = vmatprep.subr.bf16.mxu0 0
  %352 = vmatpush1.bf16.msra.mxu0 %v276
  %353 = vmatprep.subr.bf16.mxu0 0
  %354 = vmatpush1.bf16.msra.mxu0 %v277
  %355 = vmatprep.subr.bf16.mxu0 0
  %356 = vmatpush1.bf16.msra.mxu0 %v278
  %357 = vmatprep.subr.bf16.mxu0 0
  %358 = vmatpush1.bf16.msra.mxu0 %v279
  %359 = vmatprep.subr.bf16.mxu0 0
  %360 = vmatpush1.bf16.msra.mxu0 %v280
  %361 = vmatprep.mubr.bf16.mxu0 %v122
  %362 = vmatmul.mubr.bf16.gmra.mrb[0].mxu0 %v121
  %v363 = vpop.f32.mrb[0].mxu0
  %v364 = vadd.f32 0.0, %v363
  %v365 = vpop.f32.mrb[0].mxu0
  %v366 = vpop.f32.mrb[0].mxu0
  %v367 = vadd.f32 0.0, %v366
  %v368 = vpop.f32.mrb[0].mxu0
  %369 = vmatprep.mubr.bf16.mxu0 %v126
  %370 = vmatmul.mubr.bf16.gmra.mrb[0].mxu0 %v125
  %v371 = vpop.f32.mrb[0].mxu0
  %v372 = vadd.f32 0.0, %v371
  %v373 = vpop.f32.mrb[0].mxu0
  %v374 = vpop.f32.mrb[0].mxu0
  %v375 = vadd.f32 0.0, %v374
  %v376 = vpop.f32.mrb[0].mxu0
  %377 = vdwg.mxu0
  %378 = vmatprep.subr.bf16.mxu0 0
  %379 = vmatpush1.bf16.msra.mxu0 %v281
  %380 = vmatprep.subr.bf16.mxu0 0
  %381 = vmatpush1.bf16.msra.mxu0 %v282
  %382 = vmatprep.subr.bf16.mxu0 0
  %383 = vmatpush1.bf16.msra.mxu0 %v283
  %384 = vmatprep.subr.bf16.mxu0 0
  %385 = vmatpush1.bf16.msra.mxu0 %v284
  %386 = vmatprep.subr.bf16.mxu0 0
  %387 = vmatpush1.bf16.msra.mxu0 %v285
  %388 = vmatprep.subr.bf16.mxu0 0
  %389 = vmatpush1.bf16.msra.mxu0 %v286
  %390 = vmatprep.subr.bf16.mxu0 0
  %391 = vmatpush1.bf16.msra.mxu0 %v287
  %392 = vmatprep.subr.bf16.mxu0 0
  %393 = vmatpush1.bf16.msra.mxu0 %v288
  %394 = vmatprep.subr.bf16.mxu0 0
  %395 = vmatpush1.bf16.msra.mxu0 %v289
  %396 = vmatprep.subr.bf16.mxu0 0
  %397 = vmatpush1.bf16.msra.mxu0 %v290
  %398 = vmatprep.subr.bf16.mxu0 0
  %399 = vmatpush1.bf16.msra.mxu0 %v291
  %400 = vmatprep.subr.bf16.mxu0 0
  %401 = vmatpush1.bf16.msra.mxu0 %v292
  %402 = vmatprep.subr.bf16.mxu0 0
  %403 = vmatpush1.bf16.msra.mxu0 %v293
  %404 = vmatprep.subr.bf16.mxu0 0
  %405 = vmatpush1.bf16.msra.mxu0 %v294
  %406 = vmatprep.subr.bf16.mxu0 0
  %407 = vmatpush1.bf16.msra.mxu0 %v295
  %408 = vmatprep.subr.bf16.mxu0 0
  %409 = vmatpush1.bf16.msra.mxu0 %v296
  %410 = vmatprep.mubr.bf16.mxu0 %v124
  %411 = vmatmul.mubr.bf16.gmra.mrb[0].mxu0 %v123
  %v412 = vpop.f32.mrb[0].mxu0
  %v413 = vadd.f32 %v364, %v412
  %v414 = vpop.f32.mrb[0].mxu0
  %v415 = vpop.f32.mrb[0].mxu0
  %v416 = vadd.f32 %v367, %v415
  %v417 = vpop.f32.mrb[0].mxu0
  %418 = vmatprep.mubr.bf16.mxu0 %v128
  %419 = vmatmul.mubr.bf16.gmra.mrb[0].mxu0 %v127
  %v420 = vpop.f32.mrb[0].mxu0
  %v421 = vadd.f32 %v372, %v420
  %v422 = vpop.f32.mrb[0].mxu0
  %v423 = vpop.f32.mrb[0].mxu0
  %v424 = vadd.f32 %v375, %v423
  %v425 = vpop.f32.mrb[0].mxu0
  %426 = vdwg.mxu0
  %v427 = vadd.f32 %v413, %v416
  %v428 = vrot.slane %v427, 4
  %v429 = vadd.f32 %v427, %v428
  %v430 = vrot.slane %v429, 2
  %v431 = vadd.f32 %v429, %v430
  %v432 = vrot.slane %v431, 1
  %v433 = vadd.f32 %v431, %v432
  %v434 = vadd.f32 %v421, %v424
  %v435 = vrot.slane %v434, 4
  %v436 = vadd.f32 %v434, %v435
  %v437 = vrot.slane %v436, 2
  %v438 = vadd.f32 %v436, %v437
  %v439 = vrot.slane %v438, 1
  %v440 = vadd.f32 %v438, %v439
  %v441 = vrcp.pop 16.0
  %v442 = vmul.f32 %v433, %v441
  %v443 = vmul.f32 %v440, %v441
  %v444 = vmul.f32 %v413, %v413
  %v445 = vmul.f32 %v416, %v416
  %v446 = vmul.f32 %v421, %v421
  %v447 = vmul.f32 %v424, %v424
  %v448 = vadd.f32 %v444, %v445
  %v449 = vrot.slane %v448, 4
  %v450 = vadd.f32 %v448, %v449
  %v451 = vrot.slane %v450, 2
  %v452 = vadd.f32 %v450, %v451
  %v453 = vrot.slane %v452, 1
  %v454 = vadd.f32 %v452, %v453
  %v455 = vadd.f32 %v446, %v447
  %v456 = vrot.slane %v455, 4
  %v457 = vadd.f32 %v455, %v456
  %v458 = vrot.slane %v457, 2
  %v459 = vadd.f32 %v457, %v458
  %v460 = vrot.slane %v459, 1
  %v461 = vadd.f32 %v459, %v460
  %v462 = vmul.f32 %v454, %v441
  %v463 = vmul.f32 %v461, %v441
  %v464 = vmul.f32 %v442, %v442
  %v465 = vmul.f32 %v443, %v443
  %v466 = vsub.f32 %v462, %v464
  %v467 = vsub.f32 %v463, %v465
  %v468 = vmax.f32 %v466, 0.0
  %v469 = vmax.f32 %v467, 0.0
  %v470 = vsub.f32 %v413, %v442
  %v471 = vsub.f32 %v416, %v442
  %v472 = vsub.f32 %v421, %v443
  %v473 = vsub.f32 %v424, %v443
  %v474 = vadd.f32 %v468, 1e-05
  %v475 = vadd.f32 %v469, 1e-05
  %v476 = vrsqrt.pop %v474
  %v477 = vrsqrt.pop %v475
  %v478 = vmul.f32 %v470, %v476
  %v479 = vmul.f32 %v471, %v476
  %v480 = vmul.f32 %v472, %v477
  %v481 = vmul.f32 %v473, %v477
  %v482 = vld [vmem:[%s2] sm:$0x1]
  %v484 = vlaneseq
  %v485 = vshrl.u32 %v484, 7
  %v486 = vsub.s32 0, %v485
  %v487 = vrot.slane %v482, %v486
  %v489 = vmul.f32 %v478, %v487
  %v490 = vmul.f32 %v479, %v487
  %v491 = vmul.f32 %v480, %v487
  %v492 = vmul.f32 %v481, %v487
  %v493 = vld [vmem:[%s3] sm:$0x1]
  %v495 = vlaneseq
  %v496 = vshrl.u32 %v495, 7
  %v497 = vsub.s32 0, %v496
  %v498 = vrot.slane %v493, %v497
  %v500 = vadd.f32 %v489, %v498
  %v501 = vadd.f32 %v490, %v498
  %v502 = vadd.f32 %v491, %v498
  %v503 = vadd.f32 %v492, %v498
  %vm504 = vcmp.ge.f32.partialorder %v500, 0.0
  %vm505 = vcmp.ge.f32.partialorder %v501, 0.0
  %vm506 = vcmp.ge.f32.partialorder %v502, 0.0
  %vm507 = vcmp.ge.f32.partialorder %v503, 0.0
  %v508 = vmul.f32 %v500, 0.2
  %v509 = vmul.f32 %v501, 0.2
  %v510 = vmul.f32 %v502, 0.2
  %v511 = vmul.f32 %v503, 0.2
  %v512 = vsel %vm504, %v500, %v508
  %v513 = vsel %vm505, %v501, %v509
  %v514 = vsel %vm506, %v502, %v510
  %v515 = vsel %vm507, %v503, %v511
  %v516 = vld [vmem:[%s4] sm:$0xff]
  %v517 = vld [vmem:[%s4 + $0x8] sm:$0xff]
  %v518 = vmul.f32 %v512, %v516
  %v519 = vmul.f32 %v513, %v517
  %v520 = vmul.f32 %v514, %v516
  %v521 = vmul.f32 %v515, %v517
  %v522 = vadd.f32 %v518, %v519
  %v523 = vrot.slane %v522, 4
  %v524 = vadd.f32 %v522, %v523
  %v525 = vrot.slane %v524, 2
  %v526 = vadd.f32 %v524, %v525
  %v527 = vrot.slane %v526, 1
  %v528 = vadd.f32 %v526, %v527
  %v529 = vadd.f32 %v520, %v521
  %v530 = vrot.slane %v529, 4
  %v531 = vadd.f32 %v529, %v530
  %v532 = vrot.slane %v531, 2
  %v533 = vadd.f32 %v531, %v532
  %v534 = vrot.slane %v533, 1
  %v535 = vadd.f32 %v533, %v534
  %vm538 = vcmask 1041409
  %v539 = vsel %vm538, %v535, %v528
  %vm541 = vcmask 1041408
  %v542 = vsel %vm541, %v539, 0.0
  %543 = vadd.xlane.f32.xlu0 %v542
  %v544 = vpop.xlane.xlu0 %543
  %s545 = sld [smem:[#allocation2]]
  %v546 = vstv %s545
  %v547 = vadd.f32 %v544, %v546
  %548 = vst [vmem:[%s6] sm:$0x3] %v547
  // Predicated region
  $region26: #{wasserstein_critic_forward.7} parent=0 // pred_check
    _
  $region27: #{wasserstein_critic_forward.7} parent=0 // pred_check_branch
    %550 = sbr.rel (0) target = $region29
  $region28: #{wasserstein_critic_forward.7} parent=0 // pred_region
    _
  $region29: #{wasserstein_critic_forward.7} parent=0 // pred_fallthru
    _
  // Predicated region
  $region30: #{wasserstein_critic_forward.7} parent=0 // pred_check
    _
  $region31: #{wasserstein_critic_forward.7} parent=0 // pred_check_branch
    %552 = sbr.rel (0) target = $region33
  $region32: #{wasserstein_critic_forward.7} parent=0 // pred_region
    _
  $region33: #{wasserstein_critic_forward.7} parent=0 // pred_fallthru
    _

</llo_original>
